<compile_context>
chip_gen: v5e
topology: v5e:2x2
jax: 0.10.0
libtpu: 0.0.40
codegen_flags: <defaults>
</compile_context>

<pallas_src>
import numpy as np
import jax
import jax.numpy as jnp
from jax.experimental import pallas as pl
from jax.experimental.pallas import tpu as pltpu

TAPS_S2 = 16  # 4x4 kernel taps of the stride-2 layers


# ----------------------------- Pallas kernel -------------------------------- #

def _make_kernel(batch, hw1, hw2, hw3):
    """Fused 4-layer forward.  batch/hw* are static Python ints.

    hw1 = H*W (rows per batch entering layer 2), hw2 = (H/2)*(W/2),
    hw3 = (H/4)*(W/4) (rows per batch at the output)."""
    f32, bf16 = jnp.float32, jnp.bfloat16

    def conv_s2(xb, g_ref, w_ref, b_ref, mo, p_scr):
        ci = xb.shape[1]
        # All 16 taps of reflect-pad + stride-2 + im2col as ONE GEMM on the
        # narrow (input-channel) side: (16*mo, mi) @ (mi, ci).
        z = jnp.dot(g_ref[...], xb.astype(bf16), preferred_element_type=f32)
        # Repack tap-major rows into the im2col patch matrix (mo, 16*ci) via a
        # VMEM scratch (static, aligned slice stores only).
        for t in range(TAPS_S2):
            p_scr[:, t * ci:(t + 1) * ci] = z[t * mo:(t + 1) * mo, :]
        # One weight GEMM per layer/batch: (mo, 16*ci) @ (16*ci, co).
        y = jnp.dot(p_scr[...].astype(bf16), w_ref[...],
                    preferred_element_type=f32)
        return jnp.maximum(y + b_ref[...], 0.0)

    def kernel(p1_ref, w1_ref, b1_ref,
               g2_ref, w2_ref, b2_ref,
               g3_ref, w3_ref, b3_ref,
               w4_ref, b4_ref,
               out_ref, p2_scr, p3_scr):
        # Layer 1: 7x7 stride-1 reflect conv == one GEMM on lane-padded patches
        # (B*hw1, 256) @ (256, dim), bias, ReLU.
        y1 = jnp.dot(p1_ref[...], w1_ref[...], preferred_element_type=f32)
        y1 = jnp.maximum(y1 + b1_ref[...], 0.0)                 # (B*hw1, dim) f32

        for b_i in range(batch):                                 # static unroll
            xb = y1[b_i * hw1:(b_i + 1) * hw1, :]                # (hw1, dim)
            # Layers 2 & 3: 4x4 stride-2 reflect-pad convs (shared per-batch G).
            y2 = conv_s2(xb, g2_ref, w2_ref, b2_ref, hw2, p2_scr)   # (hw2, 2*dim)
            y3 = conv_s2(y2, g3_ref, w3_ref, b3_ref, hw3, p3_scr)   # (hw3, 4*dim)
            # Layer 4: 1x1 conv, bias, no activation.
            ob = jnp.dot(y3.astype(bf16), w4_ref[...],
                         preferred_element_type=f32) + b4_ref[...]
            out_ref[b_i * hw3:(b_i + 1) * hw3, :] = ob.astype(out_ref.dtype)

    return kernel


def _run_fused_kernel(kp, patches1, batch, h, w):
    hw1, hw2, hw3 = h * w, (h // 2) * (w // 2), (h // 4) * (w // 4)
    dim = kp['w1'].shape[1]
    dim2 = kp['w2'].shape[1]
    m_out, c_out = batch * hw3, kp['w4'].shape[1]

    args = (patches1, kp['w1'], kp['b1'],
            kp['g2'], kp['w2'], kp['b2'],
            kp['g3'], kp['w3'], kp['b3'],
            kp['w4'], kp['b4'])

    bytes_accessed = (sum(int(np.prod(a.shape)) * a.dtype.itemsize for a in args)
                      + m_out * c_out * 4)
    flops = 2 * (patches1.shape[0] * patches1.shape[1] * dim
                 + batch * (kp['g2'].shape[0] * kp['g2'].shape[1] * dim
                            + hw2 * kp['w2'].shape[0] * dim2
                            + kp['g3'].shape[0] * kp['g3'].shape[1] * dim2
                            + hw3 * kp['w3'].shape[0] * kp['w3'].shape[1]
                            + hw3 * kp['w4'].shape[0] * c_out))

    vmem = pl.BlockSpec(memory_space=pltpu.MemorySpace.VMEM)
    return pl.pallas_call(
        _make_kernel(batch, hw1, hw2, hw3),
        out_shape=jax.ShapeDtypeStruct((m_out, c_out), jnp.float32),
        in_specs=[vmem] * len(args),
        out_specs=vmem,
        scratch_shapes=[pltpu.VMEM((hw2, TAPS_S2 * dim), jnp.float32),
                        pltpu.VMEM((hw3, TAPS_S2 * dim2), jnp.float32)],
        compiler_params=pltpu.CompilerParams(vmem_limit_bytes=32 * 1024 * 1024),
        cost_estimate=pl.CostEstimate(flops=int(flops), transcendentals=0,
                                      bytes_accessed=int(bytes_accessed)),
    )(*args)


# --------------------- constant (init-time) preparation --------------------- #

def _reflect(p, n):
    # Single-reflection assumption: requires pad < n (true for this config).
    if p < 0:
        return -p
    if p >= n:
        return 2 * (n - 1) - p
    return p


def _l1_index_table(h, w, k, pad, cin):
    """(H*W, taps_pad) int32 gather table into the flattened H*W grid.

    Reflect padding is folded in.  The tap axis is padded with dummy index 0 so
    that taps_pad*cin is a multiple of 128 (matching w1 rows are zeroed), giving
    a lane-aligned K for the layer-1 GEMM at zero runtime cost."""
    assert pad < h and pad < w, "single-reflection assumption violated"
    k_real = k * k * cin
    k_pad = ((k_real + 127) // 128) * 128
    assert k_pad % cin == 0
    taps_pad = k_pad // cin
    idx = np.zeros((h * w, taps_pad), np.int32)
    for oh in range(h):
        for ow in range(w):
            for i in range(k):
                for j in range(k):
                    ih = _reflect(oh + i - pad, h)
                    iw = _reflect(ow + j - pad, w)
                    idx[oh * w + ow, i * k + j] = ih * w + iw
    return jnp.asarray(idx), taps_pad


def _gather_block(hi, wi, k, stride, pad):
    """Per-batch, tap-stacked 0/1 gather matrix (k*k*Mo, Mi) in bf16 (exact).

    Row t*Mo + (oh*Wo+ow) selects flattened input row
    reflect(s*oh+i-pad)*Wi + reflect(s*ow+j-pad) for tap t = i*k+j, so reflect
    padding + stride-2 window selection + im2col become one MXU GEMM applied on
    the narrow (input-channel) side.  Spatially identical across the batch, so
    only one per-batch block is stored (block-diagonal structure exploited)."""
    assert pad < hi and pad < wi, "single-reflection assumption violated"
    ho = (hi + 2 * pad - k) // stride + 1
    wo = (wi + 2 * pad - k) // stride + 1
    mo, mi = ho * wo, hi * wi
    g = np.zeros((k * k * mo, mi), np.float32)
    for i in range(k):
        for j in range(k):
            t = i * k + j
            for oh in range(ho):
                ih = _reflect(stride * oh + i - pad, hi)
                for ow in range(wo):
                    iw = _reflect(stride * ow + j - pad, wi)
                    g[t * mo + oh * wo + ow, ih * wi + iw] = 1.0
    return jnp.asarray(g, jnp.bfloat16)      # 0/1 is exact in bf16


def prepare_kernel_params(params, h, w):
    """Reshape torch-layout weights once at init; build gather tables/matrices."""
    l1, l2, l3, l4 = params
    bf16 = jnp.bfloat16

    def to_mat(wt):   # (Cout, Cin, KH, KW) -> (KH*KW*Cin, Cout), (i, j, ci) row order
        return jnp.transpose(wt, (2, 3, 1, 0)).reshape(-1, wt.shape[0])

    cin = l1['w'].shape[1]
    idx1, taps_pad = _l1_index_table(h, w, k=7, pad=3, cin=cin)
    w1 = to_mat(l1['w'])
    w1 = jnp.concatenate(
        [w1, jnp.zeros((taps_pad * cin - w1.shape[0], w1.shape[1]), w1.dtype)],
        axis=0)                                   # K padded 196 -> 256

    g2 = _gather_block(h, w, k=4, stride=2, pad=1)
    g3 = _gather_block(h // 2, w // 2, k=4, stride=2, pad=1)
    # Dense-G scalability guard (grows as (H*W)^2/4 per layer; v7x VMEM is 64 MiB).
    assert g2.size * 2 < 8 * 1024 * 1024, \
        "dense gather matrix too large for VMEM; switch to an index-based gather"

    return dict(
        idx1=idx1,
        w1=w1.astype(bf16), b1=l1['b'].reshape(1, -1),
        g2=g2, w2=to_mat(l2['w']).astype(bf16), b2=l2['b'].reshape(1, -1),
        g3=g3, w3=to_mat(l3['w']).astype(bf16), b3=l3['b'].reshape(1, -1),
        w4=l4['w'][:, :, 0, 0].T.astype(bf16), b4=l4['b'].reshape(1, -1),
    )


# ------------------------------ forward pass -------------------------------- #

def _extract_patches_l1(x_nchw, idx1):
    """Layer-1 im2col with one fused gather; reflect pad + lane-pad folded into
    the init-time index table.  Output columns are ordered (tap, cin)."""
    b, c, h, w = x_nchw.shape
    xr = jnp.transpose(x_nchw.astype(jnp.bfloat16).reshape(b, c, h * w), (0, 2, 1))
    p = jnp.take(xr, idx1, axis=1, mode='clip')          # (B, H*W, taps_pad, C)
    return p.reshape(b * h * w, idx1.shape[1] * c)       # (B*H*W, 256) bf16


def noise_encoder_forward(kparams, x_nchw):
    b, _, h, w = x_nchw.shape
    ho, wo = h // 4, w // 4
    patches1 = _extract_patches_l1(x_nchw, kparams['idx1'])
    out2d = _run_fused_kernel(kparams, patches1, b, h, w)     # (B*ho*wo, style)
    return jnp.transpose(out2d.reshape(b, ho, wo, -1), (0, 3, 1, 2))   # NCHW


# ------------------------- parameter initialization ------------------------- #

def init_noise_encoder_params(key, n_downsample, input_dim, dim, style_dim):
    """Deterministic init mirroring NoiseEncoder.__init__ layer shapes (torch layout)."""
    cfgs = [dict(cin=input_dim, cout=dim, k=7, stride=1, pad=3, relu=True)]
    d = dim
    for _ in range(2):
        cfgs.append(dict(cin=d, cout=2 * d, k=4, stride=2, pad=1, relu=True))
        d *= 2
    for _ in range(n_downsample - 2):
        cfgs.append(dict(cin=d, cout=d, k=4, stride=2, pad=1, relu=True))
    cfgs.append(dict(cin=d, cout=style_dim, k=1, stride=1, pad=0, relu=False))

    params = []
    for i, c in enumerate(cfgs):
        kw_, kb_ = jax.random.split(jax.random.fold_in(key, i))
        fan_in = c['cin'] * c['k'] * c['k']
        wgt = jax.random.normal(kw_, (c['cout'], c['cin'], c['k'], c['k']),
                                jnp.float32) / jnp.sqrt(float(fan_in))
        bia = jax.random.normal(kb_, (c['cout'],), jnp.float32) * 0.01
        params.append(dict(w=wgt, b=bia, stride=c['stride'], pad=c['pad'],
                           relu=c['relu']))
    return params


# ------------------------------ JAX reference -------------------------------- #

def noise_encoder_reference(params, x_nchw):
    x = jnp.transpose(x_nchw, (0, 2, 3, 1))
    for p in params:
        if p['pad'] > 0:
            x = jnp.pad(x, ((0, 0), (p['pad'], p['pad']), (p['pad'], p['pad']),
                            (0, 0)), mode='reflect')
        w_hwio = jnp.transpose(p['w'], (2, 3, 1, 0))
        x = jax.lax.conv_general_dilated(
            x, w_hwio, (p['stride'], p['stride']), 'VALID',
            dimension_numbers=('NHWC', 'HWIO', 'NHWC'),
            precision=jax.lax.Precision.HIGHEST)
        x = x + p['b'].reshape(1, 1, 1, -1)
        if p['relu']:
            x = jnp.maximum(x, 0.0)
    return jnp.transpose(x, (0, 3, 1, 2))


# ---------------------------------- main ------------------------------------ #

if __name__ == "__main__":
    key = jax.random.PRNGKey(0)

    B, Cin, H, W = 2, 4, 16, 16
    n_downsample, dim, style_dim = 2, 8, 8

    x = jax.random.normal(jax.random.fold_in(key, 1000), (B, Cin, H, W), jnp.float32)
    params = init_noise_encoder_params(key, n_downsample, Cin, dim, style_dim)
    kparams = prepare_kernel_params(params, H, W)

    forward = jax.jit(noise_encoder_forward)
    out = jax.block_until_ready(forward(kparams, x))

    expected = (B, style_dim, H // (2 ** n_downsample), W // (2 ** n_downsample))
    assert out.shape == expected, (out.shape, expected)
    assert out.dtype == jnp.float32

    ref = jax.block_until_ready(noise_encoder_reference(params, x))
    max_err = float(jnp.max(jnp.abs(out - ref)))
    # Explicit precision choice (per perf review): bf16 MXU operands with f32
    # accumulation.  The gather GEMMs are exact (0/1 matrices); only the weight
    # GEMMs see bf16 rounding, so tolerance is sized for bf16 matmuls.
    assert jnp.allclose(out, ref, rtol=1e-1, atol=5e-2), max_err

    print("KERNEL_OK")
</pallas_src>

<mosaic_0001>
module attributes {stable_mosaic.version = 11 : i64} {
  func.func @kernel(%arg0: memref<512x256xbf16, #tpu.memory_space<vmem>>, %arg1: memref<256x8xbf16, #tpu.memory_space<vmem>>, %arg2: memref<1x8xf32, #tpu.memory_space<vmem>>, %arg3: memref<1024x256xbf16, #tpu.memory_space<vmem>>, %arg4: memref<128x16xbf16, #tpu.memory_space<vmem>>, %arg5: memref<1x16xf32, #tpu.memory_space<vmem>>, %arg6: memref<256x64xbf16, #tpu.memory_space<vmem>>, %arg7: memref<256x32xbf16, #tpu.memory_space<vmem>>, %arg8: memref<1x32xf32, #tpu.memory_space<vmem>>, %arg9: memref<32x8xbf16, #tpu.memory_space<vmem>>, %arg10: memref<1x8xf32, #tpu.memory_space<vmem>>, %arg11: memref<32x8xf32, #tpu.memory_space<vmem>>, %arg12: memref<64x128xf32, #tpu.memory_space<vmem>>, %arg13: memref<16x256xf32, #tpu.memory_space<vmem>>) attributes {dimension_semantics = [], scalar_prefetch = 0 : i64, scratch_operands = 2 : i64, tpu.core_type = #tpu.core_type<tc>} {
    %c0 = arith.constant 0 : index
    %c0_0 = arith.constant 0 : index
    %0 = vector.load %arg0[%c0, %c0_0] : memref<512x256xbf16, #tpu.memory_space<vmem>>, vector<512x256xbf16>
    %c0_1 = arith.constant 0 : index
    %c0_2 = arith.constant 0 : index
    %1 = vector.load %arg1[%c0_1, %c0_2] : memref<256x8xbf16, #tpu.memory_space<vmem>>, vector<256x8xbf16>
    %cst = arith.constant dense<0.000000e+00> : vector<512x8xf32>
    %2 = tpu.matmul %0, %1, %cst {dimension_numbers = #tpu.dot_dimension_numbers<[1], [0], [0], [1], [0, 0, 1, 1], [], []>} : vector<512x256xbf16>, vector<256x8xbf16>, vector<512x8xf32> -> vector<512x8xf32>
    %c0_3 = arith.constant 0 : index
    %c0_4 = arith.constant 0 : index
    %3 = vector.load %arg2[%c0_3, %c0_4] : memref<1x8xf32, #tpu.memory_space<vmem>>, vector<1x8xf32>
    %4 = vector.broadcast %3 : vector<1x8xf32> to vector<512x8xf32>
    %5 = arith.addf %2, %4 : vector<512x8xf32>
    %cst_5 = arith.constant 0.000000e+00 : f32
    %6 = vector.broadcast %cst_5 : f32 to vector<512x8xf32>
    %7 = arith.maximumf %5, %6 : vector<512x8xf32>
    %8 = vector.extract_strided_slice %7 {offsets = [0, 0], sizes = [256, 8], strides = [1, 1]} : vector<512x8xf32> to vector<256x8xf32>
    %c0_6 = arith.constant 0 : index
    %c0_7 = arith.constant 0 : index
    %9 = vector.load %arg3[%c0_6, %c0_7] : memref<1024x256xbf16, #tpu.memory_space<vmem>>, vector<1024x256xbf16>
    %10 = arith.truncf %8 : vector<256x8xf32> to vector<256x8xbf16>
    %cst_8 = arith.constant dense<0.000000e+00> : vector<1024x8xf32>
    %11 = tpu.matmul %9, %10, %cst_8 {dimension_numbers = #tpu.dot_dimension_numbers<[1], [0], [0], [1], [0, 0, 1, 1], [], []>} : vector<1024x256xbf16>, vector<256x8xbf16>, vector<1024x8xf32> -> vector<1024x8xf32>
    %12 = vector.extract_strided_slice %11 {offsets = [0, 0], sizes = [64, 8], strides = [1, 1]} : vector<1024x8xf32> to vector<64x8xf32>
    %c0_9 = arith.constant 0 : index
    %c0_10 = arith.constant 0 : index
    %13 = vector.load %arg12[%c0_9, %c0_10] : memref<64x128xf32, #tpu.memory_space<vmem>>, vector<64x8xf32>
    tpu.vector_store %arg12[%c0_9, %c0_10], %12 {strides = array<i32>} : memref<64x128xf32, #tpu.memory_space<vmem>>, vector<64x8xf32>,
    %14 = vector.extract_strided_slice %11 {offsets = [64, 0], sizes = [64, 8], strides = [1, 1]} : vector<1024x8xf32> to vector<64x8xf32>
    %c0_11 = arith.constant 0 : index
    %c8 = arith.constant 8 : index
    %15 = vector.load %arg12[%c0_11, %c8] : memref<64x128xf32, #tpu.memory_space<vmem>>, vector<64x8xf32>
    tpu.vector_store %arg12[%c0_11, %c8], %14 {strides = array<i32>} : memref<64x128xf32, #tpu.memory_space<vmem>>, vector<64x8xf32>,
    %16 = vector.extract_strided_slice %11 {offsets = [128, 0], sizes = [64, 8], strides = [1, 1]} : vector<1024x8xf32> to vector<64x8xf32>
    %c0_12 = arith.constant 0 : index
    %c16 = arith.constant 16 : index
    %17 = vector.load %arg12[%c0_12, %c16] : memref<64x128xf32, #tpu.memory_space<vmem>>, vector<64x8xf32>
    tpu.vector_store %arg12[%c0_12, %c16], %16 {strides = array<i32>} : memref<64x128xf32, #tpu.memory_space<vmem>>, vector<64x8xf32>,
    %18 = vector.extract_strided_slice %11 {offsets = [192, 0], sizes = [64, 8], strides = [1, 1]} : vector<1024x8xf32> to vector<64x8xf32>
    %c0_13 = arith.constant 0 : index
    %c24 = arith.constant 24 : index
    %19 = vector.load %arg12[%c0_13, %c24] : memref<64x128xf32, #tpu.memory_space<vmem>>, vector<64x8xf32>
    tpu.vector_store %arg12[%c0_13, %c24], %18 {strides = array<i32>} : memref<64x128xf32, #tpu.memory_space<vmem>>, vector<64x8xf32>,
    %20 = vector.extract_strided_slice %11 {offsets = [256, 0], sizes = [64, 8], strides = [1, 1]} : vector<1024x8xf32> to vector<64x8xf32>
    %c0_14 = arith.constant 0 : index
    %c32 = arith.constant 32 : index
    %21 = vector.load %arg12[%c0_14, %c32] : memref<64x128xf32, #tpu.memory_space<vmem>>, vector<64x8xf32>
    tpu.vector_store %arg12[%c0_14, %c32], %20 {strides = array<i32>} : memref<64x128xf32, #tpu.memory_space<vmem>>, vector<64x8xf32>,
    %22 = vector.extract_strided_slice %11 {offsets = [320, 0], sizes = [64, 8], strides = [1, 1]} : vector<1024x8xf32> to vector<64x8xf32>
    %c0_15 = arith.constant 0 : index
    %c40 = arith.constant 40 : index
    %23 = vector.load %arg12[%c0_15, %c40] : memref<64x128xf32, #tpu.memory_space<vmem>>, vector<64x8xf32>
    tpu.vector_store %arg12[%c0_15, %c40], %22 {strides = array<i32>} : memref<64x128xf32, #tpu.memory_space<vmem>>, vector<64x8xf32>,
    %24 = vector.extract_strided_slice %11 {offsets = [384, 0], sizes = [64, 8], strides = [1, 1]} : vector<1024x8xf32> to vector<64x8xf32>
    %c0_16 = arith.constant 0 : index
    %c48 = arith.constant 48 : index
    %25 = vector.load %arg12[%c0_16, %c48] : memref<64x128xf32, #tpu.memory_space<vmem>>, vector<64x8xf32>
    tpu.vector_store %arg12[%c0_16, %c48], %24 {strides = array<i32>} : memref<64x128xf32, #tpu.memory_space<vmem>>, vector<64x8xf32>,
    %26 = vector.extract_strided_slice %11 {offsets = [448, 0], sizes = [64, 8], strides = [1, 1]} : vector<1024x8xf32> to vector<64x8xf32>
    %c0_17 = arith.constant 0 : index
    %c56 = arith.constant 56 : index
    %27 = vector.load %arg12[%c0_17, %c56] : memref<64x128xf32, #tpu.memory_space<vmem>>, vector<64x8xf32>
    tpu.vector_store %arg12[%c0_17, %c56], %26 {strides = array<i32>} : memref<64x128xf32, #tpu.memory_space<vmem>>, vector<64x8xf32>,
    %28 = vector.extract_strided_slice %11 {offsets = [512, 0], sizes = [64, 8], strides = [1, 1]} : vector<1024x8xf32> to vector<64x8xf32>
    %c0_18 = arith.constant 0 : index
    %c64 = arith.constant 64 : index
    %29 = vector.load %arg12[%c0_18, %c64] : memref<64x128xf32, #tpu.memory_space<vmem>>, vector<64x8xf32>
    tpu.vector_store %arg12[%c0_18, %c64], %28 {strides = array<i32>} : memref<64x128xf32, #tpu.memory_space<vmem>>, vector<64x8xf32>,
    %30 = vector.extract_strided_slice %11 {offsets = [576, 0], sizes = [64, 8], strides = [1, 1]} : vector<1024x8xf32> to vector<64x8xf32>
    %c0_19 = arith.constant 0 : index
    %c72 = arith.constant 72 : index
    %31 = vector.load %arg12[%c0_19, %c72] : memref<64x128xf32, #tpu.memory_space<vmem>>, vector<64x8xf32>
    tpu.vector_store %arg12[%c0_19, %c72], %30 {strides = array<i32>} : memref<64x128xf32, #tpu.memory_space<vmem>>, vector<64x8xf32>,
    %32 = vector.extract_strided_slice %11 {offsets = [640, 0], sizes = [64, 8], strides = [1, 1]} : vector<1024x8xf32> to vector<64x8xf32>
    %c0_20 = arith.constant 0 : index
    %c80 = arith.constant 80 : index
    %33 = vector.load %arg12[%c0_20, %c80] : memref<64x128xf32, #tpu.memory_space<vmem>>, vector<64x8xf32>
    tpu.vector_store %arg12[%c0_20, %c80], %32 {strides = array<i32>} : memref<64x128xf32, #tpu.memory_space<vmem>>, vector<64x8xf32>,
    %34 = vector.extract_strided_slice %11 {offsets = [704, 0], sizes = [64, 8], strides = [1, 1]} : vector<1024x8xf32> to vector<64x8xf32>
    %c0_21 = arith.constant 0 : index
    %c88 = arith.constant 88 : index
    %35 = vector.load %arg12[%c0_21, %c88] : memref<64x128xf32, #tpu.memory_space<vmem>>, vector<64x8xf32>
    tpu.vector_store %arg12[%c0_21, %c88], %34 {strides = array<i32>} : memref<64x128xf32, #tpu.memory_space<vmem>>, vector<64x8xf32>,
    %36 = vector.extract_strided_slice %11 {offsets = [768, 0], sizes = [64, 8], strides = [1, 1]} : vector<1024x8xf32> to vector<64x8xf32>
    %c0_22 = arith.constant 0 : index
    %c96 = arith.constant 96 : index
    %37 = vector.load %arg12[%c0_22, %c96] : memref<64x128xf32, #tpu.memory_space<vmem>>, vector<64x8xf32>
    tpu.vector_store %arg12[%c0_22, %c96], %36 {strides = array<i32>} : memref<64x128xf32, #tpu.memory_space<vmem>>, vector<64x8xf32>,
    %38 = vector.extract_strided_slice %11 {offsets = [832, 0], sizes = [64, 8], strides = [1, 1]} : vector<1024x8xf32> to vector<64x8xf32>
    %c0_23 = arith.constant 0 : index
    %c104 = arith.constant 104 : index
    %39 = vector.load %arg12[%c0_23, %c104] : memref<64x128xf32, #tpu.memory_space<vmem>>, vector<64x8xf32>
    tpu.vector_store %arg12[%c0_23, %c104], %38 {strides = array<i32>} : memref<64x128xf32, #tpu.memory_space<vmem>>, vector<64x8xf32>,
    %40 = vector.extract_strided_slice %11 {offsets = [896, 0], sizes = [64, 8], strides = [1, 1]} : vector<1024x8xf32> to vector<64x8xf32>
    %c0_24 = arith.constant 0 : index
    %c112 = arith.constant 112 : index
    %41 = vector.load %arg12[%c0_24, %c112] : memref<64x128xf32, #tpu.memory_space<vmem>>, vector<64x8xf32>
    tpu.vector_store %arg12[%c0_24, %c112], %40 {strides = array<i32>} : memref<64x128xf32, #tpu.memory_space<vmem>>, vector<64x8xf32>,
    %42 = vector.extract_strided_slice %11 {offsets = [960, 0], sizes = [64, 8], strides = [1, 1]} : vector<1024x8xf32> to vector<64x8xf32>
    %c0_25 = arith.constant 0 : index
    %c120 = arith.constant 120 : index
    %43 = vector.load %arg12[%c0_25, %c120] : memref<64x128xf32, #tpu.memory_space<vmem>>, vector<64x8xf32>
    tpu.vector_store %arg12[%c0_25, %c120], %42 {strides = array<i32>} : memref<64x128xf32, #tpu.memory_space<vmem>>, vector<64x8xf32>,
    %c0_26 = arith.constant 0 : index
    %c0_27 = arith.constant 0 : index
    %44 = vector.load %arg12[%c0_26, %c0_27] : memref<64x128xf32, #tpu.memory_space<vmem>>, vector<64x128xf32>
    %45 = arith.truncf %44 : vector<64x128xf32> to vector<64x128xbf16>
    %c0_28 = arith.constant 0 : index
    %c0_29 = arith.constant 0 : index
    %46 = vector.load %arg4[%c0_28, %c0_29] : memref<128x16xbf16, #tpu.memory_space<vmem>>, vector<128x16xbf16>
    %cst_30 = arith.constant dense<0.000000e+00> : vector<64x16xf32>
    %47 = tpu.matmul %45, %46, %cst_30 {dimension_numbers = #tpu.dot_dimension_numbers<[1], [0], [0], [1], [0, 0, 1, 1], [], []>} : vector<64x128xbf16>, vector<128x16xbf16>, vector<64x16xf32> -> vector<64x16xf32>
    %c0_31 = arith.constant 0 : index
    %c0_32 = arith.constant 0 : index
    %48 = vector.load %arg5[%c0_31, %c0_32] : memref<1x16xf32, #tpu.memory_space<vmem>>, vector<1x16xf32>
    %49 = vector.broadcast %48 : vector<1x16xf32> to vector<64x16xf32>
    %50 = arith.addf %47, %49 : vector<64x16xf32>
    %cst_33 = arith.constant 0.000000e+00 : f32
    %51 = vector.broadcast %cst_33 : f32 to vector<64x16xf32>
    %52 = arith.maximumf %50, %51 : vector<64x16xf32>
    %c0_34 = arith.constant 0 : index
    %c0_35 = arith.constant 0 : index
    %53 = vector.load %arg6[%c0_34, %c0_35] : memref<256x64xbf16, #tpu.memory_space<vmem>>, vector<256x64xbf16>
    %54 = arith.truncf %52 : vector<64x16xf32> to vector<64x16xbf16>
    %cst_36 = arith.constant dense<0.000000e+00> : vector<256x16xf32>
    %55 = tpu.matmul %53, %54, %cst_36 {dimension_numbers = #tpu.dot_dimension_numbers<[1], [0], [0], [1], [0, 0, 1, 1], [], []>} : vector<256x64xbf16>, vector<64x16xbf16>, vector<256x16xf32> -> vector<256x16xf32>
    %56 = vector.extract_strided_slice %55 {offsets = [0, 0], sizes = [16, 16], strides = [1, 1]} : vector<256x16xf32> to vector<16x16xf32>
    %c0_37 = arith.constant 0 : index
    %c0_38 = arith.constant 0 : index
    %57 = vector.load %arg13[%c0_37, %c0_38] : memref<16x256xf32, #tpu.memory_space<vmem>>, vector<16x16xf32>
    tpu.vector_store %arg13[%c0_37, %c0_38], %56 {strides = array<i32>} : memref<16x256xf32, #tpu.memory_space<vmem>>, vector<16x16xf32>,
    %58 = vector.extract_strided_slice %55 {offsets = [16, 0], sizes = [16, 16], strides = [1, 1]} : vector<256x16xf32> to vector<16x16xf32>
    %c0_39 = arith.constant 0 : index
    %c16_40 = arith.constant 16 : index
    %59 = vector.load %arg13[%c0_39, %c16_40] : memref<16x256xf32, #tpu.memory_space<vmem>>, vector<16x16xf32>
    tpu.vector_store %arg13[%c0_39, %c16_40], %58 {strides = array<i32>} : memref<16x256xf32, #tpu.memory_space<vmem>>, vector<16x16xf32>,
    %60 = vector.extract_strided_slice %55 {offsets = [32, 0], sizes = [16, 16], strides = [1, 1]} : vector<256x16xf32> to vector<16x16xf32>
    %c0_41 = arith.constant 0 : index
    %c32_42 = arith.constant 32 : index
    %61 = vector.load %arg13[%c0_41, %c32_42] : memref<16x256xf32, #tpu.memory_space<vmem>>, vector<16x16xf32>
    tpu.vector_store %arg13[%c0_41, %c32_42], %60 {strides = array<i32>} : memref<16x256xf32, #tpu.memory_space<vmem>>, vector<16x16xf32>,
    %62 = vector.extract_strided_slice %55 {offsets = [48, 0], sizes = [16, 16], strides = [1, 1]} : vector<256x16xf32> to vector<16x16xf32>
    %c0_43 = arith.constant 0 : index
    %c48_44 = arith.constant 48 : index
    %63 = vector.load %arg13[%c0_43, %c48_44] : memref<16x256xf32, #tpu.memory_space<vmem>>, vector<16x16xf32>
    tpu.vector_store %arg13[%c0_43, %c48_44], %62 {strides = array<i32>} : memref<16x256xf32, #tpu.memory_space<vmem>>, vector<16x16xf32>,
    %64 = vector.extract_strided_slice %55 {offsets = [64, 0], sizes = [16, 16], strides = [1, 1]} : vector<256x16xf32> to vector<16x16xf32>
    %c0_45 = arith.constant 0 : index
    %c64_46 = arith.constant 64 : index
    %65 = vector.load %arg13[%c0_45, %c64_46] : memref<16x256xf32, #tpu.memory_space<vmem>>, vector<16x16xf32>
    tpu.vector_store %arg13[%c0_45, %c64_46], %64 {strides = array<i32>} : memref<16x256xf32, #tpu.memory_space<vmem>>, vector<16x16xf32>,
    %66 = vector.extract_strided_slice %55 {offsets = [80, 0], sizes = [16, 16], strides = [1, 1]} : vector<256x16xf32> to vector<16x16xf32>
    %c0_47 = arith.constant 0 : index
    %c80_48 = arith.constant 80 : index
    %67 = vector.load %arg13[%c0_47, %c80_48] : memref<16x256xf32, #tpu.memory_space<vmem>>, vector<16x16xf32>
    tpu.vector_store %arg13[%c0_47, %c80_48], %66 {strides = array<i32>} : memref<16x256xf32, #tpu.memory_space<vmem>>, vector<16x16xf32>,
    %68 = vector.extract_strided_slice %55 {offsets = [96, 0], sizes = [16, 16], strides = [1, 1]} : vector<256x16xf32> to vector<16x16xf32>
    %c0_49 = arith.constant 0 : index
    %c96_50 = arith.constant 96 : index
    %69 = vector.load %arg13[%c0_49, %c96_50] : memref<16x256xf32, #tpu.memory_space<vmem>>, vector<16x16xf32>
    tpu.vector_store %arg13[%c0_49, %c96_50], %68 {strides = array<i32>} : memref<16x256xf32, #tpu.memory_space<vmem>>, vector<16x16xf32>,
    %70 = vector.extract_strided_slice %55 {offsets = [112, 0], sizes = [16, 16], strides = [1, 1]} : vector<256x16xf32> to vector<16x16xf32>
    %c0_51 = arith.constant 0 : index
    %c112_52 = arith.constant 112 : index
    %71 = vector.load %arg13[%c0_51, %c112_52] : memref<16x256xf32, #tpu.memory_space<vmem>>, vector<16x16xf32>
    tpu.vector_store %arg13[%c0_51, %c112_52], %70 {strides = array<i32>} : memref<16x256xf32, #tpu.memory_space<vmem>>, vector<16x16xf32>,
    %72 = vector.extract_strided_slice %55 {offsets = [128, 0], sizes = [16, 16], strides = [1, 1]} : vector<256x16xf32> to vector<16x16xf32>
    %c0_53 = arith.constant 0 : index
    %c128 = arith.constant 128 : index
    %73 = vector.load %arg13[%c0_53, %c128] : memref<16x256xf32, #tpu.memory_space<vmem>>, vector<16x16xf32>
    tpu.vector_store %arg13[%c0_53, %c128], %72 {strides = array<i32>} : memref<16x256xf32, #tpu.memory_space<vmem>>, vector<16x16xf32>,
    %74 = vector.extract_strided_slice %55 {offsets = [144, 0], sizes = [16, 16], strides = [1, 1]} : vector<256x16xf32> to vector<16x16xf32>
    %c0_54 = arith.constant 0 : index
    %c144 = arith.constant 144 : index
    %75 = vector.load %arg13[%c0_54, %c144] : memref<16x256xf32, #tpu.memory_space<vmem>>, vector<16x16xf32>
    tpu.vector_store %arg13[%c0_54, %c144], %74 {strides = array<i32>} : memref<16x256xf32, #tpu.memory_space<vmem>>, vector<16x16xf32>,
    %76 = vector.extract_strided_slice %55 {offsets = [160, 0], sizes = [16, 16], strides = [1, 1]} : vector<256x16xf32> to vector<16x16xf32>
    %c0_55 = arith.constant 0 : index
    %c160 = arith.constant 160 : index
    %77 = vector.load %arg13[%c0_55, %c160] : memref<16x256xf32, #tpu.memory_space<vmem>>, vector<16x16xf32>
    tpu.vector_store %arg13[%c0_55, %c160], %76 {strides = array<i32>} : memref<16x256xf32, #tpu.memory_space<vmem>>, vector<16x16xf32>,
    %78 = vector.extract_strided_slice %55 {offsets = [176, 0], sizes = [16, 16], strides = [1, 1]} : vector<256x16xf32> to vector<16x16xf32>
    %c0_56 = arith.constant 0 : index
    %c176 = arith.constant 176 : index
    %79 = vector.load %arg13[%c0_56, %c176] : memref<16x256xf32, #tpu.memory_space<vmem>>, vector<16x16xf32>
    tpu.vector_store %arg13[%c0_56, %c176], %78 {strides = array<i32>} : memref<16x256xf32, #tpu.memory_space<vmem>>, vector<16x16xf32>,
    %80 = vector.extract_strided_slice %55 {offsets = [192, 0], sizes = [16, 16], strides = [1, 1]} : vector<256x16xf32> to vector<16x16xf32>
    %c0_57 = arith.constant 0 : index
    %c192 = arith.constant 192 : index
    %81 = vector.load %arg13[%c0_57, %c192] : memref<16x256xf32, #tpu.memory_space<vmem>>, vector<16x16xf32>
    tpu.vector_store %arg13[%c0_57, %c192], %80 {strides = array<i32>} : memref<16x256xf32, #tpu.memory_space<vmem>>, vector<16x16xf32>,
    %82 = vector.extract_strided_slice %55 {offsets = [208, 0], sizes = [16, 16], strides = [1, 1]} : vector<256x16xf32> to vector<16x16xf32>
    %c0_58 = arith.constant 0 : index
    %c208 = arith.constant 208 : index
    %83 = vector.load %arg13[%c0_58, %c208] : memref<16x256xf32, #tpu.memory_space<vmem>>, vector<16x16xf32>
    tpu.vector_store %arg13[%c0_58, %c208], %82 {strides = array<i32>} : memref<16x256xf32, #tpu.memory_space<vmem>>, vector<16x16xf32>,
    %84 = vector.extract_strided_slice %55 {offsets = [224, 0], sizes = [16, 16], strides = [1, 1]} : vector<256x16xf32> to vector<16x16xf32>
    %c0_59 = arith.constant 0 : index
    %c224 = arith.constant 224 : index
    %85 = vector.load %arg13[%c0_59, %c224] : memref<16x256xf32, #tpu.memory_space<vmem>>, vector<16x16xf32>
    tpu.vector_store %arg13[%c0_59, %c224], %84 {strides = array<i32>} : memref<16x256xf32, #tpu.memory_space<vmem>>, vector<16x16xf32>,
    %86 = vector.extract_strided_slice %55 {offsets = [240, 0], sizes = [16, 16], strides = [1, 1]} : vector<256x16xf32> to vector<16x16xf32>
    %c0_60 = arith.constant 0 : index
    %c240 = arith.constant 240 : index
    %87 = vector.load %arg13[%c0_60, %c240] : memref<16x256xf32, #tpu.memory_space<vmem>>, vector<16x16xf32>
    tpu.vector_store %arg13[%c0_60, %c240], %86 {strides = array<i32>} : memref<16x256xf32, #tpu.memory_space<vmem>>, vector<16x16xf32>,
    %c0_61 = arith.constant 0 : index
    %c0_62 = arith.constant 0 : index
    %88 = vector.load %arg13[%c0_61, %c0_62] : memref<16x256xf32, #tpu.memory_space<vmem>>, vector<16x256xf32>
    %89 = arith.truncf %88 : vector<16x256xf32> to vector<16x256xbf16>
    %c0_63 = arith.constant 0 : index
    %c0_64 = arith.constant 0 : index
    %90 = vector.load %arg7[%c0_63, %c0_64] : memref<256x32xbf16, #tpu.memory_space<vmem>>, vector<256x32xbf16>
    %cst_65 = arith.constant dense<0.000000e+00> : vector<16x32xf32>
    %91 = tpu.matmul %89, %90, %cst_65 {dimension_numbers = #tpu.dot_dimension_numbers<[1], [0], [0], [1], [0, 0, 1, 1], [], []>} : vector<16x256xbf16>, vector<256x32xbf16>, vector<16x32xf32> -> vector<16x32xf32>
    %c0_66 = arith.constant 0 : index
    %c0_67 = arith.constant 0 : index
    %92 = vector.load %arg8[%c0_66, %c0_67] : memref<1x32xf32, #tpu.memory_space<vmem>>, vector<1x32xf32>
    %93 = vector.broadcast %92 : vector<1x32xf32> to vector<16x32xf32>
    %94 = arith.addf %91, %93 : vector<16x32xf32>
    %cst_68 = arith.constant 0.000000e+00 : f32
    %95 = vector.broadcast %cst_68 : f32 to vector<16x32xf32>
    %96 = arith.maximumf %94, %95 : vector<16x32xf32>
    %97 = arith.truncf %96 : vector<16x32xf32> to vector<16x32xbf16>
    %c0_69 = arith.constant 0 : index
    %c0_70 = arith.constant 0 : index
    %98 = vector.load %arg9[%c0_69, %c0_70] : memref<32x8xbf16, #tpu.memory_space<vmem>>, vector<32x8xbf16>
    %cst_71 = arith.constant dense<0.000000e+00> : vector<16x8xf32>
    %99 = tpu.matmul %97, %98, %cst_71 {dimension_numbers = #tpu.dot_dimension_numbers<[1], [0], [0], [1], [0, 0, 1, 1], [], []>} : vector<16x32xbf16>, vector<32x8xbf16>, vector<16x8xf32> -> vector<16x8xf32>
    %c0_72 = arith.constant 0 : index
    %c0_73 = arith.constant 0 : index
    %100 = vector.load %arg10[%c0_72, %c0_73] : memref<1x8xf32, #tpu.memory_space<vmem>>, vector<1x8xf32>
    %101 = vector.broadcast %100 : vector<1x8xf32> to vector<16x8xf32>
    %102 = arith.addf %99, %101 : vector<16x8xf32>
    %c0_74 = arith.constant 0 : index
    %c0_75 = arith.constant 0 : index
    %103 = vector.load %arg11[%c0_74, %c0_75] : memref<32x8xf32, #tpu.memory_space<vmem>>, vector<16x8xf32>
    tpu.vector_store %arg11[%c0_74, %c0_75], %102 {strides = array<i32>} : memref<32x8xf32, #tpu.memory_space<vmem>>, vector<16x8xf32>,
    %104 = vector.extract_strided_slice %7 {offsets = [256, 0], sizes = [256, 8], strides = [1, 1]} : vector<512x8xf32> to vector<256x8xf32>
    %c0_76 = arith.constant 0 : index
    %c0_77 = arith.constant 0 : index
    %105 = vector.load %arg3[%c0_76, %c0_77] : memref<1024x256xbf16, #tpu.memory_space<vmem>>, vector<1024x256xbf16>
    %106 = arith.truncf %104 : vector<256x8xf32> to vector<256x8xbf16>
    %cst_78 = arith.constant dense<0.000000e+00> : vector<1024x8xf32>
    %107 = tpu.matmul %105, %106, %cst_78 {dimension_numbers = #tpu.dot_dimension_numbers<[1], [0], [0], [1], [0, 0, 1, 1], [], []>} : vector<1024x256xbf16>, vector<256x8xbf16>, vector<1024x8xf32> -> vector<1024x8xf32>
    %108 = vector.extract_strided_slice %107 {offsets = [0, 0], sizes = [64, 8], strides = [1, 1]} : vector<1024x8xf32> to vector<64x8xf32>
    %c0_79 = arith.constant 0 : index
    %c0_80 = arith.constant 0 : index
    %109 = vector.load %arg12[%c0_79, %c0_80] : memref<64x128xf32, #tpu.memory_space<vmem>>, vector<64x8xf32>
    tpu.vector_store %arg12[%c0_79, %c0_80], %108 {strides = array<i32>} : memref<64x128xf32, #tpu.memory_space<vmem>>, vector<64x8xf32>,
    %110 = vector.extract_strided_slice %107 {offsets = [64, 0], sizes = [64, 8], strides = [1, 1]} : vector<1024x8xf32> to vector<64x8xf32>
    %c0_81 = arith.constant 0 : index
    %c8_82 = arith.constant 8 : index
    %111 = vector.load %arg12[%c0_81, %c8_82] : memref<64x128xf32, #tpu.memory_space<vmem>>, vector<64x8xf32>
    tpu.vector_store %arg12[%c0_81, %c8_82], %110 {strides = array<i32>} : memref<64x128xf32, #tpu.memory_space<vmem>>, vector<64x8xf32>,
    %112 = vector.extract_strided_slice %107 {offsets = [128, 0], sizes = [64, 8], strides = [1, 1]} : vector<1024x8xf32> to vector<64x8xf32>
    %c0_83 = arith.constant 0 : index
    %c16_84 = arith.constant 16 : index
    %113 = vector.load %arg12[%c0_83, %c16_84] : memref<64x128xf32, #tpu.memory_space<vmem>>, vector<64x8xf32>
    tpu.vector_store %arg12[%c0_83, %c16_84], %112 {strides = array<i32>} : memref<64x128xf32, #tpu.memory_space<vmem>>, vector<64x8xf32>,
    %114 = vector.extract_strided_slice %107 {offsets = [192, 0], sizes = [64, 8], strides = [1, 1]} : vector<1024x8xf32> to vector<64x8xf32>
    %c0_85 = arith.constant 0 : index
    %c24_86 = arith.constant 24 : index
    %115 = vector.load %arg12[%c0_85, %c24_86] : memref<64x128xf32, #tpu.memory_space<vmem>>, vector<64x8xf32>
    tpu.vector_store %arg12[%c0_85, %c24_86], %114 {strides = array<i32>} : memref<64x128xf32, #tpu.memory_space<vmem>>, vector<64x8xf32>,
    %116 = vector.extract_strided_slice %107 {offsets = [256, 0], sizes = [64, 8], strides = [1, 1]} : vector<1024x8xf32> to vector<64x8xf32>
    %c0_87 = arith.constant 0 : index
    %c32_88 = arith.constant 32 : index
    %117 = vector.load %arg12[%c0_87, %c32_88] : memref<64x128xf32, #tpu.memory_space<vmem>>, vector<64x8xf32>
    tpu.vector_store %arg12[%c0_87, %c32_88], %116 {strides = array<i32>} : memref<64x128xf32, #tpu.memory_space<vmem>>, vector<64x8xf32>,
    %118 = vector.extract_strided_slice %107 {offsets = [320, 0], sizes = [64, 8], strides = [1, 1]} : vector<1024x8xf32> to vector<64x8xf32>
    %c0_89 = arith.constant 0 : index
    %c40_90 = arith.constant 40 : index
    %119 = vector.load %arg12[%c0_89, %c40_90] : memref<64x128xf32, #tpu.memory_space<vmem>>, vector<64x8xf32>
    tpu.vector_store %arg12[%c0_89, %c40_90], %118 {strides = array<i32>} : memref<64x128xf32, #tpu.memory_space<vmem>>, vector<64x8xf32>,
    %120 = vector.extract_strided_slice %107 {offsets = [384, 0], sizes = [64, 8], strides = [1, 1]} : vector<1024x8xf32> to vector<64x8xf32>
    %c0_91 = arith.constant 0 : index
    %c48_92 = arith.constant 48 : index
    %121 = vector.load %arg12[%c0_91, %c48_92] : memref<64x128xf32, #tpu.memory_space<vmem>>, vector<64x8xf32>
    tpu.vector_store %arg12[%c0_91, %c48_92], %120 {strides = array<i32>} : memref<64x128xf32, #tpu.memory_space<vmem>>, vector<64x8xf32>,
    %122 = vector.extract_strided_slice %107 {offsets = [448, 0], sizes = [64, 8], strides = [1, 1]} : vector<1024x8xf32> to vector<64x8xf32>
    %c0_93 = arith.constant 0 : index
    %c56_94 = arith.constant 56 : index
    %123 = vector.load %arg12[%c0_93, %c56_94] : memref<64x128xf32, #tpu.memory_space<vmem>>, vector<64x8xf32>
    tpu.vector_store %arg12[%c0_93, %c56_94], %122 {strides = array<i32>} : memref<64x128xf32, #tpu.memory_space<vmem>>, vector<64x8xf32>,
    %124 = vector.extract_strided_slice %107 {offsets = [512, 0], sizes = [64, 8], strides = [1, 1]} : vector<1024x8xf32> to vector<64x8xf32>
    %c0_95 = arith.constant 0 : index
    %c64_96 = arith.constant 64 : index
    %125 = vector.load %arg12[%c0_95, %c64_96] : memref<64x128xf32, #tpu.memory_space<vmem>>, vector<64x8xf32>
    tpu.vector_store %arg12[%c0_95, %c64_96], %124 {strides = array<i32>} : memref<64x128xf32, #tpu.memory_space<vmem>>, vector<64x8xf32>,
    %126 = vector.extract_strided_slice %107 {offsets = [576, 0], sizes = [64, 8], strides = [1, 1]} : vector<1024x8xf32> to vector<64x8xf32>
    %c0_97 = arith.constant 0 : index
    %c72_98 = arith.constant 72 : index
    %127 = vector.load %arg12[%c0_97, %c72_98] : memref<64x128xf32, #tpu.memory_space<vmem>>, vector<64x8xf32>
    tpu.vector_store %arg12[%c0_97, %c72_98], %126 {strides = array<i32>} : memref<64x128xf32, #tpu.memory_space<vmem>>, vector<64x8xf32>,
    %128 = vector.extract_strided_slice %107 {offsets = [640, 0], sizes = [64, 8], strides = [1, 1]} : vector<1024x8xf32> to vector<64x8xf32>
    %c0_99 = arith.constant 0 : index
    %c80_100 = arith.constant 80 : index
    %129 = vector.load %arg12[%c0_99, %c80_100] : memref<64x128xf32, #tpu.memory_space<vmem>>, vector<64x8xf32>
    tpu.vector_store %arg12[%c0_99, %c80_100], %128 {strides = array<i32>} : memref<64x128xf32, #tpu.memory_space<vmem>>, vector<64x8xf32>,
    %130 = vector.extract_strided_slice %107 {offsets = [704, 0], sizes = [64, 8], strides = [1, 1]} : vector<1024x8xf32> to vector<64x8xf32>
    %c0_101 = arith.constant 0 : index
    %c88_102 = arith.constant 88 : index
    %131 = vector.load %arg12[%c0_101, %c88_102] : memref<64x128xf32, #tpu.memory_space<vmem>>, vector<64x8xf32>
    tpu.vector_store %arg12[%c0_101, %c88_102], %130 {strides = array<i32>} : memref<64x128xf32, #tpu.memory_space<vmem>>, vector<64x8xf32>,
    %132 = vector.extract_strided_slice %107 {offsets = [768, 0], sizes = [64, 8], strides = [1, 1]} : vector<1024x8xf32> to vector<64x8xf32>
    %c0_103 = arith.constant 0 : index
    %c96_104 = arith.constant 96 : index
    %133 = vector.load %arg12[%c0_103, %c96_104] : memref<64x128xf32, #tpu.memory_space<vmem>>, vector<64x8xf32>
    tpu.vector_store %arg12[%c0_103, %c96_104], %132 {strides = array<i32>} : memref<64x128xf32, #tpu.memory_space<vmem>>, vector<64x8xf32>,
    %134 = vector.extract_strided_slice %107 {offsets = [832, 0], sizes = [64, 8], strides = [1, 1]} : vector<1024x8xf32> to vector<64x8xf32>
    %c0_105 = arith.constant 0 : index
    %c104_106 = arith.constant 104 : index
    %135 = vector.load %arg12[%c0_105, %c104_106] : memref<64x128xf32, #tpu.memory_space<vmem>>, vector<64x8xf32>
    tpu.vector_store %arg12[%c0_105, %c104_106], %134 {strides = array<i32>} : memref<64x128xf32, #tpu.memory_space<vmem>>, vector<64x8xf32>,
    %136 = vector.extract_strided_slice %107 {offsets = [896, 0], sizes = [64, 8], strides = [1, 1]} : vector<1024x8xf32> to vector<64x8xf32>
    %c0_107 = arith.constant 0 : index
    %c112_108 = arith.constant 112 : index
    %137 = vector.load %arg12[%c0_107, %c112_108] : memref<64x128xf32, #tpu.memory_space<vmem>>, vector<64x8xf32>
    tpu.vector_store %arg12[%c0_107, %c112_108], %136 {strides = array<i32>} : memref<64x128xf32, #tpu.memory_space<vmem>>, vector<64x8xf32>,
    %138 = vector.extract_strided_slice %107 {offsets = [960, 0], sizes = [64, 8], strides = [1, 1]} : vector<1024x8xf32> to vector<64x8xf32>
    %c0_109 = arith.constant 0 : index
    %c120_110 = arith.constant 120 : index
    %139 = vector.load %arg12[%c0_109, %c120_110] : memref<64x128xf32, #tpu.memory_space<vmem>>, vector<64x8xf32>
    tpu.vector_store %arg12[%c0_109, %c120_110], %138 {strides = array<i32>} : memref<64x128xf32, #tpu.memory_space<vmem>>, vector<64x8xf32>,
    %c0_111 = arith.constant 0 : index
    %c0_112 = arith.constant 0 : index
    %140 = vector.load %arg12[%c0_111, %c0_112] : memref<64x128xf32, #tpu.memory_space<vmem>>, vector<64x128xf32>
    %141 = arith.truncf %140 : vector<64x128xf32> to vector<64x128xbf16>
    %c0_113 = arith.constant 0 : index
    %c0_114 = arith.constant 0 : index
    %142 = vector.load %arg4[%c0_113, %c0_114] : memref<128x16xbf16, #tpu.memory_space<vmem>>, vector<128x16xbf16>
    %cst_115 = arith.constant dense<0.000000e+00> : vector<64x16xf32>
    %143 = tpu.matmul %141, %142, %cst_115 {dimension_numbers = #tpu.dot_dimension_numbers<[1], [0], [0], [1], [0, 0, 1, 1], [], []>} : vector<64x128xbf16>, vector<128x16xbf16>, vector<64x16xf32> -> vector<64x16xf32>
    %c0_116 = arith.constant 0 : index
    %c0_117 = arith.constant 0 : index
    %144 = vector.load %arg5[%c0_116, %c0_117] : memref<1x16xf32, #tpu.memory_space<vmem>>, vector<1x16xf32>
    %145 = vector.broadcast %144 : vector<1x16xf32> to vector<64x16xf32>
    %146 = arith.addf %143, %145 : vector<64x16xf32>
    %cst_118 = arith.constant 0.000000e+00 : f32
    %147 = vector.broadcast %cst_118 : f32 to vector<64x16xf32>
    %148 = arith.maximumf %146, %147 : vector<64x16xf32>
    %c0_119 = arith.constant 0 : index
    %c0_120 = arith.constant 0 : index
    %149 = vector.load %arg6[%c0_119, %c0_120] : memref<256x64xbf16, #tpu.memory_space<vmem>>, vector<256x64xbf16>
    %150 = arith.truncf %148 : vector<64x16xf32> to vector<64x16xbf16>
    %cst_121 = arith.constant dense<0.000000e+00> : vector<256x16xf32>
    %151 = tpu.matmul %149, %150, %cst_121 {dimension_numbers = #tpu.dot_dimension_numbers<[1], [0], [0], [1], [0, 0, 1, 1], [], []>} : vector<256x64xbf16>, vector<64x16xbf16>, vector<256x16xf32> -> vector<256x16xf32>
    %152 = vector.extract_strided_slice %151 {offsets = [0, 0], sizes = [16, 16], strides = [1, 1]} : vector<256x16xf32> to vector<16x16xf32>
    %c0_122 = arith.constant 0 : index
    %c0_123 = arith.constant 0 : index
    %153 = vector.load %arg13[%c0_122, %c0_123] : memref<16x256xf32, #tpu.memory_space<vmem>>, vector<16x16xf32>
    tpu.vector_store %arg13[%c0_122, %c0_123], %152 {strides = array<i32>} : memref<16x256xf32, #tpu.memory_space<vmem>>, vector<16x16xf32>,
    %154 = vector.extract_strided_slice %151 {offsets = [16, 0], sizes = [16, 16], strides = [1, 1]} : vector<256x16xf32> to vector<16x16xf32>
    %c0_124 = arith.constant 0 : index
    %c16_125 = arith.constant 16 : index
    %155 = vector.load %arg13[%c0_124, %c16_125] : memref<16x256xf32, #tpu.memory_space<vmem>>, vector<16x16xf32>
    tpu.vector_store %arg13[%c0_124, %c16_125], %154 {strides = array<i32>} : memref<16x256xf32, #tpu.memory_space<vmem>>, vector<16x16xf32>,
    %156 = vector.extract_strided_slice %151 {offsets = [32, 0], sizes = [16, 16], strides = [1, 1]} : vector<256x16xf32> to vector<16x16xf32>
    %c0_126 = arith.constant 0 : index
    %c32_127 = arith.constant 32 : index
    %157 = vector.load %arg13[%c0_126, %c32_127] : memref<16x256xf32, #tpu.memory_space<vmem>>, vector<16x16xf32>
    tpu.vector_store %arg13[%c0_126, %c32_127], %156 {strides = array<i32>} : memref<16x256xf32, #tpu.memory_space<vmem>>, vector<16x16xf32>,
    %158 = vector.extract_strided_slice %151 {offsets = [48, 0], sizes = [16, 16], strides = [1, 1]} : vector<256x16xf32> to vector<16x16xf32>
    %c0_128 = arith.constant 0 : index
    %c48_129 = arith.constant 48 : index
    %159 = vector.load %arg13[%c0_128, %c48_129] : memref<16x256xf32, #tpu.memory_space<vmem>>, vector<16x16xf32>
    tpu.vector_store %arg13[%c0_128, %c48_129], %158 {strides = array<i32>} : memref<16x256xf32, #tpu.memory_space<vmem>>, vector<16x16xf32>,
    %160 = vector.extract_strided_slice %151 {offsets = [64, 0], sizes = [16, 16], strides = [1, 1]} : vector<256x16xf32> to vector<16x16xf32>
    %c0_130 = arith.constant 0 : index
    %c64_131 = arith.constant 64 : index
    %161 = vector.load %arg13[%c0_130, %c64_131] : memref<16x256xf32, #tpu.memory_space<vmem>>, vector<16x16xf32>
    tpu.vector_store %arg13[%c0_130, %c64_131], %160 {strides = array<i32>} : memref<16x256xf32, #tpu.memory_space<vmem>>, vector<16x16xf32>,
    %162 = vector.extract_strided_slice %151 {offsets = [80, 0], sizes = [16, 16], strides = [1, 1]} : vector<256x16xf32> to vector<16x16xf32>
    %c0_132 = arith.constant 0 : index
    %c80_133 = arith.constant 80 : index
    %163 = vector.load %arg13[%c0_132, %c80_133] : memref<16x256xf32, #tpu.memory_space<vmem>>, vector<16x16xf32>
    tpu.vector_store %arg13[%c0_132, %c80_133], %162 {strides = array<i32>} : memref<16x256xf32, #tpu.memory_space<vmem>>, vector<16x16xf32>,
    %164 = vector.extract_strided_slice %151 {offsets = [96, 0], sizes = [16, 16], strides = [1, 1]} : vector<256x16xf32> to vector<16x16xf32>
    %c0_134 = arith.constant 0 : index
    %c96_135 = arith.constant 96 : index
    %165 = vector.load %arg13[%c0_134, %c96_135] : memref<16x256xf32, #tpu.memory_space<vmem>>, vector<16x16xf32>
    tpu.vector_store %arg13[%c0_134, %c96_135], %164 {strides = array<i32>} : memref<16x256xf32, #tpu.memory_space<vmem>>, vector<16x16xf32>,
    %166 = vector.extract_strided_slice %151 {offsets = [112, 0], sizes = [16, 16], strides = [1, 1]} : vector<256x16xf32> to vector<16x16xf32>
    %c0_136 = arith.constant 0 : index
    %c112_137 = arith.constant 112 : index
    %167 = vector.load %arg13[%c0_136, %c112_137] : memref<16x256xf32, #tpu.memory_space<vmem>>, vector<16x16xf32>
    tpu.vector_store %arg13[%c0_136, %c112_137], %166 {strides = array<i32>} : memref<16x256xf32, #tpu.memory_space<vmem>>, vector<16x16xf32>,
    %168 = vector.extract_strided_slice %151 {offsets = [128, 0], sizes = [16, 16], strides = [1, 1]} : vector<256x16xf32> to vector<16x16xf32>
    %c0_138 = arith.constant 0 : index
    %c128_139 = arith.constant 128 : index
    %169 = vector.load %arg13[%c0_138, %c128_139] : memref<16x256xf32, #tpu.memory_space<vmem>>, vector<16x16xf32>
    tpu.vector_store %arg13[%c0_138, %c128_139], %168 {strides = array<i32>} : memref<16x256xf32, #tpu.memory_space<vmem>>, vector<16x16xf32>,
    %170 = vector.extract_strided_slice %151 {offsets = [144, 0], sizes = [16, 16], strides = [1, 1]} : vector<256x16xf32> to vector<16x16xf32>
    %c0_140 = arith.constant 0 : index
    %c144_141 = arith.constant 144 : index
    %171 = vector.load %arg13[%c0_140, %c144_141] : memref<16x256xf32, #tpu.memory_space<vmem>>, vector<16x16xf32>
    tpu.vector_store %arg13[%c0_140, %c144_141], %170 {strides = array<i32>} : memref<16x256xf32, #tpu.memory_space<vmem>>, vector<16x16xf32>,
    %172 = vector.extract_strided_slice %151 {offsets = [160, 0], sizes = [16, 16], strides = [1, 1]} : vector<256x16xf32> to vector<16x16xf32>
    %c0_142 = arith.constant 0 : index
    %c160_143 = arith.constant 160 : index
    %173 = vector.load %arg13[%c0_142, %c160_143] : memref<16x256xf32, #tpu.memory_space<vmem>>, vector<16x16xf32>
    tpu.vector_store %arg13[%c0_142, %c160_143], %172 {strides = array<i32>} : memref<16x256xf32, #tpu.memory_space<vmem>>, vector<16x16xf32>,
    %174 = vector.extract_strided_slice %151 {offsets = [176, 0], sizes = [16, 16], strides = [1, 1]} : vector<256x16xf32> to vector<16x16xf32>
    %c0_144 = arith.constant 0 : index
    %c176_145 = arith.constant 176 : index
    %175 = vector.load %arg13[%c0_144, %c176_145] : memref<16x256xf32, #tpu.memory_space<vmem>>, vector<16x16xf32>
    tpu.vector_store %arg13[%c0_144, %c176_145], %174 {strides = array<i32>} : memref<16x256xf32, #tpu.memory_space<vmem>>, vector<16x16xf32>,
    %176 = vector.extract_strided_slice %151 {offsets = [192, 0], sizes = [16, 16], strides = [1, 1]} : vector<256x16xf32> to vector<16x16xf32>
    %c0_146 = arith.constant 0 : index
    %c192_147 = arith.constant 192 : index
    %177 = vector.load %arg13[%c0_146, %c192_147] : memref<16x256xf32, #tpu.memory_space<vmem>>, vector<16x16xf32>
    tpu.vector_store %arg13[%c0_146, %c192_147], %176 {strides = array<i32>} : memref<16x256xf32, #tpu.memory_space<vmem>>, vector<16x16xf32>,
    %178 = vector.extract_strided_slice %151 {offsets = [208, 0], sizes = [16, 16], strides = [1, 1]} : vector<256x16xf32> to vector<16x16xf32>
    %c0_148 = arith.constant 0 : index
    %c208_149 = arith.constant 208 : index
    %179 = vector.load %arg13[%c0_148, %c208_149] : memref<16x256xf32, #tpu.memory_space<vmem>>, vector<16x16xf32>
    tpu.vector_store %arg13[%c0_148, %c208_149], %178 {strides = array<i32>} : memref<16x256xf32, #tpu.memory_space<vmem>>, vector<16x16xf32>,
    %180 = vector.extract_strided_slice %151 {offsets = [224, 0], sizes = [16, 16], strides = [1, 1]} : vector<256x16xf32> to vector<16x16xf32>
    %c0_150 = arith.constant 0 : index
    %c224_151 = arith.constant 224 : index
    %181 = vector.load %arg13[%c0_150, %c224_151] : memref<16x256xf32, #tpu.memory_space<vmem>>, vector<16x16xf32>
    tpu.vector_store %arg13[%c0_150, %c224_151], %180 {strides = array<i32>} : memref<16x256xf32, #tpu.memory_space<vmem>>, vector<16x16xf32>,
    %182 = vector.extract_strided_slice %151 {offsets = [240, 0], sizes = [16, 16], strides = [1, 1]} : vector<256x16xf32> to vector<16x16xf32>
    %c0_152 = arith.constant 0 : index
    %c240_153 = arith.constant 240 : index
    %183 = vector.load %arg13[%c0_152, %c240_153] : memref<16x256xf32, #tpu.memory_space<vmem>>, vector<16x16xf32>
    tpu.vector_store %arg13[%c0_152, %c240_153], %182 {strides = array<i32>} : memref<16x256xf32, #tpu.memory_space<vmem>>, vector<16x16xf32>,
    %c0_154 = arith.constant 0 : index
    %c0_155 = arith.constant 0 : index
    %184 = vector.load %arg13[%c0_154, %c0_155] : memref<16x256xf32, #tpu.memory_space<vmem>>, vector<16x256xf32>
    %185 = arith.truncf %184 : vector<16x256xf32> to vector<16x256xbf16>
    %c0_156 = arith.constant 0 : index
    %c0_157 = arith.constant 0 : index
    %186 = vector.load %arg7[%c0_156, %c0_157] : memref<256x32xbf16, #tpu.memory_space<vmem>>, vector<256x32xbf16>
    %cst_158 = arith.constant dense<0.000000e+00> : vector<16x32xf32>
    %187 = tpu.matmul %185, %186, %cst_158 {dimension_numbers = #tpu.dot_dimension_numbers<[1], [0], [0], [1], [0, 0, 1, 1], [], []>} : vector<16x256xbf16>, vector<256x32xbf16>, vector<16x32xf32> -> vector<16x32xf32>
    %c0_159 = arith.constant 0 : index
    %c0_160 = arith.constant 0 : index
    %188 = vector.load %arg8[%c0_159, %c0_160] : memref<1x32xf32, #tpu.memory_space<vmem>>, vector<1x32xf32>
    %189 = vector.broadcast %188 : vector<1x32xf32> to vector<16x32xf32>
    %190 = arith.addf %187, %189 : vector<16x32xf32>
    %cst_161 = arith.constant 0.000000e+00 : f32
    %191 = vector.broadcast %cst_161 : f32 to vector<16x32xf32>
    %192 = arith.maximumf %190, %191 : vector<16x32xf32>
    %193 = arith.truncf %192 : vector<16x32xf32> to vector<16x32xbf16>
    %c0_162 = arith.constant 0 : index
    %c0_163 = arith.constant 0 : index
    %194 = vector.load %arg9[%c0_162, %c0_163] : memref<32x8xbf16, #tpu.memory_space<vmem>>, vector<32x8xbf16>
    %cst_164 = arith.constant dense<0.000000e+00> : vector<16x8xf32>
    %195 = tpu.matmul %193, %194, %cst_164 {dimension_numbers = #tpu.dot_dimension_numbers<[1], [0], [0], [1], [0, 0, 1, 1], [], []>} : vector<16x32xbf16>, vector<32x8xbf16>, vector<16x8xf32> -> vector<16x8xf32>
    %c0_165 = arith.constant 0 : index
    %c0_166 = arith.constant 0 : index
    %196 = vector.load %arg10[%c0_165, %c0_166] : memref<1x8xf32, #tpu.memory_space<vmem>>, vector<1x8xf32>
    %197 = vector.broadcast %196 : vector<1x8xf32> to vector<16x8xf32>
    %198 = arith.addf %195, %197 : vector<16x8xf32>
    %c16_167 = arith.constant 16 : index
    %c0_168 = arith.constant 0 : index
    %199 = vector.load %arg11[%c16_167, %c0_168] : memref<32x8xf32, #tpu.memory_space<vmem>>, vector<16x8xf32>
    tpu.vector_store %arg11[%c16_167, %c0_168], %198 {strides = array<i32>} : memref<32x8xf32, #tpu.memory_space<vmem>>, vector<16x8xf32>,
    return
  }
}

</mosaic_0001>

<llo_original>
// kernel: noise_encoder_forward.1
$region0: #{noise_encoder_forward.1}
  #allocation0 [shape = 'u32[]', space=smem, size = 0x4, offset = 0x4, fixed_abs, tag = 'smem constant byte address 0x4 - core index']
  #allocation1 [shape = 'u32[72,128]{1,0:T(1,128)}', space=vmem, size = 0x9000, scoped, tag = 'internal scratch']
  #allocation2 [shape = 'f32[64,128]{1,0:T(8,128)}', space=vmem, size = 0x8000, scoped, tag = 'scratch operand']
  #allocation3 [shape = 'f32[16,256]{1,0:T(8,128)}', space=vmem, size = 0x4000, scoped, tag = 'scratch operand']
  %s0 = inlined_call_operand.vmem [shape: bf16[512,256], index: 0, kind: input, shape index: {}]
  %s1 = inlined_call_operand.vmem [shape: bf16[256,8], index: 1, kind: input, shape index: {}]
  %s2 = inlined_call_operand.vmem [shape: f32[1,8], index: 2, kind: input, shape index: {}]
  %s3 = inlined_call_operand.vmem [shape: bf16[1024,256], index: 3, kind: input, shape index: {}]
  %s4 = inlined_call_operand.vmem [shape: bf16[128,16], index: 4, kind: input, shape index: {}]
  %s5 = inlined_call_operand.vmem [shape: f32[1,16], index: 5, kind: input, shape index: {}]
  %s6 = inlined_call_operand.vmem [shape: bf16[256,64], index: 6, kind: input, shape index: {}]
  %s7 = inlined_call_operand.vmem [shape: bf16[256,32], index: 7, kind: input, shape index: {}]
  %s8 = inlined_call_operand.vmem [shape: f32[1,32], index: 8, kind: input, shape index: {}]
  %s9 = inlined_call_operand.vmem [shape: bf16[32,8], index: 9, kind: input, shape index: {}]
  %s10 = inlined_call_operand.vmem [shape: f32[1,8], index: 10, kind: input, shape index: {}]
  %s11 = inlined_call_operand.hbm [shape: f32[32,8], index: 11, kind: output, shape index: {}]
  %s12 = sld [smem:[#allocation0]]
  $region54: #{noise_encoder_forward.1} parent=0
    _
  %s14 = ssub.s32 1, %s12
  %s15 = scalar_select 0, %s14, %s12
  $region1: #{noise_encoder_forward.1} parent=0
    #allocation4 [shape = 'u8[16384]{0}', space=vmem, size = 0x4000, scoped, tag = 'output window, operand 0, single buffered']
    #allocation5 [shape = 's32[1]{0}', space=sflag, size = 0x4, scoped, tag = 'scoped memory for noise_encoder_forward.1']
    %16 = vsyncpa [#allocation5], 0
    // Predicated region
    $region2: #{noise_encoder_forward.1} parent=1 // pred_check
      _
    $region3: #{noise_encoder_forward.1} parent=1 // pred_check_branch
      %18 = sbr.rel (0) target = $region5
    $region4: #{noise_encoder_forward.1} parent=1 // pred_region
      _
    $region5: #{noise_encoder_forward.1} parent=1 // pred_fallthru
      _
    // Predicated region
    $region6: #{noise_encoder_forward.1} parent=1 // pred_check
      _
    $region7: #{noise_encoder_forward.1} parent=1 // pred_check_branch
      %20 = sbr.rel (0) target = $region9
    $region8: #{noise_encoder_forward.1} parent=1 // pred_region
      _
    $region9: #{noise_encoder_forward.1} parent=1 // pred_fallthru
      _
    // Predicated region
    $region10: #{noise_encoder_forward.1} parent=1 // pred_check
      _
    $region11: #{noise_encoder_forward.1} parent=1 // pred_check_branch
      %22 = sbr.rel (0) target = $region13
    $region12: #{noise_encoder_forward.1} parent=1 // pred_region
      _
    $region13: #{noise_encoder_forward.1} parent=1 // pred_fallthru
      _
    // Predicated region
    $region14: #{noise_encoder_forward.1} parent=1 // pred_check
      _
    $region15: #{noise_encoder_forward.1} parent=1 // pred_check_branch
      %24 = sbr.rel (0) target = $region17
    $region16: #{noise_encoder_forward.1} parent=1 // pred_region
      _
    $region17: #{noise_encoder_forward.1} parent=1 // pred_fallthru
      _
    // Predicated region
    $region18: #{noise_encoder_forward.1} parent=1 // pred_check
      _
    $region19: #{noise_encoder_forward.1} parent=1 // pred_check_branch
      %26 = sbr.rel (0) target = $region21
    $region20: #{noise_encoder_forward.1} parent=1 // pred_region
      _
    $region21: #{noise_encoder_forward.1} parent=1 // pred_fallthru
      _
    // Predicated region
    $region22: #{noise_encoder_forward.1} parent=1 // pred_check
      _
    $region23: #{noise_encoder_forward.1} parent=1 // pred_check_branch
      %28 = sbr.rel (0) target = $region25
    $region24: #{noise_encoder_forward.1} parent=1 // pred_region
      _
    $region25: #{noise_encoder_forward.1} parent=1 // pred_fallthru
      _
    // Predicated region
    $region26: #{noise_encoder_forward.1} parent=1 // pred_check
      _
    $region27: #{noise_encoder_forward.1} parent=1 // pred_check_branch
      %30 = sbr.rel (0) target = $region29
    $region28: #{noise_encoder_forward.1} parent=1 // pred_region
      _
    $region29: #{noise_encoder_forward.1} parent=1 // pred_fallthru
      _
    // Predicated region
    $region30: #{noise_encoder_forward.1} parent=1 // pred_check
      _
    $region31: #{noise_encoder_forward.1} parent=1 // pred_check_branch
      %32 = sbr.rel (0) target = $region33
    $region32: #{noise_encoder_forward.1} parent=1 // pred_region
      _
    $region33: #{noise_encoder_forward.1} parent=1 // pred_fallthru
      _
    // Predicated region
    $region34: #{noise_encoder_forward.1} parent=1 // pred_check
      _
    $region35: #{noise_encoder_forward.1} parent=1 // pred_check_branch
      %34 = sbr.rel (0) target = $region37
    $region36: #{noise_encoder_forward.1} parent=1 // pred_region
      _
    $region37: #{noise_encoder_forward.1} parent=1 // pred_fallthru
      _
    // Predicated region
    $region38: #{noise_encoder_forward.1} parent=1 // pred_check
      _
    $region39: #{noise_encoder_forward.1} parent=1 // pred_check_branch
      %36 = sbr.rel (0) target = $region41
    $region40: #{noise_encoder_forward.1} parent=1 // pred_region
      _
    $region41: #{noise_encoder_forward.1} parent=1 // pred_fallthru
      _
    // Predicated region
    $region42: #{noise_encoder_forward.1} parent=1 // pred_check
      _
    $region43: #{noise_encoder_forward.1} parent=1 // pred_check_branch
      %38 = sbr.rel (0) target = $region45
    $region44: #{noise_encoder_forward.1} parent=1 // pred_region
      _
    $region45: #{noise_encoder_forward.1} parent=1 // pred_fallthru
      _
    %v40 = vld [vmem:[%s0] sm:$0xff]
    %v41 = vld [vmem:[%s0 + $0x8] sm:$0xff]
    %v42 = vld [vmem:[%s0 + $0x10] sm:$0xff]
    %v43 = vld [vmem:[%s0 + $0x18] sm:$0xff]
    %v44 = vld [vmem:[%s0 + $0x20] sm:$0xff]
    %v45 = vld [vmem:[%s0 + $0x28] sm:$0xff]
    %v46 = vld [vmem:[%s0 + $0x30] sm:$0xff]
    %v47 = vld [vmem:[%s0 + $0x38] sm:$0xff]
    %v48 = vld [vmem:[%s0 + $0x40] sm:$0xff]
    %v49 = vld [vmem:[%s0 + $0x48] sm:$0xff]
    %v50 = vld [vmem:[%s0 + $0x50] sm:$0xff]
    %v51 = vld [vmem:[%s0 + $0x58] sm:$0xff]
    %v52 = vld [vmem:[%s0 + $0x60] sm:$0xff]
    %v53 = vld [vmem:[%s0 + $0x68] sm:$0xff]
    %v54 = vld [vmem:[%s0 + $0x70] sm:$0xff]
    %v55 = vld [vmem:[%s0 + $0x78] sm:$0xff]
    %v56 = vld [vmem:[%s0 + $0x80] sm:$0xff]
    %v57 = vld [vmem:[%s0 + $0x88] sm:$0xff]
    %v58 = vld [vmem:[%s0 + $0x90] sm:$0xff]
    %v59 = vld [vmem:[%s0 + $0x98] sm:$0xff]
    %v60 = vld [vmem:[%s0 + $0xa0] sm:$0xff]
    %v61 = vld [vmem:[%s0 + $0xa8] sm:$0xff]
    %v62 = vld [vmem:[%s0 + $0xb0] sm:$0xff]
    %v63 = vld [vmem:[%s0 + $0xb8] sm:$0xff]
    %v64 = vld [vmem:[%s0 + $0xc0] sm:$0xff]
    %v65 = vld [vmem:[%s0 + $0xc8] sm:$0xff]
    %v66 = vld [vmem:[%s0 + $0xd0] sm:$0xff]
    %v67 = vld [vmem:[%s0 + $0xd8] sm:$0xff]
    %v68 = vld [vmem:[%s0 + $0xe0] sm:$0xff]
    %v69 = vld [vmem:[%s0 + $0xe8] sm:$0xff]
    %v70 = vld [vmem:[%s0 + $0xf0] sm:$0xff]
    %v71 = vld [vmem:[%s0 + $0xf8] sm:$0xff]
    %v72 = vld [vmem:[%s0 + $0x100] sm:$0xff]
    %v73 = vld [vmem:[%s0 + $0x108] sm:$0xff]
    %v74 = vld [vmem:[%s0 + $0x110] sm:$0xff]
    %v75 = vld [vmem:[%s0 + $0x118] sm:$0xff]
    %v76 = vld [vmem:[%s0 + $0x120] sm:$0xff]
    %v77 = vld [vmem:[%s0 + $0x128] sm:$0xff]
    %v78 = vld [vmem:[%s0 + $0x130] sm:$0xff]
    %v79 = vld [vmem:[%s0 + $0x138] sm:$0xff]
    %v80 = vld [vmem:[%s0 + $0x140] sm:$0xff]
    %v81 = vld [vmem:[%s0 + $0x148] sm:$0xff]
    %v82 = vld [vmem:[%s0 + $0x150] sm:$0xff]
    %v83 = vld [vmem:[%s0 + $0x158] sm:$0xff]
    %v84 = vld [vmem:[%s0 + $0x160] sm:$0xff]
    %v85 = vld [vmem:[%s0 + $0x168] sm:$0xff]
    %v86 = vld [vmem:[%s0 + $0x170] sm:$0xff]
    %v87 = vld [vmem:[%s0 + $0x178] sm:$0xff]
    %v88 = vld [vmem:[%s0 + $0x180] sm:$0xff]
    %v89 = vld [vmem:[%s0 + $0x188] sm:$0xff]
    %v90 = vld [vmem:[%s0 + $0x190] sm:$0xff]
    %v91 = vld [vmem:[%s0 + $0x198] sm:$0xff]
    %v92 = vld [vmem:[%s0 + $0x1a0] sm:$0xff]
    %v93 = vld [vmem:[%s0 + $0x1a8] sm:$0xff]
    %v94 = vld [vmem:[%s0 + $0x1b0] sm:$0xff]
    %v95 = vld [vmem:[%s0 + $0x1b8] sm:$0xff]
    %v96 = vld [vmem:[%s0 + $0x1c0] sm:$0xff]
    %v97 = vld [vmem:[%s0 + $0x1c8] sm:$0xff]
    %v98 = vld [vmem:[%s0 + $0x1d0] sm:$0xff]
    %v99 = vld [vmem:[%s0 + $0x1d8] sm:$0xff]
    %v100 = vld [vmem:[%s0 + $0x1e0] sm:$0xff]
    %v101 = vld [vmem:[%s0 + $0x1e8] sm:$0xff]
    %v102 = vld [vmem:[%s0 + $0x1f0] sm:$0xff]
    %v103 = vld [vmem:[%s0 + $0x1f8] sm:$0xff]
    %v104 = vld [vmem:[%s1] sm:$0xf]
    %v105 = vld [vmem:[%s1 + $0x4] sm:$0xf]
    %v106 = vld [vmem:[%s1 + $0x8] sm:$0xf]
    %v107 = vld [vmem:[%s1 + $0xc] sm:$0xf]
    %v108 = vld [vmem:[%s1 + $0x10] sm:$0xf]
    %v109 = vld [vmem:[%s1 + $0x14] sm:$0xf]
    %v110 = vld [vmem:[%s1 + $0x18] sm:$0xf]
    %v111 = vld [vmem:[%s1 + $0x1c] sm:$0xf]
    %v112 = vld [vmem:[%s1 + $0x20] sm:$0xf]
    %v113 = vld [vmem:[%s1 + $0x24] sm:$0xf]
    %v114 = vld [vmem:[%s1 + $0x28] sm:$0xf]
    %v115 = vld [vmem:[%s1 + $0x2c] sm:$0xf]
    %v116 = vld [vmem:[%s1 + $0x30] sm:$0xf]
    %v117 = vld [vmem:[%s1 + $0x34] sm:$0xf]
    %v118 = vld [vmem:[%s1 + $0x38] sm:$0xf]
    %v119 = vld [vmem:[%s1 + $0x3c] sm:$0xf]
    %v120 = vld [vmem:[%s1 + $0x40] sm:$0xf]
    %v121 = vld [vmem:[%s1 + $0x44] sm:$0xf]
    %v122 = vld [vmem:[%s1 + $0x48] sm:$0xf]
    %v123 = vld [vmem:[%s1 + $0x4c] sm:$0xf]
    %v124 = vld [vmem:[%s1 + $0x50] sm:$0xf]
    %v125 = vld [vmem:[%s1 + $0x54] sm:$0xf]
    %v126 = vld [vmem:[%s1 + $0x58] sm:$0xf]
    %v127 = vld [vmem:[%s1 + $0x5c] sm:$0xf]
    %v128 = vld [vmem:[%s1 + $0x60] sm:$0xf]
    %v129 = vld [vmem:[%s1 + $0x64] sm:$0xf]
    %v130 = vld [vmem:[%s1 + $0x68] sm:$0xf]
    %v131 = vld [vmem:[%s1 + $0x6c] sm:$0xf]
    %v132 = vld [vmem:[%s1 + $0x70] sm:$0xf]
    %v133 = vld [vmem:[%s1 + $0x74] sm:$0xf]
    %v134 = vld [vmem:[%s1 + $0x78] sm:$0xf]
    %v135 = vld [vmem:[%s1 + $0x7c] sm:$0xf]
    %v136 = vld [vmem:[%s2] sm:$0x1]
    %v138 = vperm.slane %v136, 0
    %v204 = vunpack.c.l.b16 %v40
    %v205 = vunpack.c.h.b16 %v40
    %v206 = vunpack.c.l.b16 %v41
    %v207 = vunpack.c.h.b16 %v41
    %v208 = vunpack.c.l.b16 %v42
    %v209 = vunpack.c.h.b16 %v42
    %v210 = vunpack.c.l.b16 %v43
    %v211 = vunpack.c.h.b16 %v43
    %v212 = vunpack.c.l.b16 %v44
    %v213 = vunpack.c.h.b16 %v44
    %v214 = vunpack.c.l.b16 %v45
    %v215 = vunpack.c.h.b16 %v45
    %v216 = vunpack.c.l.b16 %v46
    %v217 = vunpack.c.h.b16 %v46
    %v218 = vunpack.c.l.b16 %v47
    %v219 = vunpack.c.h.b16 %v47
    %v220 = vunpack.c.l.b16 %v48
    %v221 = vunpack.c.h.b16 %v48
    %v222 = vunpack.c.l.b16 %v49
    %v223 = vunpack.c.h.b16 %v49
    %v224 = vunpack.c.l.b16 %v50
    %v225 = vunpack.c.h.b16 %v50
    %v226 = vunpack.c.l.b16 %v51
    %v227 = vunpack.c.h.b16 %v51
    %v228 = vunpack.c.l.b16 %v52
    %v229 = vunpack.c.h.b16 %v52
    %v230 = vunpack.c.l.b16 %v53
    %v231 = vunpack.c.h.b16 %v53
    %v232 = vunpack.c.l.b16 %v54
    %v233 = vunpack.c.h.b16 %v54
    %v234 = vunpack.c.l.b16 %v55
    %v235 = vunpack.c.h.b16 %v55
    %v236 = vunpack.c.l.b16 %v56
    %v237 = vunpack.c.h.b16 %v56
    %v238 = vunpack.c.l.b16 %v57
    %v239 = vunpack.c.h.b16 %v57
    %v240 = vunpack.c.l.b16 %v58
    %v241 = vunpack.c.h.b16 %v58
    %v242 = vunpack.c.l.b16 %v59
    %v243 = vunpack.c.h.b16 %v59
    %v244 = vunpack.c.l.b16 %v60
    %v245 = vunpack.c.h.b16 %v60
    %v246 = vunpack.c.l.b16 %v61
    %v247 = vunpack.c.h.b16 %v61
    %v248 = vunpack.c.l.b16 %v62
    %v249 = vunpack.c.h.b16 %v62
    %v250 = vunpack.c.l.b16 %v63
    %v251 = vunpack.c.h.b16 %v63
    %v252 = vunpack.c.l.b16 %v64
    %v253 = vunpack.c.h.b16 %v64
    %v254 = vunpack.c.l.b16 %v65
    %v255 = vunpack.c.h.b16 %v65
    %v256 = vunpack.c.l.b16 %v66
    %v257 = vunpack.c.h.b16 %v66
    %v258 = vunpack.c.l.b16 %v67
    %v259 = vunpack.c.h.b16 %v67
    %v260 = vunpack.c.l.b16 %v68
    %v261 = vunpack.c.h.b16 %v68
    %v262 = vunpack.c.l.b16 %v69
    %v263 = vunpack.c.h.b16 %v69
    %v264 = vunpack.c.l.b16 %v70
    %v265 = vunpack.c.h.b16 %v70
    %v266 = vunpack.c.l.b16 %v71
    %v267 = vunpack.c.h.b16 %v71
    %v268 = vunpack.c.l.b16 %v72
    %v269 = vunpack.c.h.b16 %v72
    %v270 = vunpack.c.l.b16 %v73
    %v271 = vunpack.c.h.b16 %v73
    %v272 = vunpack.c.l.b16 %v74
    %v273 = vunpack.c.h.b16 %v74
    %v274 = vunpack.c.l.b16 %v75
    %v275 = vunpack.c.h.b16 %v75
    %v276 = vunpack.c.l.b16 %v76
    %v277 = vunpack.c.h.b16 %v76
    %v278 = vunpack.c.l.b16 %v77
    %v279 = vunpack.c.h.b16 %v77
    %v280 = vunpack.c.l.b16 %v78
    %v281 = vunpack.c.h.b16 %v78
    %v282 = vunpack.c.l.b16 %v79
    %v283 = vunpack.c.h.b16 %v79
    %v284 = vunpack.c.l.b16 %v80
    %v285 = vunpack.c.h.b16 %v80
    %v286 = vunpack.c.l.b16 %v81
    %v287 = vunpack.c.h.b16 %v81
    %v288 = vunpack.c.l.b16 %v82
    %v289 = vunpack.c.h.b16 %v82
    %v290 = vunpack.c.l.b16 %v83
    %v291 = vunpack.c.h.b16 %v83
    %v292 = vunpack.c.l.b16 %v84
    %v293 = vunpack.c.h.b16 %v84
    %v294 = vunpack.c.l.b16 %v85
    %v295 = vunpack.c.h.b16 %v85
    %v296 = vunpack.c.l.b16 %v86
    %v297 = vunpack.c.h.b16 %v86
    %v298 = vunpack.c.l.b16 %v87
    %v299 = vunpack.c.h.b16 %v87
    %v300 = vunpack.c.l.b16 %v88
    %v301 = vunpack.c.h.b16 %v88
    %v302 = vunpack.c.l.b16 %v89
    %v303 = vunpack.c.h.b16 %v89
    %v304 = vunpack.c.l.b16 %v90
    %v305 = vunpack.c.h.b16 %v90
    %v306 = vunpack.c.l.b16 %v91
    %v307 = vunpack.c.h.b16 %v91
    %v308 = vunpack.c.l.b16 %v92
    %v309 = vunpack.c.h.b16 %v92
    %v310 = vunpack.c.l.b16 %v93
    %v311 = vunpack.c.h.b16 %v93
    %v312 = vunpack.c.l.b16 %v94
    %v313 = vunpack.c.h.b16 %v94
    %v314 = vunpack.c.l.b16 %v95
    %v315 = vunpack.c.h.b16 %v95
    %v316 = vunpack.c.l.b16 %v96
    %v317 = vunpack.c.h.b16 %v96
    %v318 = vunpack.c.l.b16 %v97
    %v319 = vunpack.c.h.b16 %v97
    %v320 = vunpack.c.l.b16 %v98
    %v321 = vunpack.c.h.b16 %v98
    %v322 = vunpack.c.l.b16 %v99
    %v323 = vunpack.c.h.b16 %v99
    %v324 = vunpack.c.l.b16 %v100
    %v325 = vunpack.c.h.b16 %v100
    %v326 = vunpack.c.l.b16 %v101
    %v327 = vunpack.c.h.b16 %v101
    %v328 = vunpack.c.l.b16 %v102
    %v329 = vunpack.c.h.b16 %v102
    %v330 = vunpack.c.l.b16 %v103
    %v331 = vunpack.c.h.b16 %v103
    %v332 = vpack.c.b16 %v206, %v204
    %v333 = vpack.c.b16 %v207, %v205
    %v334 = vpack.c.b16 %v210, %v208
    %v335 = vpack.c.b16 %v211, %v209
    %v336 = vpack.c.b16 %v214, %v212
    %v337 = vpack.c.b16 %v215, %v213
    %v338 = vpack.c.b16 %v218, %v216
    %v339 = vpack.c.b16 %v219, %v217
    %v340 = vpack.c.b16 %v222, %v220
    %v341 = vpack.c.b16 %v223, %v221
    %v342 = vpack.c.b16 %v226, %v224
    %v343 = vpack.c.b16 %v227, %v225
    %v344 = vpack.c.b16 %v230, %v228
    %v345 = vpack.c.b16 %v231, %v229
    %v346 = vpack.c.b16 %v234, %v232
    %v347 = vpack.c.b16 %v235, %v233
    %v348 = vpack.c.b16 %v238, %v236
    %v349 = vpack.c.b16 %v239, %v237
    %v350 = vpack.c.b16 %v242, %v240
    %v351 = vpack.c.b16 %v243, %v241
    %v352 = vpack.c.b16 %v246, %v244
    %v353 = vpack.c.b16 %v247, %v245
    %v354 = vpack.c.b16 %v250, %v248
    %v355 = vpack.c.b16 %v251, %v249
    %v356 = vpack.c.b16 %v254, %v252
    %v357 = vpack.c.b16 %v255, %v253
    %v358 = vpack.c.b16 %v258, %v256
    %v359 = vpack.c.b16 %v259, %v257
    %v360 = vpack.c.b16 %v262, %v260
    %v361 = vpack.c.b16 %v263, %v261
    %v362 = vpack.c.b16 %v266, %v264
    %v363 = vpack.c.b16 %v267, %v265
    %v364 = vpack.c.b16 %v270, %v268
    %v365 = vpack.c.b16 %v271, %v269
    %v366 = vpack.c.b16 %v274, %v272
    %v367 = vpack.c.b16 %v275, %v273
    %v368 = vpack.c.b16 %v278, %v276
    %v369 = vpack.c.b16 %v279, %v277
    %v370 = vpack.c.b16 %v282, %v280
    %v371 = vpack.c.b16 %v283, %v281
    %v372 = vpack.c.b16 %v286, %v284
    %v373 = vpack.c.b16 %v287, %v285
    %v374 = vpack.c.b16 %v290, %v288
    %v375 = vpack.c.b16 %v291, %v289
    %v376 = vpack.c.b16 %v294, %v292
    %v377 = vpack.c.b16 %v295, %v293
    %v378 = vpack.c.b16 %v298, %v296
    %v379 = vpack.c.b16 %v299, %v297
    %v380 = vpack.c.b16 %v302, %v300
    %v381 = vpack.c.b16 %v303, %v301
    %v382 = vpack.c.b16 %v306, %v304
    %v383 = vpack.c.b16 %v307, %v305
    %v384 = vpack.c.b16 %v310, %v308
    %v385 = vpack.c.b16 %v311, %v309
    %v386 = vpack.c.b16 %v314, %v312
    %v387 = vpack.c.b16 %v315, %v313
    %v388 = vpack.c.b16 %v318, %v316
    %v389 = vpack.c.b16 %v319, %v317
    %v390 = vpack.c.b16 %v322, %v320
    %v391 = vpack.c.b16 %v323, %v321
    %v392 = vpack.c.b16 %v326, %v324
    %v393 = vpack.c.b16 %v327, %v325
    %v394 = vpack.c.b16 %v330, %v328
    %v395 = vpack.c.b16 %v331, %v329
    %v492 = vunpack.c.l.b16 %v104
    %v493 = vunpack.c.l.b16 %v105
    %v494 = vunpack.c.l.b16 %v106
    %v495 = vunpack.c.l.b16 %v107
    %v496 = vunpack.c.l.b16 %v108
    %v497 = vunpack.c.l.b16 %v109
    %v498 = vunpack.c.l.b16 %v110
    %v499 = vunpack.c.l.b16 %v111
    %v500 = vunpack.c.l.b16 %v112
    %v501 = vunpack.c.l.b16 %v113
    %v502 = vunpack.c.l.b16 %v114
    %v503 = vunpack.c.l.b16 %v115
    %v504 = vunpack.c.l.b16 %v116
    %v505 = vunpack.c.l.b16 %v117
    %v506 = vunpack.c.l.b16 %v118
    %v507 = vunpack.c.l.b16 %v119
    %v508 = vunpack.c.l.b16 %v120
    %v509 = vunpack.c.l.b16 %v121
    %v510 = vunpack.c.l.b16 %v122
    %v511 = vunpack.c.l.b16 %v123
    %v512 = vunpack.c.l.b16 %v124
    %v513 = vunpack.c.l.b16 %v125
    %v514 = vunpack.c.l.b16 %v126
    %v515 = vunpack.c.l.b16 %v127
    %v516 = vunpack.c.l.b16 %v128
    %v517 = vunpack.c.l.b16 %v129
    %v518 = vunpack.c.l.b16 %v130
    %v519 = vunpack.c.l.b16 %v131
    %v520 = vunpack.c.l.b16 %v132
    %v521 = vunpack.c.l.b16 %v133
    %v522 = vunpack.c.l.b16 %v134
    %v523 = vunpack.c.l.b16 %v135
    %v524 = vpack.c.b16 %v493, %v492
    %v525 = vpack.c.b16 %v495, %v494
    %v526 = vpack.c.b16 %v497, %v496
    %v527 = vpack.c.b16 %v499, %v498
    %v528 = vpack.c.b16 %v501, %v500
    %v529 = vpack.c.b16 %v503, %v502
    %v530 = vpack.c.b16 %v505, %v504
    %v531 = vpack.c.b16 %v507, %v506
    %v532 = vpack.c.b16 %v509, %v508
    %v533 = vpack.c.b16 %v511, %v510
    %v534 = vpack.c.b16 %v513, %v512
    %v535 = vpack.c.b16 %v515, %v514
    %v536 = vpack.c.b16 %v517, %v516
    %v537 = vpack.c.b16 %v519, %v518
    %v538 = vpack.c.b16 %v521, %v520
    %v539 = vpack.c.b16 %v523, %v522
    %556 = vmatpush.bf16.msra.mxu0 %v531
    %557 = vmatpush.bf16.msra.mxu0 %v530
    %558 = vmatpush.bf16.msra.mxu0 %v529
    %559 = vmatpush.bf16.msra.mxu0 %v528
    %560 = vmatpush.bf16.msra.mxu0 %v527
    %561 = vmatpush.bf16.msra.mxu0 %v526
    %562 = vmatpush.bf16.msra.mxu0 %v525
    %563 = vmatpush.bf16.msra.mxu0 %v524
    %564 = vmatmul.bf16.gmra.mxu0 %v332
    %v565 = vpop.f32.mrf.mxu0
    %v566 = vadd.f32 %v138, %v565
    %v567 = vpop.f32.mrf.mxu0
    %v568 = vadd.f32 %v138, %v567
    %569 = vmatmul.bf16.gmra.mxu0 %v334
    %v570 = vpop.f32.mrf.mxu0
    %v571 = vadd.f32 %v138, %v570
    %v572 = vpop.f32.mrf.mxu0
    %v573 = vadd.f32 %v138, %v572
    %574 = vmatmul.bf16.gmra.mxu0 %v336
    %v575 = vpop.f32.mrf.mxu0
    %v576 = vadd.f32 %v138, %v575
    %v577 = vpop.f32.mrf.mxu0
    %v578 = vadd.f32 %v138, %v577
    %579 = vmatmul.bf16.gmra.mxu0 %v338
    %v580 = vpop.f32.mrf.mxu0
    %v581 = vadd.f32 %v138, %v580
    %v582 = vpop.f32.mrf.mxu0
    %v583 = vadd.f32 %v138, %v582
    %584 = vmatmul.bf16.gmra.mxu0 %v340
    %v585 = vpop.f32.mrf.mxu0
    %v586 = vadd.f32 %v138, %v585
    %v587 = vpop.f32.mrf.mxu0
    %v588 = vadd.f32 %v138, %v587
    %589 = vmatmul.bf16.gmra.mxu0 %v342
    %v590 = vpop.f32.mrf.mxu0
    %v591 = vadd.f32 %v138, %v590
    %v592 = vpop.f32.mrf.mxu0
    %v593 = vadd.f32 %v138, %v592
    %594 = vmatmul.bf16.gmra.mxu0 %v344
    %v595 = vpop.f32.mrf.mxu0
    %v596 = vadd.f32 %v138, %v595
    %v597 = vpop.f32.mrf.mxu0
    %v598 = vadd.f32 %v138, %v597
    %599 = vmatmul.bf16.gmra.mxu0 %v346
    %v600 = vpop.f32.mrf.mxu0
    %v601 = vadd.f32 %v138, %v600
    %v602 = vpop.f32.mrf.mxu0
    %v603 = vadd.f32 %v138, %v602
    %604 = vmatmul.bf16.gmra.mxu0 %v348
    %v605 = vpop.f32.mrf.mxu0
    %v606 = vadd.f32 %v138, %v605
    %v607 = vpop.f32.mrf.mxu0
    %v608 = vadd.f32 %v138, %v607
    %609 = vmatmul.bf16.gmra.mxu0 %v350
    %v610 = vpop.f32.mrf.mxu0
    %v611 = vadd.f32 %v138, %v610
    %v612 = vpop.f32.mrf.mxu0
    %v613 = vadd.f32 %v138, %v612
    %614 = vmatmul.bf16.gmra.mxu0 %v352
    %v615 = vpop.f32.mrf.mxu0
    %v616 = vadd.f32 %v138, %v615
    %v617 = vpop.f32.mrf.mxu0
    %v618 = vadd.f32 %v138, %v617
    %619 = vmatmul.bf16.gmra.mxu0 %v354
    %v620 = vpop.f32.mrf.mxu0
    %v621 = vadd.f32 %v138, %v620
    %v622 = vpop.f32.mrf.mxu0
    %v623 = vadd.f32 %v138, %v622
    %624 = vmatmul.bf16.gmra.mxu0 %v356
    %v625 = vpop.f32.mrf.mxu0
    %v626 = vadd.f32 %v138, %v625
    %v627 = vpop.f32.mrf.mxu0
    %v628 = vadd.f32 %v138, %v627
    %629 = vmatmul.bf16.gmra.mxu0 %v358
    %v630 = vpop.f32.mrf.mxu0
    %v631 = vadd.f32 %v138, %v630
    %v632 = vpop.f32.mrf.mxu0
    %v633 = vadd.f32 %v138, %v632
    %634 = vmatmul.bf16.gmra.mxu0 %v360
    %v635 = vpop.f32.mrf.mxu0
    %v636 = vadd.f32 %v138, %v635
    %v637 = vpop.f32.mrf.mxu0
    %v638 = vadd.f32 %v138, %v637
    %639 = vmatmul.bf16.gmra.mxu0 %v362
    %v640 = vpop.f32.mrf.mxu0
    %v641 = vadd.f32 %v138, %v640
    %v642 = vpop.f32.mrf.mxu0
    %v643 = vadd.f32 %v138, %v642
    %644 = vmatmul.bf16.gmra.mxu0 %v364
    %v645 = vpop.f32.mrf.mxu0
    %v646 = vadd.f32 %v138, %v645
    %v647 = vpop.f32.mrf.mxu0
    %v648 = vadd.f32 %v138, %v647
    %649 = vmatmul.bf16.gmra.mxu0 %v366
    %v650 = vpop.f32.mrf.mxu0
    %v651 = vadd.f32 %v138, %v650
    %v652 = vpop.f32.mrf.mxu0
    %v653 = vadd.f32 %v138, %v652
    %654 = vmatmul.bf16.gmra.mxu0 %v368
    %v655 = vpop.f32.mrf.mxu0
    %v656 = vadd.f32 %v138, %v655
    %v657 = vpop.f32.mrf.mxu0
    %v658 = vadd.f32 %v138, %v657
    %659 = vmatmul.bf16.gmra.mxu0 %v370
    %v660 = vpop.f32.mrf.mxu0
    %v661 = vadd.f32 %v138, %v660
    %v662 = vpop.f32.mrf.mxu0
    %v663 = vadd.f32 %v138, %v662
    %664 = vmatmul.bf16.gmra.mxu0 %v372
    %v665 = vpop.f32.mrf.mxu0
    %v666 = vadd.f32 %v138, %v665
    %v667 = vpop.f32.mrf.mxu0
    %v668 = vadd.f32 %v138, %v667
    %669 = vmatmul.bf16.gmra.mxu0 %v374
    %v670 = vpop.f32.mrf.mxu0
    %v671 = vadd.f32 %v138, %v670
    %v672 = vpop.f32.mrf.mxu0
    %v673 = vadd.f32 %v138, %v672
    %674 = vmatmul.bf16.gmra.mxu0 %v376
    %v675 = vpop.f32.mrf.mxu0
    %v676 = vadd.f32 %v138, %v675
    %v677 = vpop.f32.mrf.mxu0
    %v678 = vadd.f32 %v138, %v677
    %679 = vmatmul.bf16.gmra.mxu0 %v378
    %v680 = vpop.f32.mrf.mxu0
    %v681 = vadd.f32 %v138, %v680
    %v682 = vpop.f32.mrf.mxu0
    %v683 = vadd.f32 %v138, %v682
    %684 = vmatmul.bf16.gmra.mxu0 %v380
    %v685 = vpop.f32.mrf.mxu0
    %v686 = vadd.f32 %v138, %v685
    %v687 = vpop.f32.mrf.mxu0
    %v688 = vadd.f32 %v138, %v687
    %689 = vmatmul.bf16.gmra.mxu0 %v382
    %v690 = vpop.f32.mrf.mxu0
    %v691 = vadd.f32 %v138, %v690
    %v692 = vpop.f32.mrf.mxu0
    %v693 = vadd.f32 %v138, %v692
    %694 = vmatmul.bf16.gmra.mxu0 %v384
    %v695 = vpop.f32.mrf.mxu0
    %v696 = vadd.f32 %v138, %v695
    %v697 = vpop.f32.mrf.mxu0
    %v698 = vadd.f32 %v138, %v697
    %699 = vmatmul.bf16.gmra.mxu0 %v386
    %v700 = vpop.f32.mrf.mxu0
    %v701 = vadd.f32 %v138, %v700
    %v702 = vpop.f32.mrf.mxu0
    %v703 = vadd.f32 %v138, %v702
    %704 = vmatmul.bf16.gmra.mxu0 %v388
    %v705 = vpop.f32.mrf.mxu0
    %v706 = vadd.f32 %v138, %v705
    %v707 = vpop.f32.mrf.mxu0
    %v708 = vadd.f32 %v138, %v707
    %709 = vmatmul.bf16.gmra.mxu0 %v390
    %v710 = vpop.f32.mrf.mxu0
    %v711 = vadd.f32 %v138, %v710
    %v712 = vpop.f32.mrf.mxu0
    %v713 = vadd.f32 %v138, %v712
    %714 = vmatmul.bf16.gmra.mxu0 %v392
    %v715 = vpop.f32.mrf.mxu0
    %v716 = vadd.f32 %v138, %v715
    %v717 = vpop.f32.mrf.mxu0
    %v718 = vadd.f32 %v138, %v717
    %719 = vmatmul.bf16.gmra.mxu0 %v394
    %v720 = vpop.f32.mrf.mxu0
    %v721 = vadd.f32 %v138, %v720
    %v722 = vpop.f32.mrf.mxu0
    %v723 = vadd.f32 %v138, %v722
    %724 = vdwg.mxu0
    %725 = vmatpush.bf16.msra.mxu0 %v539
    %726 = vmatpush.bf16.msra.mxu0 %v538
    %727 = vmatpush.bf16.msra.mxu0 %v537
    %728 = vmatpush.bf16.msra.mxu0 %v536
    %729 = vmatpush.bf16.msra.mxu0 %v535
    %730 = vmatpush.bf16.msra.mxu0 %v534
    %731 = vmatpush.bf16.msra.mxu0 %v533
    %732 = vmatpush.bf16.msra.mxu0 %v532
    %733 = vmatmul.bf16.gmra.mxu0 %v333
    %v734 = vpop.f32.mrf.mxu0
    %v735 = vadd.f32 %v566, %v734
    %v736 = vpop.f32.mrf.mxu0
    %v737 = vadd.f32 %v568, %v736
    %738 = vmatmul.bf16.gmra.mxu0 %v335
    %v739 = vpop.f32.mrf.mxu0
    %v740 = vadd.f32 %v571, %v739
    %v741 = vpop.f32.mrf.mxu0
    %v742 = vadd.f32 %v573, %v741
    %743 = vmatmul.bf16.gmra.mxu0 %v337
    %v744 = vpop.f32.mrf.mxu0
    %v745 = vadd.f32 %v576, %v744
    %v746 = vpop.f32.mrf.mxu0
    %v747 = vadd.f32 %v578, %v746
    %748 = vmatmul.bf16.gmra.mxu0 %v339
    %v749 = vpop.f32.mrf.mxu0
    %v750 = vadd.f32 %v581, %v749
    %v751 = vpop.f32.mrf.mxu0
    %v752 = vadd.f32 %v583, %v751
    %753 = vmatmul.bf16.gmra.mxu0 %v341
    %v754 = vpop.f32.mrf.mxu0
    %v755 = vadd.f32 %v586, %v754
    %v756 = vpop.f32.mrf.mxu0
    %v757 = vadd.f32 %v588, %v756
    %758 = vmatmul.bf16.gmra.mxu0 %v343
    %v759 = vpop.f32.mrf.mxu0
    %v760 = vadd.f32 %v591, %v759
    %v761 = vpop.f32.mrf.mxu0
    %v762 = vadd.f32 %v593, %v761
    %763 = vmatmul.bf16.gmra.mxu0 %v345
    %v764 = vpop.f32.mrf.mxu0
    %v765 = vadd.f32 %v596, %v764
    %v766 = vpop.f32.mrf.mxu0
    %v767 = vadd.f32 %v598, %v766
    %768 = vmatmul.bf16.gmra.mxu0 %v347
    %v769 = vpop.f32.mrf.mxu0
    %v770 = vadd.f32 %v601, %v769
    %v771 = vpop.f32.mrf.mxu0
    %v772 = vadd.f32 %v603, %v771
    %773 = vmatmul.bf16.gmra.mxu0 %v349
    %v774 = vpop.f32.mrf.mxu0
    %v775 = vadd.f32 %v606, %v774
    %v776 = vpop.f32.mrf.mxu0
    %v777 = vadd.f32 %v608, %v776
    %778 = vmatmul.bf16.gmra.mxu0 %v351
    %v779 = vpop.f32.mrf.mxu0
    %v780 = vadd.f32 %v611, %v779
    %v781 = vpop.f32.mrf.mxu0
    %v782 = vadd.f32 %v613, %v781
    %783 = vmatmul.bf16.gmra.mxu0 %v353
    %v784 = vpop.f32.mrf.mxu0
    %v785 = vadd.f32 %v616, %v784
    %v786 = vpop.f32.mrf.mxu0
    %v787 = vadd.f32 %v618, %v786
    %788 = vmatmul.bf16.gmra.mxu0 %v355
    %v789 = vpop.f32.mrf.mxu0
    %v790 = vadd.f32 %v621, %v789
    %v791 = vpop.f32.mrf.mxu0
    %v792 = vadd.f32 %v623, %v791
    %793 = vmatmul.bf16.gmra.mxu0 %v357
    %v794 = vpop.f32.mrf.mxu0
    %v795 = vadd.f32 %v626, %v794
    %v796 = vpop.f32.mrf.mxu0
    %v797 = vadd.f32 %v628, %v796
    %798 = vmatmul.bf16.gmra.mxu0 %v359
    %v799 = vpop.f32.mrf.mxu0
    %v800 = vadd.f32 %v631, %v799
    %v801 = vpop.f32.mrf.mxu0
    %v802 = vadd.f32 %v633, %v801
    %803 = vmatmul.bf16.gmra.mxu0 %v361
    %v804 = vpop.f32.mrf.mxu0
    %v805 = vadd.f32 %v636, %v804
    %v806 = vpop.f32.mrf.mxu0
    %v807 = vadd.f32 %v638, %v806
    %808 = vmatmul.bf16.gmra.mxu0 %v363
    %v809 = vpop.f32.mrf.mxu0
    %v810 = vadd.f32 %v641, %v809
    %v811 = vpop.f32.mrf.mxu0
    %v812 = vadd.f32 %v643, %v811
    %813 = vmatmul.bf16.gmra.mxu0 %v365
    %v814 = vpop.f32.mrf.mxu0
    %v815 = vadd.f32 %v646, %v814
    %v816 = vpop.f32.mrf.mxu0
    %v817 = vadd.f32 %v648, %v816
    %818 = vmatmul.bf16.gmra.mxu0 %v367
    %v819 = vpop.f32.mrf.mxu0
    %v820 = vadd.f32 %v651, %v819
    %v821 = vpop.f32.mrf.mxu0
    %v822 = vadd.f32 %v653, %v821
    %823 = vmatmul.bf16.gmra.mxu0 %v369
    %v824 = vpop.f32.mrf.mxu0
    %v825 = vadd.f32 %v656, %v824
    %v826 = vpop.f32.mrf.mxu0
    %v827 = vadd.f32 %v658, %v826
    %828 = vmatmul.bf16.gmra.mxu0 %v371
    %v829 = vpop.f32.mrf.mxu0
    %v830 = vadd.f32 %v661, %v829
    %v831 = vpop.f32.mrf.mxu0
    %v832 = vadd.f32 %v663, %v831
    %833 = vmatmul.bf16.gmra.mxu0 %v373
    %v834 = vpop.f32.mrf.mxu0
    %v835 = vadd.f32 %v666, %v834
    %v836 = vpop.f32.mrf.mxu0
    %v837 = vadd.f32 %v668, %v836
    %838 = vmatmul.bf16.gmra.mxu0 %v375
    %v839 = vpop.f32.mrf.mxu0
    %v840 = vadd.f32 %v671, %v839
    %v841 = vpop.f32.mrf.mxu0
    %v842 = vadd.f32 %v673, %v841
    %843 = vmatmul.bf16.gmra.mxu0 %v377
    %v844 = vpop.f32.mrf.mxu0
    %v845 = vadd.f32 %v676, %v844
    %v846 = vpop.f32.mrf.mxu0
    %v847 = vadd.f32 %v678, %v846
    %848 = vmatmul.bf16.gmra.mxu0 %v379
    %v849 = vpop.f32.mrf.mxu0
    %v850 = vadd.f32 %v681, %v849
    %v851 = vpop.f32.mrf.mxu0
    %v852 = vadd.f32 %v683, %v851
    %853 = vmatmul.bf16.gmra.mxu0 %v381
    %v854 = vpop.f32.mrf.mxu0
    %v855 = vadd.f32 %v686, %v854
    %v856 = vpop.f32.mrf.mxu0
    %v857 = vadd.f32 %v688, %v856
    %858 = vmatmul.bf16.gmra.mxu0 %v383
    %v859 = vpop.f32.mrf.mxu0
    %v860 = vadd.f32 %v691, %v859
    %v861 = vpop.f32.mrf.mxu0
    %v862 = vadd.f32 %v693, %v861
    %863 = vmatmul.bf16.gmra.mxu0 %v385
    %v864 = vpop.f32.mrf.mxu0
    %v865 = vadd.f32 %v696, %v864
    %v866 = vpop.f32.mrf.mxu0
    %v867 = vadd.f32 %v698, %v866
    %868 = vmatmul.bf16.gmra.mxu0 %v387
    %v869 = vpop.f32.mrf.mxu0
    %v870 = vadd.f32 %v701, %v869
    %v871 = vpop.f32.mrf.mxu0
    %v872 = vadd.f32 %v703, %v871
    %873 = vmatmul.bf16.gmra.mxu0 %v389
    %v874 = vpop.f32.mrf.mxu0
    %v875 = vadd.f32 %v706, %v874
    %v876 = vpop.f32.mrf.mxu0
    %v877 = vadd.f32 %v708, %v876
    %878 = vmatmul.bf16.gmra.mxu0 %v391
    %v879 = vpop.f32.mrf.mxu0
    %v880 = vadd.f32 %v711, %v879
    %v881 = vpop.f32.mrf.mxu0
    %v882 = vadd.f32 %v713, %v881
    %883 = vmatmul.bf16.gmra.mxu0 %v393
    %v884 = vpop.f32.mrf.mxu0
    %v885 = vadd.f32 %v716, %v884
    %v886 = vpop.f32.mrf.mxu0
    %v887 = vadd.f32 %v718, %v886
    %888 = vmatmul.bf16.gmra.mxu0 %v395
    %v889 = vpop.f32.mrf.mxu0
    %v890 = vadd.f32 %v721, %v889
    %v891 = vpop.f32.mrf.mxu0
    %v892 = vadd.f32 %v723, %v891
    %893 = vdwg.mxu0
    %v894 = vmax.f32 %v735, 0.0
    %v895 = vmax.f32 %v737, 0.0
    %v896 = vmax.f32 %v740, 0.0
    %v897 = vmax.f32 %v742, 0.0
    %v898 = vmax.f32 %v745, 0.0
    %v899 = vmax.f32 %v747, 0.0
    %v900 = vmax.f32 %v750, 0.0
    %v901 = vmax.f32 %v752, 0.0
    %v902 = vmax.f32 %v755, 0.0
    %v903 = vmax.f32 %v757, 0.0
    %v904 = vmax.f32 %v760, 0.0
    %v905 = vmax.f32 %v762, 0.0
    %v906 = vmax.f32 %v765, 0.0
    %v907 = vmax.f32 %v767, 0.0
    %v908 = vmax.f32 %v770, 0.0
    %v909 = vmax.f32 %v772, 0.0
    %v910 = vmax.f32 %v775, 0.0
    %v911 = vmax.f32 %v777, 0.0
    %v912 = vmax.f32 %v780, 0.0
    %v913 = vmax.f32 %v782, 0.0
    %v914 = vmax.f32 %v785, 0.0
    %v915 = vmax.f32 %v787, 0.0
    %v916 = vmax.f32 %v790, 0.0
    %v917 = vmax.f32 %v792, 0.0
    %v918 = vmax.f32 %v795, 0.0
    %v919 = vmax.f32 %v797, 0.0
    %v920 = vmax.f32 %v800, 0.0
    %v921 = vmax.f32 %v802, 0.0
    %v922 = vmax.f32 %v805, 0.0
    %v923 = vmax.f32 %v807, 0.0
    %v924 = vmax.f32 %v810, 0.0
    %v925 = vmax.f32 %v812, 0.0
    %v926 = vmax.f32 %v815, 0.0
    %v927 = vmax.f32 %v817, 0.0
    %v928 = vmax.f32 %v820, 0.0
    %v929 = vmax.f32 %v822, 0.0
    %v930 = vmax.f32 %v825, 0.0
    %v931 = vmax.f32 %v827, 0.0
    %v932 = vmax.f32 %v830, 0.0
    %v933 = vmax.f32 %v832, 0.0
    %v934 = vmax.f32 %v835, 0.0
    %v935 = vmax.f32 %v837, 0.0
    %v936 = vmax.f32 %v840, 0.0
    %v937 = vmax.f32 %v842, 0.0
    %v938 = vmax.f32 %v845, 0.0
    %v939 = vmax.f32 %v847, 0.0
    %v940 = vmax.f32 %v850, 0.0
    %v941 = vmax.f32 %v852, 0.0
    %v942 = vmax.f32 %v855, 0.0
    %v943 = vmax.f32 %v857, 0.0
    %v944 = vmax.f32 %v860, 0.0
    %v945 = vmax.f32 %v862, 0.0
    %v946 = vmax.f32 %v865, 0.0
    %v947 = vmax.f32 %v867, 0.0
    %v948 = vmax.f32 %v870, 0.0
    %v949 = vmax.f32 %v872, 0.0
    %v950 = vmax.f32 %v875, 0.0
    %v951 = vmax.f32 %v877, 0.0
    %v952 = vmax.f32 %v880, 0.0
    %v953 = vmax.f32 %v882, 0.0
    %v954 = vmax.f32 %v885, 0.0
    %v955 = vmax.f32 %v887, 0.0
    %v956 = vmax.f32 %v890, 0.0
    %v957 = vmax.f32 %v892, 0.0
    %v958 = vld [vmem:[%s3] sm:$0xff]
    %v959 = vld [vmem:[%s3 + $0x8] sm:$0xff]
    %v960 = vld [vmem:[%s3 + $0x10] sm:$0xff]
    %v961 = vld [vmem:[%s3 + $0x18] sm:$0xff]
    %v962 = vld [vmem:[%s3 + $0x20] sm:$0xff]
    %v963 = vld [vmem:[%s3 + $0x28] sm:$0xff]
    %v964 = vld [vmem:[%s3 + $0x30] sm:$0xff]
    %v965 = vld [vmem:[%s3 + $0x38] sm:$0xff]
    %v966 = vld [vmem:[%s3 + $0x40] sm:$0xff]
    %v967 = vld [vmem:[%s3 + $0x48] sm:$0xff]
    %v968 = vld [vmem:[%s3 + $0x50] sm:$0xff]
    %v969 = vld [vmem:[%s3 + $0x58] sm:$0xff]
    %v970 = vld [vmem:[%s3 + $0x60] sm:$0xff]
    %v971 = vld [vmem:[%s3 + $0x68] sm:$0xff]
    %v972 = vld [vmem:[%s3 + $0x70] sm:$0xff]
    %v973 = vld [vmem:[%s3 + $0x78] sm:$0xff]
    %v974 = vld [vmem:[%s3 + $0x80] sm:$0xff]
    %v975 = vld [vmem:[%s3 + $0x88] sm:$0xff]
    %v976 = vld [vmem:[%s3 + $0x90] sm:$0xff]
    %v977 = vld [vmem:[%s3 + $0x98] sm:$0xff]
    %v978 = vld [vmem:[%s3 + $0xa0] sm:$0xff]
    %v979 = vld [vmem:[%s3 + $0xa8] sm:$0xff]
    %v980 = vld [vmem:[%s3 + $0xb0] sm:$0xff]
    %v981 = vld [vmem:[%s3 + $0xb8] sm:$0xff]
    %v982 = vld [vmem:[%s3 + $0xc0] sm:$0xff]
    %v983 = vld [vmem:[%s3 + $0xc8] sm:$0xff]
    %v984 = vld [vmem:[%s3 + $0xd0] sm:$0xff]
    %v985 = vld [vmem:[%s3 + $0xd8] sm:$0xff]
    %v986 = vld [vmem:[%s3 + $0xe0] sm:$0xff]
    %v987 = vld [vmem:[%s3 + $0xe8] sm:$0xff]
    %v988 = vld [vmem:[%s3 + $0xf0] sm:$0xff]
    %v989 = vld [vmem:[%s3 + $0xf8] sm:$0xff]
    %v990 = vld [vmem:[%s3 + $0x100] sm:$0xff]
    %v991 = vld [vmem:[%s3 + $0x108] sm:$0xff]
    %v992 = vld [vmem:[%s3 + $0x110] sm:$0xff]
    %v993 = vld [vmem:[%s3 + $0x118] sm:$0xff]
    %v994 = vld [vmem:[%s3 + $0x120] sm:$0xff]
    %v995 = vld [vmem:[%s3 + $0x128] sm:$0xff]
    %v996 = vld [vmem:[%s3 + $0x130] sm:$0xff]
    %v997 = vld [vmem:[%s3 + $0x138] sm:$0xff]
    %v998 = vld [vmem:[%s3 + $0x140] sm:$0xff]
    %v999 = vld [vmem:[%s3 + $0x148] sm:$0xff]
    %v1000 = vld [vmem:[%s3 + $0x150] sm:$0xff]
    %v1001 = vld [vmem:[%s3 + $0x158] sm:$0xff]
    %v1002 = vld [vmem:[%s3 + $0x160] sm:$0xff]
    %v1003 = vld [vmem:[%s3 + $0x168] sm:$0xff]
    %v1004 = vld [vmem:[%s3 + $0x170] sm:$0xff]
    %v1005 = vld [vmem:[%s3 + $0x178] sm:$0xff]
    %v1006 = vld [vmem:[%s3 + $0x180] sm:$0xff]
    %v1007 = vld [vmem:[%s3 + $0x188] sm:$0xff]
    %v1008 = vld [vmem:[%s3 + $0x190] sm:$0xff]
    %v1009 = vld [vmem:[%s3 + $0x198] sm:$0xff]
    %v1010 = vld [vmem:[%s3 + $0x1a0] sm:$0xff]
    %v1011 = vld [vmem:[%s3 + $0x1a8] sm:$0xff]
    %v1012 = vld [vmem:[%s3 + $0x1b0] sm:$0xff]
    %v1013 = vld [vmem:[%s3 + $0x1b8] sm:$0xff]
    %v1014 = vld [vmem:[%s3 + $0x1c0] sm:$0xff]
    %v1015 = vld [vmem:[%s3 + $0x1c8] sm:$0xff]
    %v1016 = vld [vmem:[%s3 + $0x1d0] sm:$0xff]
    %v1017 = vld [vmem:[%s3 + $0x1d8] sm:$0xff]
    %v1018 = vld [vmem:[%s3 + $0x1e0] sm:$0xff]
    %v1019 = vld [vmem:[%s3 + $0x1e8] sm:$0xff]
    %v1020 = vld [vmem:[%s3 + $0x1f0] sm:$0xff]
    %v1021 = vld [vmem:[%s3 + $0x1f8] sm:$0xff]
    %v1022 = vld [vmem:[%s3 + $0x200] sm:$0xff]
    %v1023 = vld [vmem:[%s3 + $0x208] sm:$0xff]
    %v1024 = vld [vmem:[%s3 + $0x210] sm:$0xff]
    %v1025 = vld [vmem:[%s3 + $0x218] sm:$0xff]
    %v1026 = vld [vmem:[%s3 + $0x220] sm:$0xff]
    %v1027 = vld [vmem:[%s3 + $0x228] sm:$0xff]
    %v1028 = vld [vmem:[%s3 + $0x230] sm:$0xff]
    %v1029 = vld [vmem:[%s3 + $0x238] sm:$0xff]
    %v1030 = vld [vmem:[%s3 + $0x240] sm:$0xff]
    %v1031 = vld [vmem:[%s3 + $0x248] sm:$0xff]
    %v1032 = vld [vmem:[%s3 + $0x250] sm:$0xff]
    %v1033 = vld [vmem:[%s3 + $0x258] sm:$0xff]
    %v1034 = vld [vmem:[%s3 + $0x260] sm:$0xff]
    %v1035 = vld [vmem:[%s3 + $0x268] sm:$0xff]
    %v1036 = vld [vmem:[%s3 + $0x270] sm:$0xff]
    %v1037 = vld [vmem:[%s3 + $0x278] sm:$0xff]
    %v1038 = vld [vmem:[%s3 + $0x280] sm:$0xff]
    %v1039 = vld [vmem:[%s3 + $0x288] sm:$0xff]
    %v1040 = vld [vmem:[%s3 + $0x290] sm:$0xff]
    %v1041 = vld [vmem:[%s3 + $0x298] sm:$0xff]
    %v1042 = vld [vmem:[%s3 + $0x2a0] sm:$0xff]
    %v1043 = vld [vmem:[%s3 + $0x2a8] sm:$0xff]
    %v1044 = vld [vmem:[%s3 + $0x2b0] sm:$0xff]
    %v1045 = vld [vmem:[%s3 + $0x2b8] sm:$0xff]
    %v1046 = vld [vmem:[%s3 + $0x2c0] sm:$0xff]
    %v1047 = vld [vmem:[%s3 + $0x2c8] sm:$0xff]
    %v1048 = vld [vmem:[%s3 + $0x2d0] sm:$0xff]
    %v1049 = vld [vmem:[%s3 + $0x2d8] sm:$0xff]
    %v1050 = vld [vmem:[%s3 + $0x2e0] sm:$0xff]
    %v1051 = vld [vmem:[%s3 + $0x2e8] sm:$0xff]
    %v1052 = vld [vmem:[%s3 + $0x2f0] sm:$0xff]
    %v1053 = vld [vmem:[%s3 + $0x2f8] sm:$0xff]
    %v1054 = vld [vmem:[%s3 + $0x300] sm:$0xff]
    %v1055 = vld [vmem:[%s3 + $0x308] sm:$0xff]
    %v1056 = vld [vmem:[%s3 + $0x310] sm:$0xff]
    %v1057 = vld [vmem:[%s3 + $0x318] sm:$0xff]
    %v1058 = vld [vmem:[%s3 + $0x320] sm:$0xff]
    %v1059 = vld [vmem:[%s3 + $0x328] sm:$0xff]
    %v1060 = vld [vmem:[%s3 + $0x330] sm:$0xff]
    %v1061 = vld [vmem:[%s3 + $0x338] sm:$0xff]
    %v1062 = vld [vmem:[%s3 + $0x340] sm:$0xff]
    %v1063 = vld [vmem:[%s3 + $0x348] sm:$0xff]
    %v1064 = vld [vmem:[%s3 + $0x350] sm:$0xff]
    %v1065 = vld [vmem:[%s3 + $0x358] sm:$0xff]
    %v1066 = vld [vmem:[%s3 + $0x360] sm:$0xff]
    %v1067 = vld [vmem:[%s3 + $0x368] sm:$0xff]
    %v1068 = vld [vmem:[%s3 + $0x370] sm:$0xff]
    %v1069 = vld [vmem:[%s3 + $0x378] sm:$0xff]
    %v1070 = vld [vmem:[%s3 + $0x380] sm:$0xff]
    %v1071 = vld [vmem:[%s3 + $0x388] sm:$0xff]
    %v1072 = vld [vmem:[%s3 + $0x390] sm:$0xff]
    %v1073 = vld [vmem:[%s3 + $0x398] sm:$0xff]
    %v1074 = vld [vmem:[%s3 + $0x3a0] sm:$0xff]
    %v1075 = vld [vmem:[%s3 + $0x3a8] sm:$0xff]
    %v1076 = vld [vmem:[%s3 + $0x3b0] sm:$0xff]
    %v1077 = vld [vmem:[%s3 + $0x3b8] sm:$0xff]
    %v1078 = vld [vmem:[%s3 + $0x3c0] sm:$0xff]
    %v1079 = vld [vmem:[%s3 + $0x3c8] sm:$0xff]
    %v1080 = vld [vmem:[%s3 + $0x3d0] sm:$0xff]
    %v1081 = vld [vmem:[%s3 + $0x3d8] sm:$0xff]
    %v1082 = vld [vmem:[%s3 + $0x3e0] sm:$0xff]
    %v1083 = vld [vmem:[%s3 + $0x3e8] sm:$0xff]
    %v1084 = vld [vmem:[%s3 + $0x3f0] sm:$0xff]
    %v1085 = vld [vmem:[%s3 + $0x3f8] sm:$0xff]
    %v1086 = vpack.c.bf16 %v895, %v894
    %v1087 = vpack.c.bf16 %v897, %v896
    %v1088 = vpack.c.bf16 %v899, %v898
    %v1089 = vpack.c.bf16 %v901, %v900
    %v1090 = vpack.c.bf16 %v903, %v902
    %v1091 = vpack.c.bf16 %v905, %v904
    %v1092 = vpack.c.bf16 %v907, %v906
    %v1093 = vpack.c.bf16 %v909, %v908
    %v1094 = vpack.c.bf16 %v911, %v910
    %v1095 = vpack.c.bf16 %v913, %v912
    %v1096 = vpack.c.bf16 %v915, %v914
    %v1097 = vpack.c.bf16 %v917, %v916
    %v1098 = vpack.c.bf16 %v919, %v918
    %v1099 = vpack.c.bf16 %v921, %v920
    %v1100 = vpack.c.bf16 %v923, %v922
    %v1101 = vpack.c.bf16 %v925, %v924
    %v1230 = vunpack.c.l.b16 %v958
    %v1231 = vunpack.c.h.b16 %v958
    %v1232 = vunpack.c.l.b16 %v959
    %v1233 = vunpack.c.h.b16 %v959
    %v1234 = vunpack.c.l.b16 %v960
    %v1235 = vunpack.c.h.b16 %v960
    %v1236 = vunpack.c.l.b16 %v961
    %v1237 = vunpack.c.h.b16 %v961
    %v1238 = vunpack.c.l.b16 %v962
    %v1239 = vunpack.c.h.b16 %v962
    %v1240 = vunpack.c.l.b16 %v963
    %v1241 = vunpack.c.h.b16 %v963
    %v1242 = vunpack.c.l.b16 %v964
    %v1243 = vunpack.c.h.b16 %v964
    %v1244 = vunpack.c.l.b16 %v965
    %v1245 = vunpack.c.h.b16 %v965
    %v1246 = vunpack.c.l.b16 %v966
    %v1247 = vunpack.c.h.b16 %v966
    %v1248 = vunpack.c.l.b16 %v967
    %v1249 = vunpack.c.h.b16 %v967
    %v1250 = vunpack.c.l.b16 %v968
    %v1251 = vunpack.c.h.b16 %v968
    %v1252 = vunpack.c.l.b16 %v969
    %v1253 = vunpack.c.h.b16 %v969
    %v1254 = vunpack.c.l.b16 %v970
    %v1255 = vunpack.c.h.b16 %v970
    %v1256 = vunpack.c.l.b16 %v971
    %v1257 = vunpack.c.h.b16 %v971
    %v1258 = vunpack.c.l.b16 %v972
    %v1259 = vunpack.c.h.b16 %v972
    %v1260 = vunpack.c.l.b16 %v973
    %v1261 = vunpack.c.h.b16 %v973
    %v1262 = vunpack.c.l.b16 %v974
    %v1263 = vunpack.c.h.b16 %v974
    %v1264 = vunpack.c.l.b16 %v975
    %v1265 = vunpack.c.h.b16 %v975
    %v1266 = vunpack.c.l.b16 %v976
    %v1267 = vunpack.c.h.b16 %v976
    %v1268 = vunpack.c.l.b16 %v977
    %v1269 = vunpack.c.h.b16 %v977
    %v1270 = vunpack.c.l.b16 %v978
    %v1271 = vunpack.c.h.b16 %v978
    %v1272 = vunpack.c.l.b16 %v979
    %v1273 = vunpack.c.h.b16 %v979
    %v1274 = vunpack.c.l.b16 %v980
    %v1275 = vunpack.c.h.b16 %v980
    %v1276 = vunpack.c.l.b16 %v981
    %v1277 = vunpack.c.h.b16 %v981
    %v1278 = vunpack.c.l.b16 %v982
    %v1279 = vunpack.c.h.b16 %v982
    %v1280 = vunpack.c.l.b16 %v983
    %v1281 = vunpack.c.h.b16 %v983
    %v1282 = vunpack.c.l.b16 %v984
    %v1283 = vunpack.c.h.b16 %v984
    %v1284 = vunpack.c.l.b16 %v985
    %v1285 = vunpack.c.h.b16 %v985
    %v1286 = vunpack.c.l.b16 %v986
    %v1287 = vunpack.c.h.b16 %v986
    %v1288 = vunpack.c.l.b16 %v987
    %v1289 = vunpack.c.h.b16 %v987
    %v1290 = vunpack.c.l.b16 %v988
    %v1291 = vunpack.c.h.b16 %v988
    %v1292 = vunpack.c.l.b16 %v989
    %v1293 = vunpack.c.h.b16 %v989
    %v1294 = vunpack.c.l.b16 %v990
    %v1295 = vunpack.c.h.b16 %v990
    %v1296 = vunpack.c.l.b16 %v991
    %v1297 = vunpack.c.h.b16 %v991
    %v1298 = vunpack.c.l.b16 %v992
    %v1299 = vunpack.c.h.b16 %v992
    %v1300 = vunpack.c.l.b16 %v993
    %v1301 = vunpack.c.h.b16 %v993
    %v1302 = vunpack.c.l.b16 %v994
    %v1303 = vunpack.c.h.b16 %v994
    %v1304 = vunpack.c.l.b16 %v995
    %v1305 = vunpack.c.h.b16 %v995
    %v1306 = vunpack.c.l.b16 %v996
    %v1307 = vunpack.c.h.b16 %v996
    %v1308 = vunpack.c.l.b16 %v997
    %v1309 = vunpack.c.h.b16 %v997
    %v1310 = vunpack.c.l.b16 %v998
    %v1311 = vunpack.c.h.b16 %v998
    %v1312 = vunpack.c.l.b16 %v999
    %v1313 = vunpack.c.h.b16 %v999
    %v1314 = vunpack.c.l.b16 %v1000
    %v1315 = vunpack.c.h.b16 %v1000
    %v1316 = vunpack.c.l.b16 %v1001
    %v1317 = vunpack.c.h.b16 %v1001
    %v1318 = vunpack.c.l.b16 %v1002
    %v1319 = vunpack.c.h.b16 %v1002
    %v1320 = vunpack.c.l.b16 %v1003
    %v1321 = vunpack.c.h.b16 %v1003
    %v1322 = vunpack.c.l.b16 %v1004
    %v1323 = vunpack.c.h.b16 %v1004
    %v1324 = vunpack.c.l.b16 %v1005
    %v1325 = vunpack.c.h.b16 %v1005
    %v1326 = vunpack.c.l.b16 %v1006
    %v1327 = vunpack.c.h.b16 %v1006
    %v1328 = vunpack.c.l.b16 %v1007
    %v1329 = vunpack.c.h.b16 %v1007
    %v1330 = vunpack.c.l.b16 %v1008
    %v1331 = vunpack.c.h.b16 %v1008
    %v1332 = vunpack.c.l.b16 %v1009
    %v1333 = vunpack.c.h.b16 %v1009
    %v1334 = vunpack.c.l.b16 %v1010
    %v1335 = vunpack.c.h.b16 %v1010
    %v1336 = vunpack.c.l.b16 %v1011
    %v1337 = vunpack.c.h.b16 %v1011
    %v1338 = vunpack.c.l.b16 %v1012
    %v1339 = vunpack.c.h.b16 %v1012
    %v1340 = vunpack.c.l.b16 %v1013
    %v1341 = vunpack.c.h.b16 %v1013
    %v1342 = vunpack.c.l.b16 %v1014
    %v1343 = vunpack.c.h.b16 %v1014
    %v1344 = vunpack.c.l.b16 %v1015
    %v1345 = vunpack.c.h.b16 %v1015
    %v1346 = vunpack.c.l.b16 %v1016
    %v1347 = vunpack.c.h.b16 %v1016
    %v1348 = vunpack.c.l.b16 %v1017
    %v1349 = vunpack.c.h.b16 %v1017
    %v1350 = vunpack.c.l.b16 %v1018
    %v1351 = vunpack.c.h.b16 %v1018
    %v1352 = vunpack.c.l.b16 %v1019
    %v1353 = vunpack.c.h.b16 %v1019
    %v1354 = vunpack.c.l.b16 %v1020
    %v1355 = vunpack.c.h.b16 %v1020
    %v1356 = vunpack.c.l.b16 %v1021
    %v1357 = vunpack.c.h.b16 %v1021
    %v1358 = vunpack.c.l.b16 %v1022
    %v1359 = vunpack.c.h.b16 %v1022
    %v1360 = vunpack.c.l.b16 %v1023
    %v1361 = vunpack.c.h.b16 %v1023
    %v1362 = vunpack.c.l.b16 %v1024
    %v1363 = vunpack.c.h.b16 %v1024
    %v1364 = vunpack.c.l.b16 %v1025
    %v1365 = vunpack.c.h.b16 %v1025
    %v1366 = vunpack.c.l.b16 %v1026
    %v1367 = vunpack.c.h.b16 %v1026
    %v1368 = vunpack.c.l.b16 %v1027
    %v1369 = vunpack.c.h.b16 %v1027
    %v1370 = vunpack.c.l.b16 %v1028
    %v1371 = vunpack.c.h.b16 %v1028
    %v1372 = vunpack.c.l.b16 %v1029
    %v1373 = vunpack.c.h.b16 %v1029
    %v1374 = vunpack.c.l.b16 %v1030
    %v1375 = vunpack.c.h.b16 %v1030
    %v1376 = vunpack.c.l.b16 %v1031
    %v1377 = vunpack.c.h.b16 %v1031
    %v1378 = vunpack.c.l.b16 %v1032
    %v1379 = vunpack.c.h.b16 %v1032
    %v1380 = vunpack.c.l.b16 %v1033
    %v1381 = vunpack.c.h.b16 %v1033
    %v1382 = vunpack.c.l.b16 %v1034
    %v1383 = vunpack.c.h.b16 %v1034
    %v1384 = vunpack.c.l.b16 %v1035
    %v1385 = vunpack.c.h.b16 %v1035
    %v1386 = vunpack.c.l.b16 %v1036
    %v1387 = vunpack.c.h.b16 %v1036
    %v1388 = vunpack.c.l.b16 %v1037
    %v1389 = vunpack.c.h.b16 %v1037
    %v1390 = vunpack.c.l.b16 %v1038
    %v1391 = vunpack.c.h.b16 %v1038
    %v1392 = vunpack.c.l.b16 %v1039
    %v1393 = vunpack.c.h.b16 %v1039
    %v1394 = vunpack.c.l.b16 %v1040
    %v1395 = vunpack.c.h.b16 %v1040
    %v1396 = vunpack.c.l.b16 %v1041
    %v1397 = vunpack.c.h.b16 %v1041
    %v1398 = vunpack.c.l.b16 %v1042
    %v1399 = vunpack.c.h.b16 %v1042
    %v1400 = vunpack.c.l.b16 %v1043
    %v1401 = vunpack.c.h.b16 %v1043
    %v1402 = vunpack.c.l.b16 %v1044
    %v1403 = vunpack.c.h.b16 %v1044
    %v1404 = vunpack.c.l.b16 %v1045
    %v1405 = vunpack.c.h.b16 %v1045
    %v1406 = vunpack.c.l.b16 %v1046
    %v1407 = vunpack.c.h.b16 %v1046
    %v1408 = vunpack.c.l.b16 %v1047
    %v1409 = vunpack.c.h.b16 %v1047
    %v1410 = vunpack.c.l.b16 %v1048
    %v1411 = vunpack.c.h.b16 %v1048
    %v1412 = vunpack.c.l.b16 %v1049
    %v1413 = vunpack.c.h.b16 %v1049
    %v1414 = vunpack.c.l.b16 %v1050
    %v1415 = vunpack.c.h.b16 %v1050
    %v1416 = vunpack.c.l.b16 %v1051
    %v1417 = vunpack.c.h.b16 %v1051
    %v1418 = vunpack.c.l.b16 %v1052
    %v1419 = vunpack.c.h.b16 %v1052
    %v1420 = vunpack.c.l.b16 %v1053
    %v1421 = vunpack.c.h.b16 %v1053
    %v1422 = vunpack.c.l.b16 %v1054
    %v1423 = vunpack.c.h.b16 %v1054
    %v1424 = vunpack.c.l.b16 %v1055
    %v1425 = vunpack.c.h.b16 %v1055
    %v1426 = vunpack.c.l.b16 %v1056
    %v1427 = vunpack.c.h.b16 %v1056
    %v1428 = vunpack.c.l.b16 %v1057
    %v1429 = vunpack.c.h.b16 %v1057
    %v1430 = vunpack.c.l.b16 %v1058
    %v1431 = vunpack.c.h.b16 %v1058
    %v1432 = vunpack.c.l.b16 %v1059
    %v1433 = vunpack.c.h.b16 %v1059
    %v1434 = vunpack.c.l.b16 %v1060
    %v1435 = vunpack.c.h.b16 %v1060
    %v1436 = vunpack.c.l.b16 %v1061
    %v1437 = vunpack.c.h.b16 %v1061
    %v1438 = vunpack.c.l.b16 %v1062
    %v1439 = vunpack.c.h.b16 %v1062
    %v1440 = vunpack.c.l.b16 %v1063
    %v1441 = vunpack.c.h.b16 %v1063
    %v1442 = vunpack.c.l.b16 %v1064
    %v1443 = vunpack.c.h.b16 %v1064
    %v1444 = vunpack.c.l.b16 %v1065
    %v1445 = vunpack.c.h.b16 %v1065
    %v1446 = vunpack.c.l.b16 %v1066
    %v1447 = vunpack.c.h.b16 %v1066
    %v1448 = vunpack.c.l.b16 %v1067
    %v1449 = vunpack.c.h.b16 %v1067
    %v1450 = vunpack.c.l.b16 %v1068
    %v1451 = vunpack.c.h.b16 %v1068
    %v1452 = vunpack.c.l.b16 %v1069
    %v1453 = vunpack.c.h.b16 %v1069
    %v1454 = vunpack.c.l.b16 %v1070
    %v1455 = vunpack.c.h.b16 %v1070
    %v1456 = vunpack.c.l.b16 %v1071
    %v1457 = vunpack.c.h.b16 %v1071
    %v1458 = vunpack.c.l.b16 %v1072
    %v1459 = vunpack.c.h.b16 %v1072
    %v1460 = vunpack.c.l.b16 %v1073
    %v1461 = vunpack.c.h.b16 %v1073
    %v1462 = vunpack.c.l.b16 %v1074
    %v1463 = vunpack.c.h.b16 %v1074
    %v1464 = vunpack.c.l.b16 %v1075
    %v1465 = vunpack.c.h.b16 %v1075
    %v1466 = vunpack.c.l.b16 %v1076
    %v1467 = vunpack.c.h.b16 %v1076
    %v1468 = vunpack.c.l.b16 %v1077
    %v1469 = vunpack.c.h.b16 %v1077
    %v1470 = vunpack.c.l.b16 %v1078
    %v1471 = vunpack.c.h.b16 %v1078
    %v1472 = vunpack.c.l.b16 %v1079
    %v1473 = vunpack.c.h.b16 %v1079
    %v1474 = vunpack.c.l.b16 %v1080
    %v1475 = vunpack.c.h.b16 %v1080
    %v1476 = vunpack.c.l.b16 %v1081
    %v1477 = vunpack.c.h.b16 %v1081
    %v1478 = vunpack.c.l.b16 %v1082
    %v1479 = vunpack.c.h.b16 %v1082
    %v1480 = vunpack.c.l.b16 %v1083
    %v1481 = vunpack.c.h.b16 %v1083
    %v1482 = vunpack.c.l.b16 %v1084
    %v1483 = vunpack.c.h.b16 %v1084
    %v1484 = vunpack.c.l.b16 %v1085
    %v1485 = vunpack.c.h.b16 %v1085
    %v1486 = vpack.c.b16 %v1232, %v1230
    %v1487 = vpack.c.b16 %v1233, %v1231
    %v1488 = vpack.c.b16 %v1236, %v1234
    %v1489 = vpack.c.b16 %v1237, %v1235
    %v1490 = vpack.c.b16 %v1240, %v1238
    %v1491 = vpack.c.b16 %v1241, %v1239
    %v1492 = vpack.c.b16 %v1244, %v1242
    %v1493 = vpack.c.b16 %v1245, %v1243
    %v1494 = vpack.c.b16 %v1248, %v1246
    %v1495 = vpack.c.b16 %v1249, %v1247
    %v1496 = vpack.c.b16 %v1252, %v1250
    %v1497 = vpack.c.b16 %v1253, %v1251
    %v1498 = vpack.c.b16 %v1256, %v1254
    %v1499 = vpack.c.b16 %v1257, %v1255
    %v1500 = vpack.c.b16 %v1260, %v1258
    %v1501 = vpack.c.b16 %v1261, %v1259
    %v1502 = vpack.c.b16 %v1264, %v1262
    %v1503 = vpack.c.b16 %v1265, %v1263
    %v1504 = vpack.c.b16 %v1268, %v1266
    %v1505 = vpack.c.b16 %v1269, %v1267
    %v1506 = vpack.c.b16 %v1272, %v1270
    %v1507 = vpack.c.b16 %v1273, %v1271
    %v1508 = vpack.c.b16 %v1276, %v1274
    %v1509 = vpack.c.b16 %v1277, %v1275
    %v1510 = vpack.c.b16 %v1280, %v1278
    %v1511 = vpack.c.b16 %v1281, %v1279
    %v1512 = vpack.c.b16 %v1284, %v1282
    %v1513 = vpack.c.b16 %v1285, %v1283
    %v1514 = vpack.c.b16 %v1288, %v1286
    %v1515 = vpack.c.b16 %v1289, %v1287
    %v1516 = vpack.c.b16 %v1292, %v1290
    %v1517 = vpack.c.b16 %v1293, %v1291
    %v1518 = vpack.c.b16 %v1296, %v1294
    %v1519 = vpack.c.b16 %v1297, %v1295
    %v1520 = vpack.c.b16 %v1300, %v1298
    %v1521 = vpack.c.b16 %v1301, %v1299
    %v1522 = vpack.c.b16 %v1304, %v1302
    %v1523 = vpack.c.b16 %v1305, %v1303
    %v1524 = vpack.c.b16 %v1308, %v1306
    %v1525 = vpack.c.b16 %v1309, %v1307
    %v1526 = vpack.c.b16 %v1312, %v1310
    %v1527 = vpack.c.b16 %v1313, %v1311
    %v1528 = vpack.c.b16 %v1316, %v1314
    %v1529 = vpack.c.b16 %v1317, %v1315
    %v1530 = vpack.c.b16 %v1320, %v1318
    %v1531 = vpack.c.b16 %v1321, %v1319
    %v1532 = vpack.c.b16 %v1324, %v1322
    %v1533 = vpack.c.b16 %v1325, %v1323
    %v1534 = vpack.c.b16 %v1328, %v1326
    %v1535 = vpack.c.b16 %v1329, %v1327
    %v1536 = vpack.c.b16 %v1332, %v1330
    %v1537 = vpack.c.b16 %v1333, %v1331
    %v1538 = vpack.c.b16 %v1336, %v1334
    %v1539 = vpack.c.b16 %v1337, %v1335
    %v1540 = vpack.c.b16 %v1340, %v1338
    %v1541 = vpack.c.b16 %v1341, %v1339
    %v1542 = vpack.c.b16 %v1344, %v1342
    %v1543 = vpack.c.b16 %v1345, %v1343
    %v1544 = vpack.c.b16 %v1348, %v1346
    %v1545 = vpack.c.b16 %v1349, %v1347
    %v1546 = vpack.c.b16 %v1352, %v1350
    %v1547 = vpack.c.b16 %v1353, %v1351
    %v1548 = vpack.c.b16 %v1356, %v1354
    %v1549 = vpack.c.b16 %v1357, %v1355
    %v1550 = vpack.c.b16 %v1360, %v1358
    %v1551 = vpack.c.b16 %v1361, %v1359
    %v1552 = vpack.c.b16 %v1364, %v1362
    %v1553 = vpack.c.b16 %v1365, %v1363
    %v1554 = vpack.c.b16 %v1368, %v1366
    %v1555 = vpack.c.b16 %v1369, %v1367
    %v1556 = vpack.c.b16 %v1372, %v1370
    %v1557 = vpack.c.b16 %v1373, %v1371
    %v1558 = vpack.c.b16 %v1376, %v1374
    %v1559 = vpack.c.b16 %v1377, %v1375
    %v1560 = vpack.c.b16 %v1380, %v1378
    %v1561 = vpack.c.b16 %v1381, %v1379
    %v1562 = vpack.c.b16 %v1384, %v1382
    %v1563 = vpack.c.b16 %v1385, %v1383
    %v1564 = vpack.c.b16 %v1388, %v1386
    %v1565 = vpack.c.b16 %v1389, %v1387
    %v1566 = vpack.c.b16 %v1392, %v1390
    %v1567 = vpack.c.b16 %v1393, %v1391
    %v1568 = vpack.c.b16 %v1396, %v1394
    %v1569 = vpack.c.b16 %v1397, %v1395
    %v1570 = vpack.c.b16 %v1400, %v1398
    %v1571 = vpack.c.b16 %v1401, %v1399
    %v1572 = vpack.c.b16 %v1404, %v1402
    %v1573 = vpack.c.b16 %v1405, %v1403
    %v1574 = vpack.c.b16 %v1408, %v1406
    %v1575 = vpack.c.b16 %v1409, %v1407
    %v1576 = vpack.c.b16 %v1412, %v1410
    %v1577 = vpack.c.b16 %v1413, %v1411
    %v1578 = vpack.c.b16 %v1416, %v1414
    %v1579 = vpack.c.b16 %v1417, %v1415
    %v1580 = vpack.c.b16 %v1420, %v1418
    %v1581 = vpack.c.b16 %v1421, %v1419
    %v1582 = vpack.c.b16 %v1424, %v1422
    %v1583 = vpack.c.b16 %v1425, %v1423
    %v1584 = vpack.c.b16 %v1428, %v1426
    %v1585 = vpack.c.b16 %v1429, %v1427
    %v1586 = vpack.c.b16 %v1432, %v1430
    %v1587 = vpack.c.b16 %v1433, %v1431
    %v1588 = vpack.c.b16 %v1436, %v1434
    %v1589 = vpack.c.b16 %v1437, %v1435
    %v1590 = vpack.c.b16 %v1440, %v1438
    %v1591 = vpack.c.b16 %v1441, %v1439
    %v1592 = vpack.c.b16 %v1444, %v1442
    %v1593 = vpack.c.b16 %v1445, %v1443
    %v1594 = vpack.c.b16 %v1448, %v1446
    %v1595 = vpack.c.b16 %v1449, %v1447
    %v1596 = vpack.c.b16 %v1452, %v1450
    %v1597 = vpack.c.b16 %v1453, %v1451
    %v1598 = vpack.c.b16 %v1456, %v1454
    %v1599 = vpack.c.b16 %v1457, %v1455
    %v1600 = vpack.c.b16 %v1460, %v1458
    %v1601 = vpack.c.b16 %v1461, %v1459
    %v1602 = vpack.c.b16 %v1464, %v1462
    %v1603 = vpack.c.b16 %v1465, %v1463
    %v1604 = vpack.c.b16 %v1468, %v1466
    %v1605 = vpack.c.b16 %v1469, %v1467
    %v1606 = vpack.c.b16 %v1472, %v1470
    %v1607 = vpack.c.b16 %v1473, %v1471
    %v1608 = vpack.c.b16 %v1476, %v1474
    %v1609 = vpack.c.b16 %v1477, %v1475
    %v1610 = vpack.c.b16 %v1480, %v1478
    %v1611 = vpack.c.b16 %v1481, %v1479
    %v1612 = vpack.c.b16 %v1484, %v1482
    %v1613 = vpack.c.b16 %v1485, %v1483
    %1742 = vmatpush.bf16.msra.mxu0 %v1093
    %1743 = vmatpush.bf16.msra.mxu0 %v1092
    %1744 = vmatpush.bf16.msra.mxu0 %v1091
    %1745 = vmatpush.bf16.msra.mxu0 %v1090
    %1746 = vmatpush.bf16.msra.mxu0 %v1089
    %1747 = vmatpush.bf16.msra.mxu0 %v1088
    %1748 = vmatpush.bf16.msra.mxu0 %v1087
    %1749 = vmatpush.bf16.msra.mxu0 %v1086
    %1750 = vmatmul.bf16.gmra.mxu0 %v1486
    %v1751 = vpop.f32.mrf.mxu0
    %v1752 = vadd.f32 0.0, %v1751
    %v1753 = vpop.f32.mrf.mxu0
    %v1754 = vadd.f32 0.0, %v1753
    %1755 = vmatmul.bf16.gmra.mxu0 %v1488
    %v1756 = vpop.f32.mrf.mxu0
    %v1757 = vadd.f32 0.0, %v1756
    %v1758 = vpop.f32.mrf.mxu0
    %v1759 = vadd.f32 0.0, %v1758
    %1760 = vmatmul.bf16.gmra.mxu0 %v1490
    %v1761 = vpop.f32.mrf.mxu0
    %v1762 = vadd.f32 0.0, %v1761
    %v1763 = vpop.f32.mrf.mxu0
    %v1764 = vadd.f32 0.0, %v1763
    %1765 = vmatmul.bf16.gmra.mxu0 %v1492
    %v1766 = vpop.f32.mrf.mxu0
    %v1767 = vadd.f32 0.0, %v1766
    %v1768 = vpop.f32.mrf.mxu0
    %v1769 = vadd.f32 0.0, %v1768
    %1770 = vmatmul.bf16.gmra.mxu0 %v1494
    %v1771 = vpop.f32.mrf.mxu0
    %v1772 = vadd.f32 0.0, %v1771
    %v1773 = vpop.f32.mrf.mxu0
    %v1774 = vadd.f32 0.0, %v1773
    %1775 = vmatmul.bf16.gmra.mxu0 %v1496
    %v1776 = vpop.f32.mrf.mxu0
    %v1777 = vadd.f32 0.0, %v1776
    %v1778 = vpop.f32.mrf.mxu0
    %v1779 = vadd.f32 0.0, %v1778
    %1780 = vmatmul.bf16.gmra.mxu0 %v1498
    %v1781 = vpop.f32.mrf.mxu0
    %v1782 = vadd.f32 0.0, %v1781
    %v1783 = vpop.f32.mrf.mxu0
    %v1784 = vadd.f32 0.0, %v1783
    %1785 = vmatmul.bf16.gmra.mxu0 %v1500
    %v1786 = vpop.f32.mrf.mxu0
    %v1787 = vadd.f32 0.0, %v1786
    %v1788 = vpop.f32.mrf.mxu0
    %v1789 = vadd.f32 0.0, %v1788
    %1790 = vmatmul.bf16.gmra.mxu0 %v1502
    %v1791 = vpop.f32.mrf.mxu0
    %v1792 = vadd.f32 0.0, %v1791
    %v1793 = vpop.f32.mrf.mxu0
    %v1794 = vadd.f32 0.0, %v1793
    %1795 = vmatmul.bf16.gmra.mxu0 %v1504
    %v1796 = vpop.f32.mrf.mxu0
    %v1797 = vadd.f32 0.0, %v1796
    %v1798 = vpop.f32.mrf.mxu0
    %v1799 = vadd.f32 0.0, %v1798
    %1800 = vmatmul.bf16.gmra.mxu0 %v1506
    %v1801 = vpop.f32.mrf.mxu0
    %v1802 = vadd.f32 0.0, %v1801
    %v1803 = vpop.f32.mrf.mxu0
    %v1804 = vadd.f32 0.0, %v1803
    %1805 = vmatmul.bf16.gmra.mxu0 %v1508
    %v1806 = vpop.f32.mrf.mxu0
    %v1807 = vadd.f32 0.0, %v1806
    %v1808 = vpop.f32.mrf.mxu0
    %v1809 = vadd.f32 0.0, %v1808
    %1810 = vmatmul.bf16.gmra.mxu0 %v1510
    %v1811 = vpop.f32.mrf.mxu0
    %v1812 = vadd.f32 0.0, %v1811
    %v1813 = vpop.f32.mrf.mxu0
    %v1814 = vadd.f32 0.0, %v1813
    %1815 = vmatmul.bf16.gmra.mxu0 %v1512
    %v1816 = vpop.f32.mrf.mxu0
    %v1817 = vadd.f32 0.0, %v1816
    %v1818 = vpop.f32.mrf.mxu0
    %v1819 = vadd.f32 0.0, %v1818
    %1820 = vmatmul.bf16.gmra.mxu0 %v1514
    %v1821 = vpop.f32.mrf.mxu0
    %v1822 = vadd.f32 0.0, %v1821
    %v1823 = vpop.f32.mrf.mxu0
    %v1824 = vadd.f32 0.0, %v1823
    %1825 = vmatmul.bf16.gmra.mxu0 %v1516
    %v1826 = vpop.f32.mrf.mxu0
    %v1827 = vadd.f32 0.0, %v1826
    %v1828 = vpop.f32.mrf.mxu0
    %v1829 = vadd.f32 0.0, %v1828
    %1830 = vmatmul.bf16.gmra.mxu0 %v1518
    %v1831 = vpop.f32.mrf.mxu0
    %v1832 = vadd.f32 0.0, %v1831
    %v1833 = vpop.f32.mrf.mxu0
    %v1834 = vadd.f32 0.0, %v1833
    %1835 = vmatmul.bf16.gmra.mxu0 %v1520
    %v1836 = vpop.f32.mrf.mxu0
    %v1837 = vadd.f32 0.0, %v1836
    %v1838 = vpop.f32.mrf.mxu0
    %v1839 = vadd.f32 0.0, %v1838
    %1840 = vmatmul.bf16.gmra.mxu0 %v1522
    %v1841 = vpop.f32.mrf.mxu0
    %v1842 = vadd.f32 0.0, %v1841
    %v1843 = vpop.f32.mrf.mxu0
    %v1844 = vadd.f32 0.0, %v1843
    %1845 = vmatmul.bf16.gmra.mxu0 %v1524
    %v1846 = vpop.f32.mrf.mxu0
    %v1847 = vadd.f32 0.0, %v1846
    %v1848 = vpop.f32.mrf.mxu0
    %v1849 = vadd.f32 0.0, %v1848
    %1850 = vmatmul.bf16.gmra.mxu0 %v1526
    %v1851 = vpop.f32.mrf.mxu0
    %v1852 = vadd.f32 0.0, %v1851
    %v1853 = vpop.f32.mrf.mxu0
    %v1854 = vadd.f32 0.0, %v1853
    %1855 = vmatmul.bf16.gmra.mxu0 %v1528
    %v1856 = vpop.f32.mrf.mxu0
    %v1857 = vadd.f32 0.0, %v1856
    %v1858 = vpop.f32.mrf.mxu0
    %v1859 = vadd.f32 0.0, %v1858
    %1860 = vmatmul.bf16.gmra.mxu0 %v1530
    %v1861 = vpop.f32.mrf.mxu0
    %v1862 = vadd.f32 0.0, %v1861
    %v1863 = vpop.f32.mrf.mxu0
    %v1864 = vadd.f32 0.0, %v1863
    %1865 = vmatmul.bf16.gmra.mxu0 %v1532
    %v1866 = vpop.f32.mrf.mxu0
    %v1867 = vadd.f32 0.0, %v1866
    %v1868 = vpop.f32.mrf.mxu0
    %v1869 = vadd.f32 0.0, %v1868
    %1870 = vmatmul.bf16.gmra.mxu0 %v1534
    %v1871 = vpop.f32.mrf.mxu0
    %v1872 = vadd.f32 0.0, %v1871
    %v1873 = vpop.f32.mrf.mxu0
    %v1874 = vadd.f32 0.0, %v1873
    %1875 = vmatmul.bf16.gmra.mxu0 %v1536
    %v1876 = vpop.f32.mrf.mxu0
    %v1877 = vadd.f32 0.0, %v1876
    %v1878 = vpop.f32.mrf.mxu0
    %v1879 = vadd.f32 0.0, %v1878
    %1880 = vmatmul.bf16.gmra.mxu0 %v1538
    %v1881 = vpop.f32.mrf.mxu0
    %v1882 = vadd.f32 0.0, %v1881
    %v1883 = vpop.f32.mrf.mxu0
    %v1884 = vadd.f32 0.0, %v1883
    %1885 = vmatmul.bf16.gmra.mxu0 %v1540
    %v1886 = vpop.f32.mrf.mxu0
    %v1887 = vadd.f32 0.0, %v1886
    %v1888 = vpop.f32.mrf.mxu0
    %v1889 = vadd.f32 0.0, %v1888
    %1890 = vmatmul.bf16.gmra.mxu0 %v1542
    %v1891 = vpop.f32.mrf.mxu0
    %v1892 = vadd.f32 0.0, %v1891
    %v1893 = vpop.f32.mrf.mxu0
    %v1894 = vadd.f32 0.0, %v1893
    %1895 = vmatmul.bf16.gmra.mxu0 %v1544
    %v1896 = vpop.f32.mrf.mxu0
    %v1897 = vadd.f32 0.0, %v1896
    %v1898 = vpop.f32.mrf.mxu0
    %v1899 = vadd.f32 0.0, %v1898
    %1900 = vmatmul.bf16.gmra.mxu0 %v1546
    %v1901 = vpop.f32.mrf.mxu0
    %v1902 = vadd.f32 0.0, %v1901
    %v1903 = vpop.f32.mrf.mxu0
    %v1904 = vadd.f32 0.0, %v1903
    %1905 = vmatmul.bf16.gmra.mxu0 %v1548
    %v1906 = vpop.f32.mrf.mxu0
    %v1907 = vadd.f32 0.0, %v1906
    %v1908 = vpop.f32.mrf.mxu0
    %v1909 = vadd.f32 0.0, %v1908
    %1910 = vmatmul.bf16.gmra.mxu0 %v1550
    %v1911 = vpop.f32.mrf.mxu0
    %v1912 = vadd.f32 0.0, %v1911
    %v1913 = vpop.f32.mrf.mxu0
    %v1914 = vadd.f32 0.0, %v1913
    %1915 = vmatmul.bf16.gmra.mxu0 %v1552
    %v1916 = vpop.f32.mrf.mxu0
    %v1917 = vadd.f32 0.0, %v1916
    %v1918 = vpop.f32.mrf.mxu0
    %v1919 = vadd.f32 0.0, %v1918
    %1920 = vmatmul.bf16.gmra.mxu0 %v1554
    %v1921 = vpop.f32.mrf.mxu0
    %v1922 = vadd.f32 0.0, %v1921
    %v1923 = vpop.f32.mrf.mxu0
    %v1924 = vadd.f32 0.0, %v1923
    %1925 = vmatmul.bf16.gmra.mxu0 %v1556
    %v1926 = vpop.f32.mrf.mxu0
    %v1927 = vadd.f32 0.0, %v1926
    %v1928 = vpop.f32.mrf.mxu0
    %v1929 = vadd.f32 0.0, %v1928
    %1930 = vmatmul.bf16.gmra.mxu0 %v1558
    %v1931 = vpop.f32.mrf.mxu0
    %v1932 = vadd.f32 0.0, %v1931
    %v1933 = vpop.f32.mrf.mxu0
    %v1934 = vadd.f32 0.0, %v1933
    %1935 = vmatmul.bf16.gmra.mxu0 %v1560
    %v1936 = vpop.f32.mrf.mxu0
    %v1937 = vadd.f32 0.0, %v1936
    %v1938 = vpop.f32.mrf.mxu0
    %v1939 = vadd.f32 0.0, %v1938
    %1940 = vmatmul.bf16.gmra.mxu0 %v1562
    %v1941 = vpop.f32.mrf.mxu0
    %v1942 = vadd.f32 0.0, %v1941
    %v1943 = vpop.f32.mrf.mxu0
    %v1944 = vadd.f32 0.0, %v1943
    %1945 = vmatmul.bf16.gmra.mxu0 %v1564
    %v1946 = vpop.f32.mrf.mxu0
    %v1947 = vadd.f32 0.0, %v1946
    %v1948 = vpop.f32.mrf.mxu0
    %v1949 = vadd.f32 0.0, %v1948
    %1950 = vmatmul.bf16.gmra.mxu0 %v1566
    %v1951 = vpop.f32.mrf.mxu0
    %v1952 = vadd.f32 0.0, %v1951
    %v1953 = vpop.f32.mrf.mxu0
    %v1954 = vadd.f32 0.0, %v1953
    %1955 = vmatmul.bf16.gmra.mxu0 %v1568
    %v1956 = vpop.f32.mrf.mxu0
    %v1957 = vadd.f32 0.0, %v1956
    %v1958 = vpop.f32.mrf.mxu0
    %v1959 = vadd.f32 0.0, %v1958
    %1960 = vmatmul.bf16.gmra.mxu0 %v1570
    %v1961 = vpop.f32.mrf.mxu0
    %v1962 = vadd.f32 0.0, %v1961
    %v1963 = vpop.f32.mrf.mxu0
    %v1964 = vadd.f32 0.0, %v1963
    %1965 = vmatmul.bf16.gmra.mxu0 %v1572
    %v1966 = vpop.f32.mrf.mxu0
    %v1967 = vadd.f32 0.0, %v1966
    %v1968 = vpop.f32.mrf.mxu0
    %v1969 = vadd.f32 0.0, %v1968
    %1970 = vmatmul.bf16.gmra.mxu0 %v1574
    %v1971 = vpop.f32.mrf.mxu0
    %v1972 = vadd.f32 0.0, %v1971
    %v1973 = vpop.f32.mrf.mxu0
    %v1974 = vadd.f32 0.0, %v1973
    %1975 = vmatmul.bf16.gmra.mxu0 %v1576
    %v1976 = vpop.f32.mrf.mxu0
    %v1977 = vadd.f32 0.0, %v1976
    %v1978 = vpop.f32.mrf.mxu0
    %v1979 = vadd.f32 0.0, %v1978
    %1980 = vmatmul.bf16.gmra.mxu0 %v1578
    %v1981 = vpop.f32.mrf.mxu0
    %v1982 = vadd.f32 0.0, %v1981
    %v1983 = vpop.f32.mrf.mxu0
    %v1984 = vadd.f32 0.0, %v1983
    %1985 = vmatmul.bf16.gmra.mxu0 %v1580
    %v1986 = vpop.f32.mrf.mxu0
    %v1987 = vadd.f32 0.0, %v1986
    %v1988 = vpop.f32.mrf.mxu0
    %v1989 = vadd.f32 0.0, %v1988
    %1990 = vmatmul.bf16.gmra.mxu0 %v1582
    %v1991 = vpop.f32.mrf.mxu0
    %v1992 = vadd.f32 0.0, %v1991
    %v1993 = vpop.f32.mrf.mxu0
    %v1994 = vadd.f32 0.0, %v1993
    %1995 = vmatmul.bf16.gmra.mxu0 %v1584
    %v1996 = vpop.f32.mrf.mxu0
    %v1997 = vadd.f32 0.0, %v1996
    %v1998 = vpop.f32.mrf.mxu0
    %v1999 = vadd.f32 0.0, %v1998
    %2000 = vmatmul.bf16.gmra.mxu0 %v1586
    %v2001 = vpop.f32.mrf.mxu0
    %v2002 = vadd.f32 0.0, %v2001
    %v2003 = vpop.f32.mrf.mxu0
    %v2004 = vadd.f32 0.0, %v2003
    %2005 = vmatmul.bf16.gmra.mxu0 %v1588
    %v2006 = vpop.f32.mrf.mxu0
    %v2007 = vadd.f32 0.0, %v2006
    %v2008 = vpop.f32.mrf.mxu0
    %v2009 = vadd.f32 0.0, %v2008
    %2010 = vmatmul.bf16.gmra.mxu0 %v1590
    %v2011 = vpop.f32.mrf.mxu0
    %v2012 = vadd.f32 0.0, %v2011
    %v2013 = vpop.f32.mrf.mxu0
    %v2014 = vadd.f32 0.0, %v2013
    %2015 = vmatmul.bf16.gmra.mxu0 %v1592
    %v2016 = vpop.f32.mrf.mxu0
    %v2017 = vadd.f32 0.0, %v2016
    %v2018 = vpop.f32.mrf.mxu0
    %v2019 = vadd.f32 0.0, %v2018
    %2020 = vmatmul.bf16.gmra.mxu0 %v1594
    %v2021 = vpop.f32.mrf.mxu0
    %v2022 = vadd.f32 0.0, %v2021
    %v2023 = vpop.f32.mrf.mxu0
    %v2024 = vadd.f32 0.0, %v2023
    %2025 = vmatmul.bf16.gmra.mxu0 %v1596
    %v2026 = vpop.f32.mrf.mxu0
    %v2027 = vadd.f32 0.0, %v2026
    %v2028 = vpop.f32.mrf.mxu0
    %v2029 = vadd.f32 0.0, %v2028
    %2030 = vmatmul.bf16.gmra.mxu0 %v1598
    %v2031 = vpop.f32.mrf.mxu0
    %v2032 = vadd.f32 0.0, %v2031
    %v2033 = vpop.f32.mrf.mxu0
    %v2034 = vadd.f32 0.0, %v2033
    %2035 = vmatmul.bf16.gmra.mxu0 %v1600
    %v2036 = vpop.f32.mrf.mxu0
    %v2037 = vadd.f32 0.0, %v2036
    %v2038 = vpop.f32.mrf.mxu0
    %v2039 = vadd.f32 0.0, %v2038
    %2040 = vmatmul.bf16.gmra.mxu0 %v1602
    %v2041 = vpop.f32.mrf.mxu0
    %v2042 = vadd.f32 0.0, %v2041
    %v2043 = vpop.f32.mrf.mxu0
    %v2044 = vadd.f32 0.0, %v2043
    %2045 = vmatmul.bf16.gmra.mxu0 %v1604
    %v2046 = vpop.f32.mrf.mxu0
    %v2047 = vadd.f32 0.0, %v2046
    %v2048 = vpop.f32.mrf.mxu0
    %v2049 = vadd.f32 0.0, %v2048
    %2050 = vmatmul.bf16.gmra.mxu0 %v1606
    %v2051 = vpop.f32.mrf.mxu0
    %v2052 = vadd.f32 0.0, %v2051
    %v2053 = vpop.f32.mrf.mxu0
    %v2054 = vadd.f32 0.0, %v2053
    %2055 = vmatmul.bf16.gmra.mxu0 %v1608
    %v2056 = vpop.f32.mrf.mxu0
    %v2057 = vadd.f32 0.0, %v2056
    %v2058 = vpop.f32.mrf.mxu0
    %v2059 = vadd.f32 0.0, %v2058
    %2060 = vmatmul.bf16.gmra.mxu0 %v1610
    %v2061 = vpop.f32.mrf.mxu0
    %v2062 = vadd.f32 0.0, %v2061
    %v2063 = vpop.f32.mrf.mxu0
    %v2064 = vadd.f32 0.0, %v2063
    %2065 = vmatmul.bf16.gmra.mxu0 %v1612
    %v2066 = vpop.f32.mrf.mxu0
    %v2067 = vadd.f32 0.0, %v2066
    %v2068 = vpop.f32.mrf.mxu0
    %v2069 = vadd.f32 0.0, %v2068
    %2070 = vdwg.mxu0
    %2071 = vmatpush.bf16.msra.mxu0 %v1101
    %2072 = vmatpush.bf16.msra.mxu0 %v1100
    %2073 = vmatpush.bf16.msra.mxu0 %v1099
    %2074 = vmatpush.bf16.msra.mxu0 %v1098
    %2075 = vmatpush.bf16.msra.mxu0 %v1097
    %2076 = vmatpush.bf16.msra.mxu0 %v1096
    %2077 = vmatpush.bf16.msra.mxu0 %v1095
    %2078 = vmatpush.bf16.msra.mxu0 %v1094
    %2079 = vmatmul.bf16.gmra.mxu0 %v1487
    %v2080 = vpop.f32.mrf.mxu0
    %v2081 = vadd.f32 %v1752, %v2080
    %v2082 = vpop.f32.mrf.mxu0
    %v2083 = vadd.f32 %v1754, %v2082
    %2084 = vmatmul.bf16.gmra.mxu0 %v1489
    %v2085 = vpop.f32.mrf.mxu0
    %v2086 = vadd.f32 %v1757, %v2085
    %v2087 = vpop.f32.mrf.mxu0
    %v2088 = vadd.f32 %v1759, %v2087
    %2089 = vmatmul.bf16.gmra.mxu0 %v1491
    %v2090 = vpop.f32.mrf.mxu0
    %v2091 = vadd.f32 %v1762, %v2090
    %v2092 = vpop.f32.mrf.mxu0
    %v2093 = vadd.f32 %v1764, %v2092
    %2094 = vmatmul.bf16.gmra.mxu0 %v1493
    %v2095 = vpop.f32.mrf.mxu0
    %v2096 = vadd.f32 %v1767, %v2095
    %v2097 = vpop.f32.mrf.mxu0
    %v2098 = vadd.f32 %v1769, %v2097
    %2099 = vmatmul.bf16.gmra.mxu0 %v1495
    %v2100 = vpop.f32.mrf.mxu0
    %v2101 = vadd.f32 %v1772, %v2100
    %v2102 = vpop.f32.mrf.mxu0
    %v2103 = vadd.f32 %v1774, %v2102
    %2104 = vmatmul.bf16.gmra.mxu0 %v1497
    %v2105 = vpop.f32.mrf.mxu0
    %v2106 = vadd.f32 %v1777, %v2105
    %v2107 = vpop.f32.mrf.mxu0
    %v2108 = vadd.f32 %v1779, %v2107
    %2109 = vmatmul.bf16.gmra.mxu0 %v1499
    %v2110 = vpop.f32.mrf.mxu0
    %v2111 = vadd.f32 %v1782, %v2110
    %v2112 = vpop.f32.mrf.mxu0
    %v2113 = vadd.f32 %v1784, %v2112
    %2114 = vmatmul.bf16.gmra.mxu0 %v1501
    %v2115 = vpop.f32.mrf.mxu0
    %v2116 = vadd.f32 %v1787, %v2115
    %v2117 = vpop.f32.mrf.mxu0
    %v2118 = vadd.f32 %v1789, %v2117
    %2119 = vmatmul.bf16.gmra.mxu0 %v1503
    %v2120 = vpop.f32.mrf.mxu0
    %v2121 = vadd.f32 %v1792, %v2120
    %v2122 = vpop.f32.mrf.mxu0
    %v2123 = vadd.f32 %v1794, %v2122
    %2124 = vmatmul.bf16.gmra.mxu0 %v1505
    %v2125 = vpop.f32.mrf.mxu0
    %v2126 = vadd.f32 %v1797, %v2125
    %v2127 = vpop.f32.mrf.mxu0
    %v2128 = vadd.f32 %v1799, %v2127
    %2129 = vmatmul.bf16.gmra.mxu0 %v1507
    %v2130 = vpop.f32.mrf.mxu0
    %v2131 = vadd.f32 %v1802, %v2130
    %v2132 = vpop.f32.mrf.mxu0
    %v2133 = vadd.f32 %v1804, %v2132
    %2134 = vmatmul.bf16.gmra.mxu0 %v1509
    %v2135 = vpop.f32.mrf.mxu0
    %v2136 = vadd.f32 %v1807, %v2135
    %v2137 = vpop.f32.mrf.mxu0
    %v2138 = vadd.f32 %v1809, %v2137
    %2139 = vmatmul.bf16.gmra.mxu0 %v1511
    %v2140 = vpop.f32.mrf.mxu0
    %v2141 = vadd.f32 %v1812, %v2140
    %v2142 = vpop.f32.mrf.mxu0
    %v2143 = vadd.f32 %v1814, %v2142
    %2144 = vmatmul.bf16.gmra.mxu0 %v1513
    %v2145 = vpop.f32.mrf.mxu0
    %v2146 = vadd.f32 %v1817, %v2145
    %v2147 = vpop.f32.mrf.mxu0
    %v2148 = vadd.f32 %v1819, %v2147
    %2149 = vmatmul.bf16.gmra.mxu0 %v1515
    %v2150 = vpop.f32.mrf.mxu0
    %v2151 = vadd.f32 %v1822, %v2150
    %v2152 = vpop.f32.mrf.mxu0
    %v2153 = vadd.f32 %v1824, %v2152
    %2154 = vmatmul.bf16.gmra.mxu0 %v1517
    %v2155 = vpop.f32.mrf.mxu0
    %v2156 = vadd.f32 %v1827, %v2155
    %v2157 = vpop.f32.mrf.mxu0
    %v2158 = vadd.f32 %v1829, %v2157
    %2159 = vmatmul.bf16.gmra.mxu0 %v1519
    %v2160 = vpop.f32.mrf.mxu0
    %v2161 = vadd.f32 %v1832, %v2160
    %v2162 = vpop.f32.mrf.mxu0
    %v2163 = vadd.f32 %v1834, %v2162
    %2164 = vmatmul.bf16.gmra.mxu0 %v1521
    %v2165 = vpop.f32.mrf.mxu0
    %v2166 = vadd.f32 %v1837, %v2165
    %v2167 = vpop.f32.mrf.mxu0
    %v2168 = vadd.f32 %v1839, %v2167
    %2169 = vmatmul.bf16.gmra.mxu0 %v1523
    %v2170 = vpop.f32.mrf.mxu0
    %v2171 = vadd.f32 %v1842, %v2170
    %v2172 = vpop.f32.mrf.mxu0
    %v2173 = vadd.f32 %v1844, %v2172
    %2174 = vmatmul.bf16.gmra.mxu0 %v1525
    %v2175 = vpop.f32.mrf.mxu0
    %v2176 = vadd.f32 %v1847, %v2175
    %v2177 = vpop.f32.mrf.mxu0
    %v2178 = vadd.f32 %v1849, %v2177
    %2179 = vmatmul.bf16.gmra.mxu0 %v1527
    %v2180 = vpop.f32.mrf.mxu0
    %v2181 = vadd.f32 %v1852, %v2180
    %v2182 = vpop.f32.mrf.mxu0
    %v2183 = vadd.f32 %v1854, %v2182
    %2184 = vmatmul.bf16.gmra.mxu0 %v1529
    %v2185 = vpop.f32.mrf.mxu0
    %v2186 = vadd.f32 %v1857, %v2185
    %v2187 = vpop.f32.mrf.mxu0
    %v2188 = vadd.f32 %v1859, %v2187
    %2189 = vmatmul.bf16.gmra.mxu0 %v1531
    %v2190 = vpop.f32.mrf.mxu0
    %v2191 = vadd.f32 %v1862, %v2190
    %v2192 = vpop.f32.mrf.mxu0
    %v2193 = vadd.f32 %v1864, %v2192
    %2194 = vmatmul.bf16.gmra.mxu0 %v1533
    %v2195 = vpop.f32.mrf.mxu0
    %v2196 = vadd.f32 %v1867, %v2195
    %v2197 = vpop.f32.mrf.mxu0
    %v2198 = vadd.f32 %v1869, %v2197
    %2199 = vmatmul.bf16.gmra.mxu0 %v1535
    %v2200 = vpop.f32.mrf.mxu0
    %v2201 = vadd.f32 %v1872, %v2200
    %v2202 = vpop.f32.mrf.mxu0
    %v2203 = vadd.f32 %v1874, %v2202
    %2204 = vmatmul.bf16.gmra.mxu0 %v1537
    %v2205 = vpop.f32.mrf.mxu0
    %v2206 = vadd.f32 %v1877, %v2205
    %v2207 = vpop.f32.mrf.mxu0
    %v2208 = vadd.f32 %v1879, %v2207
    %2209 = vmatmul.bf16.gmra.mxu0 %v1539
    %v2210 = vpop.f32.mrf.mxu0
    %v2211 = vadd.f32 %v1882, %v2210
    %v2212 = vpop.f32.mrf.mxu0
    %v2213 = vadd.f32 %v1884, %v2212
    %2214 = vmatmul.bf16.gmra.mxu0 %v1541
    %v2215 = vpop.f32.mrf.mxu0
    %v2216 = vadd.f32 %v1887, %v2215
    %v2217 = vpop.f32.mrf.mxu0
    %v2218 = vadd.f32 %v1889, %v2217
    %2219 = vmatmul.bf16.gmra.mxu0 %v1543
    %v2220 = vpop.f32.mrf.mxu0
    %v2221 = vadd.f32 %v1892, %v2220
    %v2222 = vpop.f32.mrf.mxu0
    %v2223 = vadd.f32 %v1894, %v2222
    %2224 = vmatmul.bf16.gmra.mxu0 %v1545
    %v2225 = vpop.f32.mrf.mxu0
    %v2226 = vadd.f32 %v1897, %v2225
    %v2227 = vpop.f32.mrf.mxu0
    %v2228 = vadd.f32 %v1899, %v2227
    %2229 = vmatmul.bf16.gmra.mxu0 %v1547
    %v2230 = vpop.f32.mrf.mxu0
    %v2231 = vadd.f32 %v1902, %v2230
    %v2232 = vpop.f32.mrf.mxu0
    %v2233 = vadd.f32 %v1904, %v2232
    %2234 = vmatmul.bf16.gmra.mxu0 %v1549
    %v2235 = vpop.f32.mrf.mxu0
    %v2236 = vadd.f32 %v1907, %v2235
    %v2237 = vpop.f32.mrf.mxu0
    %v2238 = vadd.f32 %v1909, %v2237
    %2239 = vmatmul.bf16.gmra.mxu0 %v1551
    %v2240 = vpop.f32.mrf.mxu0
    %v2241 = vadd.f32 %v1912, %v2240
    %v2242 = vpop.f32.mrf.mxu0
    %v2243 = vadd.f32 %v1914, %v2242
    %2244 = vmatmul.bf16.gmra.mxu0 %v1553
    %v2245 = vpop.f32.mrf.mxu0
    %v2246 = vadd.f32 %v1917, %v2245
    %v2247 = vpop.f32.mrf.mxu0
    %v2248 = vadd.f32 %v1919, %v2247
    %2249 = vmatmul.bf16.gmra.mxu0 %v1555
    %v2250 = vpop.f32.mrf.mxu0
    %v2251 = vadd.f32 %v1922, %v2250
    %v2252 = vpop.f32.mrf.mxu0
    %v2253 = vadd.f32 %v1924, %v2252
    %2254 = vmatmul.bf16.gmra.mxu0 %v1557
    %v2255 = vpop.f32.mrf.mxu0
    %v2256 = vadd.f32 %v1927, %v2255
    %v2257 = vpop.f32.mrf.mxu0
    %v2258 = vadd.f32 %v1929, %v2257
    %2259 = vmatmul.bf16.gmra.mxu0 %v1559
    %v2260 = vpop.f32.mrf.mxu0
    %v2261 = vadd.f32 %v1932, %v2260
    %v2262 = vpop.f32.mrf.mxu0
    %v2263 = vadd.f32 %v1934, %v2262
    %2264 = vmatmul.bf16.gmra.mxu0 %v1561
    %v2265 = vpop.f32.mrf.mxu0
    %v2266 = vadd.f32 %v1937, %v2265
    %v2267 = vpop.f32.mrf.mxu0
    %v2268 = vadd.f32 %v1939, %v2267
    %2269 = vmatmul.bf16.gmra.mxu0 %v1563
    %v2270 = vpop.f32.mrf.mxu0
    %v2271 = vadd.f32 %v1942, %v2270
    %v2272 = vpop.f32.mrf.mxu0
    %v2273 = vadd.f32 %v1944, %v2272
    %2274 = vmatmul.bf16.gmra.mxu0 %v1565
    %v2275 = vpop.f32.mrf.mxu0
    %v2276 = vadd.f32 %v1947, %v2275
    %v2277 = vpop.f32.mrf.mxu0
    %v2278 = vadd.f32 %v1949, %v2277
    %2279 = vmatmul.bf16.gmra.mxu0 %v1567
    %v2280 = vpop.f32.mrf.mxu0
    %v2281 = vadd.f32 %v1952, %v2280
    %v2282 = vpop.f32.mrf.mxu0
    %v2283 = vadd.f32 %v1954, %v2282
    %2284 = vmatmul.bf16.gmra.mxu0 %v1569
    %v2285 = vpop.f32.mrf.mxu0
    %v2286 = vadd.f32 %v1957, %v2285
    %v2287 = vpop.f32.mrf.mxu0
    %v2288 = vadd.f32 %v1959, %v2287
    %2289 = vmatmul.bf16.gmra.mxu0 %v1571
    %v2290 = vpop.f32.mrf.mxu0
    %v2291 = vadd.f32 %v1962, %v2290
    %v2292 = vpop.f32.mrf.mxu0
    %v2293 = vadd.f32 %v1964, %v2292
    %2294 = vmatmul.bf16.gmra.mxu0 %v1573
    %v2295 = vpop.f32.mrf.mxu0
    %v2296 = vadd.f32 %v1967, %v2295
    %v2297 = vpop.f32.mrf.mxu0
    %v2298 = vadd.f32 %v1969, %v2297
    %2299 = vmatmul.bf16.gmra.mxu0 %v1575
    %v2300 = vpop.f32.mrf.mxu0
    %v2301 = vadd.f32 %v1972, %v2300
    %v2302 = vpop.f32.mrf.mxu0
    %v2303 = vadd.f32 %v1974, %v2302
    %2304 = vmatmul.bf16.gmra.mxu0 %v1577
    %v2305 = vpop.f32.mrf.mxu0
    %v2306 = vadd.f32 %v1977, %v2305
    %v2307 = vpop.f32.mrf.mxu0
    %v2308 = vadd.f32 %v1979, %v2307
    %2309 = vmatmul.bf16.gmra.mxu0 %v1579
    %v2310 = vpop.f32.mrf.mxu0
    %v2311 = vadd.f32 %v1982, %v2310
    %v2312 = vpop.f32.mrf.mxu0
    %v2313 = vadd.f32 %v1984, %v2312
    %2314 = vmatmul.bf16.gmra.mxu0 %v1581
    %v2315 = vpop.f32.mrf.mxu0
    %v2316 = vadd.f32 %v1987, %v2315
    %v2317 = vpop.f32.mrf.mxu0
    %v2318 = vadd.f32 %v1989, %v2317
    %2319 = vmatmul.bf16.gmra.mxu0 %v1583
    %v2320 = vpop.f32.mrf.mxu0
    %v2321 = vadd.f32 %v1992, %v2320
    %v2322 = vpop.f32.mrf.mxu0
    %v2323 = vadd.f32 %v1994, %v2322
    %2324 = vmatmul.bf16.gmra.mxu0 %v1585
    %v2325 = vpop.f32.mrf.mxu0
    %v2326 = vadd.f32 %v1997, %v2325
    %v2327 = vpop.f32.mrf.mxu0
    %v2328 = vadd.f32 %v1999, %v2327
    %2329 = vmatmul.bf16.gmra.mxu0 %v1587
    %v2330 = vpop.f32.mrf.mxu0
    %v2331 = vadd.f32 %v2002, %v2330
    %v2332 = vpop.f32.mrf.mxu0
    %v2333 = vadd.f32 %v2004, %v2332
    %2334 = vmatmul.bf16.gmra.mxu0 %v1589
    %v2335 = vpop.f32.mrf.mxu0
    %v2336 = vadd.f32 %v2007, %v2335
    %v2337 = vpop.f32.mrf.mxu0
    %v2338 = vadd.f32 %v2009, %v2337
    %2339 = vmatmul.bf16.gmra.mxu0 %v1591
    %v2340 = vpop.f32.mrf.mxu0
    %v2341 = vadd.f32 %v2012, %v2340
    %v2342 = vpop.f32.mrf.mxu0
    %v2343 = vadd.f32 %v2014, %v2342
    %2344 = vmatmul.bf16.gmra.mxu0 %v1593
    %v2345 = vpop.f32.mrf.mxu0
    %v2346 = vadd.f32 %v2017, %v2345
    %v2347 = vpop.f32.mrf.mxu0
    %v2348 = vadd.f32 %v2019, %v2347
    %2349 = vmatmul.bf16.gmra.mxu0 %v1595
    %v2350 = vpop.f32.mrf.mxu0
    %v2351 = vadd.f32 %v2022, %v2350
    %v2352 = vpop.f32.mrf.mxu0
    %v2353 = vadd.f32 %v2024, %v2352
    %2354 = vmatmul.bf16.gmra.mxu0 %v1597
    %v2355 = vpop.f32.mrf.mxu0
    %v2356 = vadd.f32 %v2027, %v2355
    %v2357 = vpop.f32.mrf.mxu0
    %v2358 = vadd.f32 %v2029, %v2357
    %2359 = vmatmul.bf16.gmra.mxu0 %v1599
    %v2360 = vpop.f32.mrf.mxu0
    %v2361 = vadd.f32 %v2032, %v2360
    %v2362 = vpop.f32.mrf.mxu0
    %v2363 = vadd.f32 %v2034, %v2362
    %2364 = vmatmul.bf16.gmra.mxu0 %v1601
    %v2365 = vpop.f32.mrf.mxu0
    %v2366 = vadd.f32 %v2037, %v2365
    %v2367 = vpop.f32.mrf.mxu0
    %v2368 = vadd.f32 %v2039, %v2367
    %2369 = vmatmul.bf16.gmra.mxu0 %v1603
    %v2370 = vpop.f32.mrf.mxu0
    %v2371 = vadd.f32 %v2042, %v2370
    %v2372 = vpop.f32.mrf.mxu0
    %v2373 = vadd.f32 %v2044, %v2372
    %2374 = vmatmul.bf16.gmra.mxu0 %v1605
    %v2375 = vpop.f32.mrf.mxu0
    %v2376 = vadd.f32 %v2047, %v2375
    %v2377 = vpop.f32.mrf.mxu0
    %v2378 = vadd.f32 %v2049, %v2377
    %2379 = vmatmul.bf16.gmra.mxu0 %v1607
    %v2380 = vpop.f32.mrf.mxu0
    %v2381 = vadd.f32 %v2052, %v2380
    %v2382 = vpop.f32.mrf.mxu0
    %v2383 = vadd.f32 %v2054, %v2382
    %2384 = vmatmul.bf16.gmra.mxu0 %v1609
    %v2385 = vpop.f32.mrf.mxu0
    %v2386 = vadd.f32 %v2057, %v2385
    %v2387 = vpop.f32.mrf.mxu0
    %v2388 = vadd.f32 %v2059, %v2387
    %2389 = vmatmul.bf16.gmra.mxu0 %v1611
    %v2390 = vpop.f32.mrf.mxu0
    %v2391 = vadd.f32 %v2062, %v2390
    %v2392 = vpop.f32.mrf.mxu0
    %v2393 = vadd.f32 %v2064, %v2392
    %2394 = vmatmul.bf16.gmra.mxu0 %v1613
    %v2395 = vpop.f32.mrf.mxu0
    %v2396 = vadd.f32 %v2067, %v2395
    %v2397 = vpop.f32.mrf.mxu0
    %v2398 = vadd.f32 %v2069, %v2397
    %2399 = vdwg.mxu0
    %vm2400 = vcmask 64512
    %2401 = vst.msk [vmem:[#allocation2] sm:$0xff] %vm2400, %v2081
    %2402 = vst.msk [vmem:[#allocation2 + $0x8] sm:$0xff] %vm2400, %v2083
    %2403 = vst.msk [vmem:[#allocation2 + $0x10] sm:$0xff] %vm2400, %v2086
    %2404 = vst.msk [vmem:[#allocation2 + $0x18] sm:$0xff] %vm2400, %v2088
    %2405 = vst.msk [vmem:[#allocation2 + $0x20] sm:$0xff] %vm2400, %v2091
    %2406 = vst.msk [vmem:[#allocation2 + $0x28] sm:$0xff] %vm2400, %v2093
    %2407 = vst.msk [vmem:[#allocation2 + $0x30] sm:$0xff] %vm2400, %v2096
    %2408 = vst.msk [vmem:[#allocation2 + $0x38] sm:$0xff] %vm2400, %v2098
    %2417 = vrot.lane.b32.xlu0 %v2101, 8
    %v2418 = vpop.permute.xlu0 %2417
    %2419 = vrot.lane.b32.xlu0 %v2103, 8
    %v2420 = vpop.permute.xlu0 %2419
    %2421 = vrot.lane.b32.xlu0 %v2106, 8
    %v2422 = vpop.permute.xlu0 %2421
    %2423 = vrot.lane.b32.xlu0 %v2108, 8
    %v2424 = vpop.permute.xlu0 %2423
    %2425 = vrot.lane.b32.xlu0 %v2111, 8
    %v2426 = vpop.permute.xlu0 %2425
    %2427 = vrot.lane.b32.xlu0 %v2113, 8
    %v2428 = vpop.permute.xlu0 %2427
    %2429 = vrot.lane.b32.xlu0 %v2116, 8
    %v2430 = vpop.permute.xlu0 %2429
    %2431 = vrot.lane.b32.xlu0 %v2118, 8
    %v2432 = vpop.permute.xlu0 %2431
    %vm2441 = vcmask 130112
    %2442 = vst.msk [vmem:[#allocation2] sm:$0xff] %vm2441, %v2418
    %2443 = vst.msk [vmem:[#allocation2 + $0x8] sm:$0xff] %vm2441, %v2420
    %2444 = vst.msk [vmem:[#allocation2 + $0x10] sm:$0xff] %vm2441, %v2422
    %2445 = vst.msk [vmem:[#allocation2 + $0x18] sm:$0xff] %vm2441, %v2424
    %2446 = vst.msk [vmem:[#allocation2 + $0x20] sm:$0xff] %vm2441, %v2426
    %2447 = vst.msk [vmem:[#allocation2 + $0x28] sm:$0xff] %vm2441, %v2428
    %2448 = vst.msk [vmem:[#allocation2 + $0x30] sm:$0xff] %vm2441, %v2430
    %2449 = vst.msk [vmem:[#allocation2 + $0x38] sm:$0xff] %vm2441, %v2432
    %2458 = vrot.lane.b32.xlu0 %v2121, 16
    %v2459 = vpop.permute.xlu0 %2458
    %2460 = vrot.lane.b32.xlu0 %v2123, 16
    %v2461 = vpop.permute.xlu0 %2460
    %2462 = vrot.lane.b32.xlu0 %v2126, 16
    %v2463 = vpop.permute.xlu0 %2462
    %2464 = vrot.lane.b32.xlu0 %v2128, 16
    %v2465 = vpop.permute.xlu0 %2464
    %2466 = vrot.lane.b32.xlu0 %v2131, 16
    %v2467 = vpop.permute.xlu0 %2466
    %2468 = vrot.lane.b32.xlu0 %v2133, 16
    %v2469 = vpop.permute.xlu0 %2468
    %2470 = vrot.lane.b32.xlu0 %v2136, 16
    %v2471 = vpop.permute.xlu0 %2470
    %2472 = vrot.lane.b32.xlu0 %v2138, 16
    %v2473 = vpop.permute.xlu0 %2472
    %vm2482 = vcmask 195712
    %2483 = vst.msk [vmem:[#allocation2] sm:$0xff] %vm2482, %v2459
    %2484 = vst.msk [vmem:[#allocation2 + $0x8] sm:$0xff] %vm2482, %v2461
    %2485 = vst.msk [vmem:[#allocation2 + $0x10] sm:$0xff] %vm2482, %v2463
    %2486 = vst.msk [vmem:[#allocation2 + $0x18] sm:$0xff] %vm2482, %v2465
    %2487 = vst.msk [vmem:[#allocation2 + $0x20] sm:$0xff] %vm2482, %v2467
    %2488 = vst.msk [vmem:[#allocation2 + $0x28] sm:$0xff] %vm2482, %v2469
    %2489 = vst.msk [vmem:[#allocation2 + $0x30] sm:$0xff] %vm2482, %v2471
    %2490 = vst.msk [vmem:[#allocation2 + $0x38] sm:$0xff] %vm2482, %v2473
    %2499 = vrot.lane.b32.xlu0 %v2141, 24
    %v2500 = vpop.permute.xlu0 %2499
    %2501 = vrot.lane.b32.xlu0 %v2143, 24
    %v2502 = vpop.permute.xlu0 %2501
    %2503 = vrot.lane.b32.xlu0 %v2146, 24
    %v2504 = vpop.permute.xlu0 %2503
    %2505 = vrot.lane.b32.xlu0 %v2148, 24
    %v2506 = vpop.permute.xlu0 %2505
    %2507 = vrot.lane.b32.xlu0 %v2151, 24
    %v2508 = vpop.permute.xlu0 %2507
    %2509 = vrot.lane.b32.xlu0 %v2153, 24
    %v2510 = vpop.permute.xlu0 %2509
    %2511 = vrot.lane.b32.xlu0 %v2156, 24
    %v2512 = vpop.permute.xlu0 %2511
    %2513 = vrot.lane.b32.xlu0 %v2158, 24
    %v2514 = vpop.permute.xlu0 %2513
    %vm2523 = vcmask 261312
    %2524 = vst.msk [vmem:[#allocation2] sm:$0xff] %vm2523, %v2500
    %2525 = vst.msk [vmem:[#allocation2 + $0x8] sm:$0xff] %vm2523, %v2502
    %2526 = vst.msk [vmem:[#allocation2 + $0x10] sm:$0xff] %vm2523, %v2504
    %2527 = vst.msk [vmem:[#allocation2 + $0x18] sm:$0xff] %vm2523, %v2506
    %2528 = vst.msk [vmem:[#allocation2 + $0x20] sm:$0xff] %vm2523, %v2508
    %2529 = vst.msk [vmem:[#allocation2 + $0x28] sm:$0xff] %vm2523, %v2510
    %2530 = vst.msk [vmem:[#allocation2 + $0x30] sm:$0xff] %vm2523, %v2512
    %2531 = vst.msk [vmem:[#allocation2 + $0x38] sm:$0xff] %vm2523, %v2514
    %2540 = vrot.lane.b32.xlu0 %v2161, 32
    %v2541 = vpop.permute.xlu0 %2540
    %2542 = vrot.lane.b32.xlu0 %v2163, 32
    %v2543 = vpop.permute.xlu0 %2542
    %2544 = vrot.lane.b32.xlu0 %v2166, 32
    %v2545 = vpop.permute.xlu0 %2544
    %2546 = vrot.lane.b32.xlu0 %v2168, 32
    %v2547 = vpop.permute.xlu0 %2546
    %2548 = vrot.lane.b32.xlu0 %v2171, 32
    %v2549 = vpop.permute.xlu0 %2548
    %2550 = vrot.lane.b32.xlu0 %v2173, 32
    %v2551 = vpop.permute.xlu0 %2550
    %2552 = vrot.lane.b32.xlu0 %v2176, 32
    %v2553 = vpop.permute.xlu0 %2552
    %2554 = vrot.lane.b32.xlu0 %v2178, 32
    %v2555 = vpop.permute.xlu0 %2554
    %vm2564 = vcmask 326912
    %2565 = vst.msk [vmem:[#allocation2] sm:$0xff] %vm2564, %v2541
    %2566 = vst.msk [vmem:[#allocation2 + $0x8] sm:$0xff] %vm2564, %v2543
    %2567 = vst.msk [vmem:[#allocation2 + $0x10] sm:$0xff] %vm2564, %v2545
    %2568 = vst.msk [vmem:[#allocation2 + $0x18] sm:$0xff] %vm2564, %v2547
    %2569 = vst.msk [vmem:[#allocation2 + $0x20] sm:$0xff] %vm2564, %v2549
    %2570 = vst.msk [vmem:[#allocation2 + $0x28] sm:$0xff] %vm2564, %v2551
    %2571 = vst.msk [vmem:[#allocation2 + $0x30] sm:$0xff] %vm2564, %v2553
    %2572 = vst.msk [vmem:[#allocation2 + $0x38] sm:$0xff] %vm2564, %v2555
    %2581 = vrot.lane.b32.xlu0 %v2181, 40
    %v2582 = vpop.permute.xlu0 %2581
    %2583 = vrot.lane.b32.xlu0 %v2183, 40
    %v2584 = vpop.permute.xlu0 %2583
    %2585 = vrot.lane.b32.xlu0 %v2186, 40
    %v2586 = vpop.permute.xlu0 %2585
    %2587 = vrot.lane.b32.xlu0 %v2188, 40
    %v2588 = vpop.permute.xlu0 %2587
    %2589 = vrot.lane.b32.xlu0 %v2191, 40
    %v2590 = vpop.permute.xlu0 %2589
    %2591 = vrot.lane.b32.xlu0 %v2193, 40
    %v2592 = vpop.permute.xlu0 %2591
    %2593 = vrot.lane.b32.xlu0 %v2196, 40
    %v2594 = vpop.permute.xlu0 %2593
    %2595 = vrot.lane.b32.xlu0 %v2198, 40
    %v2596 = vpop.permute.xlu0 %2595
    %vm2605 = vcmask 392512
    %2606 = vst.msk [vmem:[#allocation2] sm:$0xff] %vm2605, %v2582
    %2607 = vst.msk [vmem:[#allocation2 + $0x8] sm:$0xff] %vm2605, %v2584
    %2608 = vst.msk [vmem:[#allocation2 + $0x10] sm:$0xff] %vm2605, %v2586
    %2609 = vst.msk [vmem:[#allocation2 + $0x18] sm:$0xff] %vm2605, %v2588
    %2610 = vst.msk [vmem:[#allocation2 + $0x20] sm:$0xff] %vm2605, %v2590
    %2611 = vst.msk [vmem:[#allocation2 + $0x28] sm:$0xff] %vm2605, %v2592
    %2612 = vst.msk [vmem:[#allocation2 + $0x30] sm:$0xff] %vm2605, %v2594
    %2613 = vst.msk [vmem:[#allocation2 + $0x38] sm:$0xff] %vm2605, %v2596
    %2622 = vrot.lane.b32.xlu0 %v2201, 48
    %v2623 = vpop.permute.xlu0 %2622
    %2624 = vrot.lane.b32.xlu0 %v2203, 48
    %v2625 = vpop.permute.xlu0 %2624
    %2626 = vrot.lane.b32.xlu0 %v2206, 48
    %v2627 = vpop.permute.xlu0 %2626
    %2628 = vrot.lane.b32.xlu0 %v2208, 48
    %v2629 = vpop.permute.xlu0 %2628
    %2630 = vrot.lane.b32.xlu0 %v2211, 48
    %v2631 = vpop.permute.xlu0 %2630
    %2632 = vrot.lane.b32.xlu0 %v2213, 48
    %v2633 = vpop.permute.xlu0 %2632
    %2634 = vrot.lane.b32.xlu0 %v2216, 48
    %v2635 = vpop.permute.xlu0 %2634
    %2636 = vrot.lane.b32.xlu0 %v2218, 48
    %v2637 = vpop.permute.xlu0 %2636
    %vm2646 = vcmask 458112
    %2647 = vst.msk [vmem:[#allocation2] sm:$0xff] %vm2646, %v2623
    %2648 = vst.msk [vmem:[#allocation2 + $0x8] sm:$0xff] %vm2646, %v2625
    %2649 = vst.msk [vmem:[#allocation2 + $0x10] sm:$0xff] %vm2646, %v2627
    %2650 = vst.msk [vmem:[#allocation2 + $0x18] sm:$0xff] %vm2646, %v2629
    %2651 = vst.msk [vmem:[#allocation2 + $0x20] sm:$0xff] %vm2646, %v2631
    %2652 = vst.msk [vmem:[#allocation2 + $0x28] sm:$0xff] %vm2646, %v2633
    %2653 = vst.msk [vmem:[#allocation2 + $0x30] sm:$0xff] %vm2646, %v2635
    %2654 = vst.msk [vmem:[#allocation2 + $0x38] sm:$0xff] %vm2646, %v2637
    %2663 = vrot.lane.b32.xlu0 %v2221, 56
    %v2664 = vpop.permute.xlu0 %2663
    %2665 = vrot.lane.b32.xlu0 %v2223, 56
    %v2666 = vpop.permute.xlu0 %2665
    %2667 = vrot.lane.b32.xlu0 %v2226, 56
    %v2668 = vpop.permute.xlu0 %2667
    %2669 = vrot.lane.b32.xlu0 %v2228, 56
    %v2670 = vpop.permute.xlu0 %2669
    %2671 = vrot.lane.b32.xlu0 %v2231, 56
    %v2672 = vpop.permute.xlu0 %2671
    %2673 = vrot.lane.b32.xlu0 %v2233, 56
    %v2674 = vpop.permute.xlu0 %2673
    %2675 = vrot.lane.b32.xlu0 %v2236, 56
    %v2676 = vpop.permute.xlu0 %2675
    %2677 = vrot.lane.b32.xlu0 %v2238, 56
    %v2678 = vpop.permute.xlu0 %2677
    %vm2687 = vcmask 523712
    %2688 = vst.msk [vmem:[#allocation2] sm:$0xff] %vm2687, %v2664
    %2689 = vst.msk [vmem:[#allocation2 + $0x8] sm:$0xff] %vm2687, %v2666
    %2690 = vst.msk [vmem:[#allocation2 + $0x10] sm:$0xff] %vm2687, %v2668
    %2691 = vst.msk [vmem:[#allocation2 + $0x18] sm:$0xff] %vm2687, %v2670
    %2692 = vst.msk [vmem:[#allocation2 + $0x20] sm:$0xff] %vm2687, %v2672
    %2693 = vst.msk [vmem:[#allocation2 + $0x28] sm:$0xff] %vm2687, %v2674
    %2694 = vst.msk [vmem:[#allocation2 + $0x30] sm:$0xff] %vm2687, %v2676
    %2695 = vst.msk [vmem:[#allocation2 + $0x38] sm:$0xff] %vm2687, %v2678
    %2704 = vrot.lane.b32.xlu0 %v2241, 64
    %v2705 = vpop.permute.xlu0 %2704
    %2706 = vrot.lane.b32.xlu0 %v2243, 64
    %v2707 = vpop.permute.xlu0 %2706
    %2708 = vrot.lane.b32.xlu0 %v2246, 64
    %v2709 = vpop.permute.xlu0 %2708
    %2710 = vrot.lane.b32.xlu0 %v2248, 64
    %v2711 = vpop.permute.xlu0 %2710
    %2712 = vrot.lane.b32.xlu0 %v2251, 64
    %v2713 = vpop.permute.xlu0 %2712
    %2714 = vrot.lane.b32.xlu0 %v2253, 64
    %v2715 = vpop.permute.xlu0 %2714
    %2716 = vrot.lane.b32.xlu0 %v2256, 64
    %v2717 = vpop.permute.xlu0 %2716
    %2718 = vrot.lane.b32.xlu0 %v2258, 64
    %v2719 = vpop.permute.xlu0 %2718
    %vm2728 = vcmask 589312
    %2729 = vst.msk [vmem:[#allocation2] sm:$0xff] %vm2728, %v2705
    %2730 = vst.msk [vmem:[#allocation2 + $0x8] sm:$0xff] %vm2728, %v2707
    %2731 = vst.msk [vmem:[#allocation2 + $0x10] sm:$0xff] %vm2728, %v2709
    %2732 = vst.msk [vmem:[#allocation2 + $0x18] sm:$0xff] %vm2728, %v2711
    %2733 = vst.msk [vmem:[#allocation2 + $0x20] sm:$0xff] %vm2728, %v2713
    %2734 = vst.msk [vmem:[#allocation2 + $0x28] sm:$0xff] %vm2728, %v2715
    %2735 = vst.msk [vmem:[#allocation2 + $0x30] sm:$0xff] %vm2728, %v2717
    %2736 = vst.msk [vmem:[#allocation2 + $0x38] sm:$0xff] %vm2728, %v2719
    %2745 = vrot.lane.b32.xlu0 %v2261, 72
    %v2746 = vpop.permute.xlu0 %2745
    %2747 = vrot.lane.b32.xlu0 %v2263, 72
    %v2748 = vpop.permute.xlu0 %2747
    %2749 = vrot.lane.b32.xlu0 %v2266, 72
    %v2750 = vpop.permute.xlu0 %2749
    %2751 = vrot.lane.b32.xlu0 %v2268, 72
    %v2752 = vpop.permute.xlu0 %2751
    %2753 = vrot.lane.b32.xlu0 %v2271, 72
    %v2754 = vpop.permute.xlu0 %2753
    %2755 = vrot.lane.b32.xlu0 %v2273, 72
    %v2756 = vpop.permute.xlu0 %2755
    %2757 = vrot.lane.b32.xlu0 %v2276, 72
    %v2758 = vpop.permute.xlu0 %2757
    %2759 = vrot.lane.b32.xlu0 %v2278, 72
    %v2760 = vpop.permute.xlu0 %2759
    %vm2769 = vcmask 654912
    %2770 = vst.msk [vmem:[#allocation2] sm:$0xff] %vm2769, %v2746
    %2771 = vst.msk [vmem:[#allocation2 + $0x8] sm:$0xff] %vm2769, %v2748
    %2772 = vst.msk [vmem:[#allocation2 + $0x10] sm:$0xff] %vm2769, %v2750
    %2773 = vst.msk [vmem:[#allocation2 + $0x18] sm:$0xff] %vm2769, %v2752
    %2774 = vst.msk [vmem:[#allocation2 + $0x20] sm:$0xff] %vm2769, %v2754
    %2775 = vst.msk [vmem:[#allocation2 + $0x28] sm:$0xff] %vm2769, %v2756
    %2776 = vst.msk [vmem:[#allocation2 + $0x30] sm:$0xff] %vm2769, %v2758
    %2777 = vst.msk [vmem:[#allocation2 + $0x38] sm:$0xff] %vm2769, %v2760
    %2786 = vrot.lane.b32.xlu0 %v2281, 80
    %v2787 = vpop.permute.xlu0 %2786
    %2788 = vrot.lane.b32.xlu0 %v2283, 80
    %v2789 = vpop.permute.xlu0 %2788
    %2790 = vrot.lane.b32.xlu0 %v2286, 80
    %v2791 = vpop.permute.xlu0 %2790
    %2792 = vrot.lane.b32.xlu0 %v2288, 80
    %v2793 = vpop.permute.xlu0 %2792
    %2794 = vrot.lane.b32.xlu0 %v2291, 80
    %v2795 = vpop.permute.xlu0 %2794
    %2796 = vrot.lane.b32.xlu0 %v2293, 80
    %v2797 = vpop.permute.xlu0 %2796
    %2798 = vrot.lane.b32.xlu0 %v2296, 80
    %v2799 = vpop.permute.xlu0 %2798
    %2800 = vrot.lane.b32.xlu0 %v2298, 80
    %v2801 = vpop.permute.xlu0 %2800
    %vm2810 = vcmask 720512
    %2811 = vst.msk [vmem:[#allocation2] sm:$0xff] %vm2810, %v2787
    %2812 = vst.msk [vmem:[#allocation2 + $0x8] sm:$0xff] %vm2810, %v2789
    %2813 = vst.msk [vmem:[#allocation2 + $0x10] sm:$0xff] %vm2810, %v2791
    %2814 = vst.msk [vmem:[#allocation2 + $0x18] sm:$0xff] %vm2810, %v2793
    %2815 = vst.msk [vmem:[#allocation2 + $0x20] sm:$0xff] %vm2810, %v2795
    %2816 = vst.msk [vmem:[#allocation2 + $0x28] sm:$0xff] %vm2810, %v2797
    %2817 = vst.msk [vmem:[#allocation2 + $0x30] sm:$0xff] %vm2810, %v2799
    %2818 = vst.msk [vmem:[#allocation2 + $0x38] sm:$0xff] %vm2810, %v2801
    %2827 = vrot.lane.b32.xlu0 %v2301, 88
    %v2828 = vpop.permute.xlu0 %2827
    %2829 = vrot.lane.b32.xlu0 %v2303, 88
    %v2830 = vpop.permute.xlu0 %2829
    %2831 = vrot.lane.b32.xlu0 %v2306, 88
    %v2832 = vpop.permute.xlu0 %2831
    %2833 = vrot.lane.b32.xlu0 %v2308, 88
    %v2834 = vpop.permute.xlu0 %2833
    %2835 = vrot.lane.b32.xlu0 %v2311, 88
    %v2836 = vpop.permute.xlu0 %2835
    %2837 = vrot.lane.b32.xlu0 %v2313, 88
    %v2838 = vpop.permute.xlu0 %2837
    %2839 = vrot.lane.b32.xlu0 %v2316, 88
    %v2840 = vpop.permute.xlu0 %2839
    %2841 = vrot.lane.b32.xlu0 %v2318, 88
    %v2842 = vpop.permute.xlu0 %2841
    %vm2851 = vcmask 786112
    %2852 = vst.msk [vmem:[#allocation2] sm:$0xff] %vm2851, %v2828
    %2853 = vst.msk [vmem:[#allocation2 + $0x8] sm:$0xff] %vm2851, %v2830
    %2854 = vst.msk [vmem:[#allocation2 + $0x10] sm:$0xff] %vm2851, %v2832
    %2855 = vst.msk [vmem:[#allocation2 + $0x18] sm:$0xff] %vm2851, %v2834
    %2856 = vst.msk [vmem:[#allocation2 + $0x20] sm:$0xff] %vm2851, %v2836
    %2857 = vst.msk [vmem:[#allocation2 + $0x28] sm:$0xff] %vm2851, %v2838
    %2858 = vst.msk [vmem:[#allocation2 + $0x30] sm:$0xff] %vm2851, %v2840
    %2859 = vst.msk [vmem:[#allocation2 + $0x38] sm:$0xff] %vm2851, %v2842
    %2868 = vrot.lane.b32.xlu0 %v2321, 96
    %v2869 = vpop.permute.xlu0 %2868
    %2870 = vrot.lane.b32.xlu0 %v2323, 96
    %v2871 = vpop.permute.xlu0 %2870
    %2872 = vrot.lane.b32.xlu0 %v2326, 96
    %v2873 = vpop.permute.xlu0 %2872
    %2874 = vrot.lane.b32.xlu0 %v2328, 96
    %v2875 = vpop.permute.xlu0 %2874
    %2876 = vrot.lane.b32.xlu0 %v2331, 96
    %v2877 = vpop.permute.xlu0 %2876
    %2878 = vrot.lane.b32.xlu0 %v2333, 96
    %v2879 = vpop.permute.xlu0 %2878
    %2880 = vrot.lane.b32.xlu0 %v2336, 96
    %v2881 = vpop.permute.xlu0 %2880
    %2882 = vrot.lane.b32.xlu0 %v2338, 96
    %v2883 = vpop.permute.xlu0 %2882
    %vm2892 = vcmask 851712
    %2893 = vst.msk [vmem:[#allocation2] sm:$0xff] %vm2892, %v2869
    %2894 = vst.msk [vmem:[#allocation2 + $0x8] sm:$0xff] %vm2892, %v2871
    %2895 = vst.msk [vmem:[#allocation2 + $0x10] sm:$0xff] %vm2892, %v2873
    %2896 = vst.msk [vmem:[#allocation2 + $0x18] sm:$0xff] %vm2892, %v2875
    %2897 = vst.msk [vmem:[#allocation2 + $0x20] sm:$0xff] %vm2892, %v2877
    %2898 = vst.msk [vmem:[#allocation2 + $0x28] sm:$0xff] %vm2892, %v2879
    %2899 = vst.msk [vmem:[#allocation2 + $0x30] sm:$0xff] %vm2892, %v2881
    %2900 = vst.msk [vmem:[#allocation2 + $0x38] sm:$0xff] %vm2892, %v2883
    %2909 = vrot.lane.b32.xlu0 %v2341, 104
    %v2910 = vpop.permute.xlu0 %2909
    %2911 = vrot.lane.b32.xlu0 %v2343, 104
    %v2912 = vpop.permute.xlu0 %2911
    %2913 = vrot.lane.b32.xlu0 %v2346, 104
    %v2914 = vpop.permute.xlu0 %2913
    %2915 = vrot.lane.b32.xlu0 %v2348, 104
    %v2916 = vpop.permute.xlu0 %2915
    %2917 = vrot.lane.b32.xlu0 %v2351, 104
    %v2918 = vpop.permute.xlu0 %2917
    %2919 = vrot.lane.b32.xlu0 %v2353, 104
    %v2920 = vpop.permute.xlu0 %2919
    %2921 = vrot.lane.b32.xlu0 %v2356, 104
    %v2922 = vpop.permute.xlu0 %2921
    %2923 = vrot.lane.b32.xlu0 %v2358, 104
    %v2924 = vpop.permute.xlu0 %2923
    %vm2933 = vcmask 917312
    %2934 = vst.msk [vmem:[#allocation2] sm:$0xff] %vm2933, %v2910
    %2935 = vst.msk [vmem:[#allocation2 + $0x8] sm:$0xff] %vm2933, %v2912
    %2936 = vst.msk [vmem:[#allocation2 + $0x10] sm:$0xff] %vm2933, %v2914
    %2937 = vst.msk [vmem:[#allocation2 + $0x18] sm:$0xff] %vm2933, %v2916
    %2938 = vst.msk [vmem:[#allocation2 + $0x20] sm:$0xff] %vm2933, %v2918
    %2939 = vst.msk [vmem:[#allocation2 + $0x28] sm:$0xff] %vm2933, %v2920
    %2940 = vst.msk [vmem:[#allocation2 + $0x30] sm:$0xff] %vm2933, %v2922
    %2941 = vst.msk [vmem:[#allocation2 + $0x38] sm:$0xff] %vm2933, %v2924
    %2950 = vrot.lane.b32.xlu0 %v2361, 112
    %v2951 = vpop.permute.xlu0 %2950
    %2952 = vrot.lane.b32.xlu0 %v2363, 112
    %v2953 = vpop.permute.xlu0 %2952
    %2954 = vrot.lane.b32.xlu0 %v2366, 112
    %v2955 = vpop.permute.xlu0 %2954
    %2956 = vrot.lane.b32.xlu0 %v2368, 112
    %v2957 = vpop.permute.xlu0 %2956
    %2958 = vrot.lane.b32.xlu0 %v2371, 112
    %v2959 = vpop.permute.xlu0 %2958
    %2960 = vrot.lane.b32.xlu0 %v2373, 112
    %v2961 = vpop.permute.xlu0 %2960
    %2962 = vrot.lane.b32.xlu0 %v2376, 112
    %v2963 = vpop.permute.xlu0 %2962
    %2964 = vrot.lane.b32.xlu0 %v2378, 112
    %v2965 = vpop.permute.xlu0 %2964
    %vm2974 = vcmask 982912
    %2975 = vst.msk [vmem:[#allocation2] sm:$0xff] %vm2974, %v2951
    %2976 = vst.msk [vmem:[#allocation2 + $0x8] sm:$0xff] %vm2974, %v2953
    %2977 = vst.msk [vmem:[#allocation2 + $0x10] sm:$0xff] %vm2974, %v2955
    %2978 = vst.msk [vmem:[#allocation2 + $0x18] sm:$0xff] %vm2974, %v2957
    %2979 = vst.msk [vmem:[#allocation2 + $0x20] sm:$0xff] %vm2974, %v2959
    %2980 = vst.msk [vmem:[#allocation2 + $0x28] sm:$0xff] %vm2974, %v2961
    %2981 = vst.msk [vmem:[#allocation2 + $0x30] sm:$0xff] %vm2974, %v2963
    %2982 = vst.msk [vmem:[#allocation2 + $0x38] sm:$0xff] %vm2974, %v2965
    %2991 = vrot.lane.b32.xlu0 %v2381, 120
    %v2992 = vpop.permute.xlu0 %2991
    %2993 = vrot.lane.b32.xlu0 %v2383, 120
    %v2994 = vpop.permute.xlu0 %2993
    %2995 = vrot.lane.b32.xlu0 %v2386, 120
    %v2996 = vpop.permute.xlu0 %2995
    %2997 = vrot.lane.b32.xlu0 %v2388, 120
    %v2998 = vpop.permute.xlu0 %2997
    %2999 = vrot.lane.b32.xlu0 %v2391, 120
    %v3000 = vpop.permute.xlu0 %2999
    %3001 = vrot.lane.b32.xlu0 %v2393, 120
    %v3002 = vpop.permute.xlu0 %3001
    %3003 = vrot.lane.b32.xlu0 %v2396, 120
    %v3004 = vpop.permute.xlu0 %3003
    %3005 = vrot.lane.b32.xlu0 %v2398, 120
    %v3006 = vpop.permute.xlu0 %3005
    %vm3015 = vcmask 1048512
    %3016 = vst.msk [vmem:[#allocation2] sm:$0xff] %vm3015, %v2992
    %3017 = vst.msk [vmem:[#allocation2 + $0x8] sm:$0xff] %vm3015, %v2994
    %3018 = vst.msk [vmem:[#allocation2 + $0x10] sm:$0xff] %vm3015, %v2996
    %3019 = vst.msk [vmem:[#allocation2 + $0x18] sm:$0xff] %vm3015, %v2998
    %3020 = vst.msk [vmem:[#allocation2 + $0x20] sm:$0xff] %vm3015, %v3000
    %3021 = vst.msk [vmem:[#allocation2 + $0x28] sm:$0xff] %vm3015, %v3002
    %3022 = vst.msk [vmem:[#allocation2 + $0x30] sm:$0xff] %vm3015, %v3004
    %3023 = vst.msk [vmem:[#allocation2 + $0x38] sm:$0xff] %vm3015, %v3006
    %v3024 = vld [vmem:[#allocation2] sm:$0xff]
    %v3025 = vld [vmem:[#allocation2 + $0x8] sm:$0xff]
    %v3026 = vld [vmem:[#allocation2 + $0x10] sm:$0xff]
    %v3027 = vld [vmem:[#allocation2 + $0x18] sm:$0xff]
    %v3028 = vld [vmem:[#allocation2 + $0x20] sm:$0xff]
    %v3029 = vld [vmem:[#allocation2 + $0x28] sm:$0xff]
    %v3030 = vld [vmem:[#allocation2 + $0x30] sm:$0xff]
    %v3031 = vld [vmem:[#allocation2 + $0x38] sm:$0xff]
    %v3032 = vpack.c.bf16 %v3025, %v3024
    %v3033 = vpack.c.bf16 %v3027, %v3026
    %v3034 = vpack.c.bf16 %v3029, %v3028
    %v3035 = vpack.c.bf16 %v3031, %v3030
    %v3036 = vld [vmem:[%s4] sm:$0xf]
    %v3037 = vld [vmem:[%s4 + $0x4] sm:$0xf]
    %v3038 = vld [vmem:[%s4 + $0x8] sm:$0xf]
    %v3039 = vld [vmem:[%s4 + $0xc] sm:$0xf]
    %v3040 = vld [vmem:[%s4 + $0x10] sm:$0xf]
    %v3041 = vld [vmem:[%s4 + $0x14] sm:$0xf]
    %v3042 = vld [vmem:[%s4 + $0x18] sm:$0xf]
    %v3043 = vld [vmem:[%s4 + $0x1c] sm:$0xf]
    %v3044 = vld [vmem:[%s4 + $0x20] sm:$0xf]
    %v3045 = vld [vmem:[%s4 + $0x24] sm:$0xf]
    %v3046 = vld [vmem:[%s4 + $0x28] sm:$0xf]
    %v3047 = vld [vmem:[%s4 + $0x2c] sm:$0xf]
    %v3048 = vld [vmem:[%s4 + $0x30] sm:$0xf]
    %v3049 = vld [vmem:[%s4 + $0x34] sm:$0xf]
    %v3050 = vld [vmem:[%s4 + $0x38] sm:$0xf]
    %v3051 = vld [vmem:[%s4 + $0x3c] sm:$0xf]
    %v3052 = vld [vmem:[%s5] sm:$0x1]
    %v3054 = vperm.slane %v3052, 0
    %v3072 = vunpack.c.l.b16 %v3036
    %v3073 = vunpack.c.l.b16 %v3037
    %v3074 = vunpack.c.l.b16 %v3038
    %v3075 = vunpack.c.l.b16 %v3039
    %v3076 = vunpack.c.l.b16 %v3040
    %v3077 = vunpack.c.l.b16 %v3041
    %v3078 = vunpack.c.l.b16 %v3042
    %v3079 = vunpack.c.l.b16 %v3043
    %v3080 = vunpack.c.l.b16 %v3044
    %v3081 = vunpack.c.l.b16 %v3045
    %v3082 = vunpack.c.l.b16 %v3046
    %v3083 = vunpack.c.l.b16 %v3047
    %v3084 = vunpack.c.l.b16 %v3048
    %v3085 = vunpack.c.l.b16 %v3049
    %v3086 = vunpack.c.l.b16 %v3050
    %v3087 = vunpack.c.l.b16 %v3051
    %v3088 = vpack.c.b16 %v3073, %v3072
    %v3089 = vpack.c.b16 %v3075, %v3074
    %v3090 = vpack.c.b16 %v3077, %v3076
    %v3091 = vpack.c.b16 %v3079, %v3078
    %v3092 = vpack.c.b16 %v3081, %v3080
    %v3093 = vpack.c.b16 %v3083, %v3082
    %v3094 = vpack.c.b16 %v3085, %v3084
    %v3095 = vpack.c.b16 %v3087, %v3086
    %3104 = vmatpush.bf16.msra.mxu0 %v3095
    %3105 = vmatpush.bf16.msra.mxu0 %v3094
    %3106 = vmatpush.bf16.msra.mxu0 %v3093
    %3107 = vmatpush.bf16.msra.mxu0 %v3092
    %3108 = vmatpush.bf16.msra.mxu0 %v3091
    %3109 = vmatpush.bf16.msra.mxu0 %v3090
    %3110 = vmatpush.bf16.msra.mxu0 %v3089
    %3111 = vmatpush.bf16.msra.mxu0 %v3088
    %3112 = vmatmul.bf16.gmra.mxu0 %v3032
    %v3113 = vpop.f32.mrf.mxu0
    %v3114 = vadd.f32 %v3054, %v3113
    %v3115 = vpop.f32.mrf.mxu0
    %v3116 = vadd.f32 %v3054, %v3115
    %3117 = vmatmul.bf16.gmra.mxu0 %v3033
    %v3118 = vpop.f32.mrf.mxu0
    %v3119 = vadd.f32 %v3054, %v3118
    %v3120 = vpop.f32.mrf.mxu0
    %v3121 = vadd.f32 %v3054, %v3120
    %3122 = vmatmul.bf16.gmra.mxu0 %v3034
    %v3123 = vpop.f32.mrf.mxu0
    %v3124 = vadd.f32 %v3054, %v3123
    %v3125 = vpop.f32.mrf.mxu0
    %v3126 = vadd.f32 %v3054, %v3125
    %3127 = vmatmul.bf16.gmra.mxu0 %v3035
    %v3128 = vpop.f32.mrf.mxu0
    %v3129 = vadd.f32 %v3054, %v3128
    %v3130 = vpop.f32.mrf.mxu0
    %v3131 = vadd.f32 %v3054, %v3130
    %3132 = vdwg.mxu0
    %v3133 = vmax.f32 %v3114, 0.0
    %v3134 = vmax.f32 %v3116, 0.0
    %v3135 = vmax.f32 %v3119, 0.0
    %v3136 = vmax.f32 %v3121, 0.0
    %v3137 = vmax.f32 %v3124, 0.0
    %v3138 = vmax.f32 %v3126, 0.0
    %v3139 = vmax.f32 %v3129, 0.0
    %v3140 = vmax.f32 %v3131, 0.0
    %v3141 = vld [vmem:[%s6] sm:$0xf]
    %v3142 = vld [vmem:[%s6 + $0x4] sm:$0xf]
    %v3143 = vld [vmem:[%s6 + $0x8] sm:$0xf]
    %v3144 = vld [vmem:[%s6 + $0xc] sm:$0xf]
    %v3145 = vld [vmem:[%s6 + $0x10] sm:$0xf]
    %v3146 = vld [vmem:[%s6 + $0x14] sm:$0xf]
    %v3147 = vld [vmem:[%s6 + $0x18] sm:$0xf]
    %v3148 = vld [vmem:[%s6 + $0x1c] sm:$0xf]
    %v3149 = vld [vmem:[%s6 + $0x20] sm:$0xf]
    %v3150 = vld [vmem:[%s6 + $0x24] sm:$0xf]
    %v3151 = vld [vmem:[%s6 + $0x28] sm:$0xf]
    %v3152 = vld [vmem:[%s6 + $0x2c] sm:$0xf]
    %v3153 = vld [vmem:[%s6 + $0x30] sm:$0xf]
    %v3154 = vld [vmem:[%s6 + $0x34] sm:$0xf]
    %v3155 = vld [vmem:[%s6 + $0x38] sm:$0xf]
    %v3156 = vld [vmem:[%s6 + $0x3c] sm:$0xf]
    %v3157 = vld [vmem:[%s6 + $0x40] sm:$0xf]
    %v3158 = vld [vmem:[%s6 + $0x44] sm:$0xf]
    %v3159 = vld [vmem:[%s6 + $0x48] sm:$0xf]
    %v3160 = vld [vmem:[%s6 + $0x4c] sm:$0xf]
    %v3161 = vld [vmem:[%s6 + $0x50] sm:$0xf]
    %v3162 = vld [vmem:[%s6 + $0x54] sm:$0xf]
    %v3163 = vld [vmem:[%s6 + $0x58] sm:$0xf]
    %v3164 = vld [vmem:[%s6 + $0x5c] sm:$0xf]
    %v3165 = vld [vmem:[%s6 + $0x60] sm:$0xf]
    %v3166 = vld [vmem:[%s6 + $0x64] sm:$0xf]
    %v3167 = vld [vmem:[%s6 + $0x68] sm:$0xf]
    %v3168 = vld [vmem:[%s6 + $0x6c] sm:$0xf]
    %v3169 = vld [vmem:[%s6 + $0x70] sm:$0xf]
    %v3170 = vld [vmem:[%s6 + $0x74] sm:$0xf]
    %v3171 = vld [vmem:[%s6 + $0x78] sm:$0xf]
    %v3172 = vld [vmem:[%s6 + $0x7c] sm:$0xf]
    %v3173 = vpack.c.bf16 %v3134, %v3133
    %v3174 = vpack.c.bf16 %v3136, %v3135
    %v3175 = vpack.c.bf16 %v3138, %v3137
    %v3176 = vpack.c.bf16 %v3140, %v3139
    %v3209 = vunpack.c.l.b16 %v3141
    %v3210 = vunpack.c.l.b16 %v3142
    %v3211 = vunpack.c.l.b16 %v3143
    %v3212 = vunpack.c.l.b16 %v3144
    %v3213 = vunpack.c.l.b16 %v3145
    %v3214 = vunpack.c.l.b16 %v3146
    %v3215 = vunpack.c.l.b16 %v3147
    %v3216 = vunpack.c.l.b16 %v3148
    %v3217 = vunpack.c.l.b16 %v3149
    %v3218 = vunpack.c.l.b16 %v3150
    %v3219 = vunpack.c.l.b16 %v3151
    %v3220 = vunpack.c.l.b16 %v3152
    %v3221 = vunpack.c.l.b16 %v3153
    %v3222 = vunpack.c.l.b16 %v3154
    %v3223 = vunpack.c.l.b16 %v3155
    %v3224 = vunpack.c.l.b16 %v3156
    %v3225 = vunpack.c.l.b16 %v3157
    %v3226 = vunpack.c.l.b16 %v3158
    %v3227 = vunpack.c.l.b16 %v3159
    %v3228 = vunpack.c.l.b16 %v3160
    %v3229 = vunpack.c.l.b16 %v3161
    %v3230 = vunpack.c.l.b16 %v3162
    %v3231 = vunpack.c.l.b16 %v3163
    %v3232 = vunpack.c.l.b16 %v3164
    %v3233 = vunpack.c.l.b16 %v3165
    %v3234 = vunpack.c.l.b16 %v3166
    %v3235 = vunpack.c.l.b16 %v3167
    %v3236 = vunpack.c.l.b16 %v3168
    %v3237 = vunpack.c.l.b16 %v3169
    %v3238 = vunpack.c.l.b16 %v3170
    %v3239 = vunpack.c.l.b16 %v3171
    %v3240 = vunpack.c.l.b16 %v3172
    %v3241 = vpack.c.b16 %v3210, %v3209
    %v3242 = vpack.c.b16 %v3212, %v3211
    %v3243 = vpack.c.b16 %v3214, %v3213
    %v3244 = vpack.c.b16 %v3216, %v3215
    %v3245 = vpack.c.b16 %v3218, %v3217
    %v3246 = vpack.c.b16 %v3220, %v3219
    %v3247 = vpack.c.b16 %v3222, %v3221
    %v3248 = vpack.c.b16 %v3224, %v3223
    %v3249 = vpack.c.b16 %v3226, %v3225
    %v3250 = vpack.c.b16 %v3228, %v3227
    %v3251 = vpack.c.b16 %v3230, %v3229
    %v3252 = vpack.c.b16 %v3232, %v3231
    %v3253 = vpack.c.b16 %v3234, %v3233
    %v3254 = vpack.c.b16 %v3236, %v3235
    %v3255 = vpack.c.b16 %v3238, %v3237
    %v3256 = vpack.c.b16 %v3240, %v3239
    %vm3257 = vcmask 523264
    %v3259 = vsel %vm3257, %v3241, 0
    %v3262 = vsel %vm3257, %v3242, 0
    %v3265 = vsel %vm3257, %v3243, 0
    %v3268 = vsel %vm3257, %v3244, 0
    %v3271 = vsel %vm3257, %v3245, 0
    %v3274 = vsel %vm3257, %v3246, 0
    %v3277 = vsel %vm3257, %v3247, 0
    %v3280 = vsel %vm3257, %v3248, 0
    %v3283 = vsel %vm3257, %v3249, 0
    %v3286 = vsel %vm3257, %v3250, 0
    %v3289 = vsel %vm3257, %v3251, 0
    %v3292 = vsel %vm3257, %v3252, 0
    %v3295 = vsel %vm3257, %v3253, 0
    %v3298 = vsel %vm3257, %v3254, 0
    %v3301 = vsel %vm3257, %v3255, 0
    %v3304 = vsel %vm3257, %v3256, 0
    %3306 = vmatpush.bf16.msra.mxu0 0
    %3307 = vmatpush.bf16.msra.mxu0 0
    %3308 = vmatpush.bf16.msra.mxu0 0
    %3309 = vmatpush.bf16.msra.mxu0 0
    %3310 = vmatpush.bf16.msra.mxu0 %v3176
    %3311 = vmatpush.bf16.msra.mxu0 %v3175
    %3312 = vmatpush.bf16.msra.mxu0 %v3174
    %3313 = vmatpush.bf16.msra.mxu0 %v3173
    %3314 = vmatmul.bf16.gmra.mxu0 %v3259
    %v3315 = vpop.f32.mrf.mxu0
    %v3316 = vadd.f32 0.0, %v3315
    %v3317 = vpop.f32.mrf.mxu0
    %v3318 = vadd.f32 0.0, %v3317
    %3319 = vmatmul.bf16.gmra.mxu0 %v3262
    %v3320 = vpop.f32.mrf.mxu0
    %v3321 = vadd.f32 0.0, %v3320
    %v3322 = vpop.f32.mrf.mxu0
    %v3323 = vadd.f32 0.0, %v3322
    %3324 = vmatmul.bf16.gmra.mxu0 %v3265
    %v3325 = vpop.f32.mrf.mxu0
    %v3326 = vadd.f32 0.0, %v3325
    %v3327 = vpop.f32.mrf.mxu0
    %v3328 = vadd.f32 0.0, %v3327
    %3329 = vmatmul.bf16.gmra.mxu0 %v3268
    %v3330 = vpop.f32.mrf.mxu0
    %v3331 = vadd.f32 0.0, %v3330
    %v3332 = vpop.f32.mrf.mxu0
    %v3333 = vadd.f32 0.0, %v3332
    %3334 = vmatmul.bf16.gmra.mxu0 %v3271
    %v3335 = vpop.f32.mrf.mxu0
    %v3336 = vadd.f32 0.0, %v3335
    %v3337 = vpop.f32.mrf.mxu0
    %v3338 = vadd.f32 0.0, %v3337
    %3339 = vmatmul.bf16.gmra.mxu0 %v3274
    %v3340 = vpop.f32.mrf.mxu0
    %v3341 = vadd.f32 0.0, %v3340
    %v3342 = vpop.f32.mrf.mxu0
    %v3343 = vadd.f32 0.0, %v3342
    %3344 = vmatmul.bf16.gmra.mxu0 %v3277
    %v3345 = vpop.f32.mrf.mxu0
    %v3346 = vadd.f32 0.0, %v3345
    %v3347 = vpop.f32.mrf.mxu0
    %v3348 = vadd.f32 0.0, %v3347
    %3349 = vmatmul.bf16.gmra.mxu0 %v3280
    %v3350 = vpop.f32.mrf.mxu0
    %v3351 = vadd.f32 0.0, %v3350
    %v3352 = vpop.f32.mrf.mxu0
    %v3353 = vadd.f32 0.0, %v3352
    %3354 = vmatmul.bf16.gmra.mxu0 %v3283
    %v3355 = vpop.f32.mrf.mxu0
    %v3356 = vadd.f32 0.0, %v3355
    %v3357 = vpop.f32.mrf.mxu0
    %v3358 = vadd.f32 0.0, %v3357
    %3359 = vmatmul.bf16.gmra.mxu0 %v3286
    %v3360 = vpop.f32.mrf.mxu0
    %v3361 = vadd.f32 0.0, %v3360
    %v3362 = vpop.f32.mrf.mxu0
    %v3363 = vadd.f32 0.0, %v3362
    %3364 = vmatmul.bf16.gmra.mxu0 %v3289
    %v3365 = vpop.f32.mrf.mxu0
    %v3366 = vadd.f32 0.0, %v3365
    %v3367 = vpop.f32.mrf.mxu0
    %v3368 = vadd.f32 0.0, %v3367
    %3369 = vmatmul.bf16.gmra.mxu0 %v3292
    %v3370 = vpop.f32.mrf.mxu0
    %v3371 = vadd.f32 0.0, %v3370
    %v3372 = vpop.f32.mrf.mxu0
    %v3373 = vadd.f32 0.0, %v3372
    %3374 = vmatmul.bf16.gmra.mxu0 %v3295
    %v3375 = vpop.f32.mrf.mxu0
    %v3376 = vadd.f32 0.0, %v3375
    %v3377 = vpop.f32.mrf.mxu0
    %v3378 = vadd.f32 0.0, %v3377
    %3379 = vmatmul.bf16.gmra.mxu0 %v3298
    %v3380 = vpop.f32.mrf.mxu0
    %v3381 = vadd.f32 0.0, %v3380
    %v3382 = vpop.f32.mrf.mxu0
    %v3383 = vadd.f32 0.0, %v3382
    %3384 = vmatmul.bf16.gmra.mxu0 %v3301
    %v3385 = vpop.f32.mrf.mxu0
    %v3386 = vadd.f32 0.0, %v3385
    %v3387 = vpop.f32.mrf.mxu0
    %v3388 = vadd.f32 0.0, %v3387
    %3389 = vmatmul.bf16.gmra.mxu0 %v3304
    %v3390 = vpop.f32.mrf.mxu0
    %v3391 = vadd.f32 0.0, %v3390
    %v3392 = vpop.f32.mrf.mxu0
    %v3393 = vadd.f32 0.0, %v3392
    %3394 = vdwg.mxu0
    %vm3395 = vcmask 130048
    %3396 = vst.msk [vmem:[#allocation3] sm:$0xff] %vm3395, %v3316
    %3397 = vst.msk [vmem:[#allocation3 + $0x10] sm:$0xff] %vm3395, %v3318
    %3400 = vrot.lane.b32.xlu0 %v3321, 16
    %v3401 = vpop.permute.xlu0 %3400
    %3402 = vrot.lane.b32.xlu0 %v3323, 16
    %v3403 = vpop.permute.xlu0 %3402
    %vm3406 = vcmask 261248
    %3407 = vst.msk [vmem:[#allocation3] sm:$0xff] %vm3406, %v3401
    %3408 = vst.msk [vmem:[#allocation3 + $0x10] sm:$0xff] %vm3406, %v3403
    %3411 = vrot.lane.b32.xlu0 %v3326, 32
    %v3412 = vpop.permute.xlu0 %3411
    %3413 = vrot.lane.b32.xlu0 %v3328, 32
    %v3414 = vpop.permute.xlu0 %3413
    %vm3417 = vcmask 392448
    %3418 = vst.msk [vmem:[#allocation3] sm:$0xff] %vm3417, %v3412
    %3419 = vst.msk [vmem:[#allocation3 + $0x10] sm:$0xff] %vm3417, %v3414
    %3422 = vrot.lane.b32.xlu0 %v3331, 48
    %v3423 = vpop.permute.xlu0 %3422
    %3424 = vrot.lane.b32.xlu0 %v3333, 48
    %v3425 = vpop.permute.xlu0 %3424
    %vm3428 = vcmask 523648
    %3429 = vst.msk [vmem:[#allocation3] sm:$0xff] %vm3428, %v3423
    %3430 = vst.msk [vmem:[#allocation3 + $0x10] sm:$0xff] %vm3428, %v3425
    %3433 = vrot.lane.b32.xlu0 %v3336, 64
    %v3434 = vpop.permute.xlu0 %3433
    %3435 = vrot.lane.b32.xlu0 %v3338, 64
    %v3436 = vpop.permute.xlu0 %3435
    %vm3439 = vcmask 654848
    %3440 = vst.msk [vmem:[#allocation3] sm:$0xff] %vm3439, %v3434
    %3441 = vst.msk [vmem:[#allocation3 + $0x10] sm:$0xff] %vm3439, %v3436
    %3444 = vrot.lane.b32.xlu0 %v3341, 80
    %v3445 = vpop.permute.xlu0 %3444
    %3446 = vrot.lane.b32.xlu0 %v3343, 80
    %v3447 = vpop.permute.xlu0 %3446
    %vm3450 = vcmask 786048
    %3451 = vst.msk [vmem:[#allocation3] sm:$0xff] %vm3450, %v3445
    %3452 = vst.msk [vmem:[#allocation3 + $0x10] sm:$0xff] %vm3450, %v3447
    %3455 = vrot.lane.b32.xlu0 %v3346, 96
    %v3456 = vpop.permute.xlu0 %3455
    %3457 = vrot.lane.b32.xlu0 %v3348, 96
    %v3458 = vpop.permute.xlu0 %3457
    %vm3461 = vcmask 917248
    %3462 = vst.msk [vmem:[#allocation3] sm:$0xff] %vm3461, %v3456
    %3463 = vst.msk [vmem:[#allocation3 + $0x10] sm:$0xff] %vm3461, %v3458
    %3466 = vrot.lane.b32.xlu0 %v3351, 112
    %v3467 = vpop.permute.xlu0 %3466
    %3468 = vrot.lane.b32.xlu0 %v3353, 112
    %v3469 = vpop.permute.xlu0 %3468
    %vm3472 = vcmask 1048448
    %3473 = vst.msk [vmem:[#allocation3] sm:$0xff] %vm3472, %v3467
    %3474 = vst.msk [vmem:[#allocation3 + $0x10] sm:$0xff] %vm3472, %v3469
    %3475 = vst.msk [vmem:[#allocation3 + $0x8] sm:$0xff] %vm3395, %v3356
    %3476 = vst.msk [vmem:[#allocation3 + $0x18] sm:$0xff] %vm3395, %v3358
    %3479 = vrot.lane.b32.xlu0 %v3361, 16
    %v3480 = vpop.permute.xlu0 %3479
    %3481 = vrot.lane.b32.xlu0 %v3363, 16
    %v3482 = vpop.permute.xlu0 %3481
    %3485 = vst.msk [vmem:[#allocation3 + $0x8] sm:$0xff] %vm3406, %v3480
    %3486 = vst.msk [vmem:[#allocation3 + $0x18] sm:$0xff] %vm3406, %v3482
    %3489 = vrot.lane.b32.xlu0 %v3366, 32
    %v3490 = vpop.permute.xlu0 %3489
    %3491 = vrot.lane.b32.xlu0 %v3368, 32
    %v3492 = vpop.permute.xlu0 %3491
    %3495 = vst.msk [vmem:[#allocation3 + $0x8] sm:$0xff] %vm3417, %v3490
    %3496 = vst.msk [vmem:[#allocation3 + $0x18] sm:$0xff] %vm3417, %v3492
    %3499 = vrot.lane.b32.xlu0 %v3371, 48
    %v3500 = vpop.permute.xlu0 %3499
    %3501 = vrot.lane.b32.xlu0 %v3373, 48
    %v3502 = vpop.permute.xlu0 %3501
    %3505 = vst.msk [vmem:[#allocation3 + $0x8] sm:$0xff] %vm3428, %v3500
    %3506 = vst.msk [vmem:[#allocation3 + $0x18] sm:$0xff] %vm3428, %v3502
    %3509 = vrot.lane.b32.xlu0 %v3376, 64
    %v3510 = vpop.permute.xlu0 %3509
    %3511 = vrot.lane.b32.xlu0 %v3378, 64
    %v3512 = vpop.permute.xlu0 %3511
    %3515 = vst.msk [vmem:[#allocation3 + $0x8] sm:$0xff] %vm3439, %v3510
    %3516 = vst.msk [vmem:[#allocation3 + $0x18] sm:$0xff] %vm3439, %v3512
    %3519 = vrot.lane.b32.xlu0 %v3381, 80
    %v3520 = vpop.permute.xlu0 %3519
    %3521 = vrot.lane.b32.xlu0 %v3383, 80
    %v3522 = vpop.permute.xlu0 %3521
    %3525 = vst.msk [vmem:[#allocation3 + $0x8] sm:$0xff] %vm3450, %v3520
    %3526 = vst.msk [vmem:[#allocation3 + $0x18] sm:$0xff] %vm3450, %v3522
    %3529 = vrot.lane.b32.xlu0 %v3386, 96
    %v3530 = vpop.permute.xlu0 %3529
    %3531 = vrot.lane.b32.xlu0 %v3388, 96
    %v3532 = vpop.permute.xlu0 %3531
    %3535 = vst.msk [vmem:[#allocation3 + $0x8] sm:$0xff] %vm3461, %v3530
    %3536 = vst.msk [vmem:[#allocation3 + $0x18] sm:$0xff] %vm3461, %v3532
    %3539 = vrot.lane.b32.xlu0 %v3391, 112
    %v3540 = vpop.permute.xlu0 %3539
    %3541 = vrot.lane.b32.xlu0 %v3393, 112
    %v3542 = vpop.permute.xlu0 %3541
    %3545 = vst.msk [vmem:[#allocation3 + $0x8] sm:$0xff] %vm3472, %v3540
    %3546 = vst.msk [vmem:[#allocation3 + $0x18] sm:$0xff] %vm3472, %v3542
    %v3547 = vld [vmem:[#allocation3] sm:$0xff]
    %v3548 = vld [vmem:[#allocation3 + $0x8] sm:$0xff]
    %v3549 = vld [vmem:[#allocation3 + $0x10] sm:$0xff]
    %v3550 = vld [vmem:[#allocation3 + $0x18] sm:$0xff]
    %v3551 = vpack.c.bf16 %v3549, %v3547
    %v3552 = vpack.c.bf16 %v3550, %v3548
    %v3553 = vld [vmem:[%s7] sm:$0xf]
    %v3554 = vld [vmem:[%s7 + $0x4] sm:$0xf]
    %v3555 = vld [vmem:[%s7 + $0x8] sm:$0xf]
    %v3556 = vld [vmem:[%s7 + $0xc] sm:$0xf]
    %v3557 = vld [vmem:[%s7 + $0x10] sm:$0xf]
    %v3558 = vld [vmem:[%s7 + $0x14] sm:$0xf]
    %v3559 = vld [vmem:[%s7 + $0x18] sm:$0xf]
    %v3560 = vld [vmem:[%s7 + $0x1c] sm:$0xf]
    %v3561 = vld [vmem:[%s7 + $0x20] sm:$0xf]
    %v3562 = vld [vmem:[%s7 + $0x24] sm:$0xf]
    %v3563 = vld [vmem:[%s7 + $0x28] sm:$0xf]
    %v3564 = vld [vmem:[%s7 + $0x2c] sm:$0xf]
    %v3565 = vld [vmem:[%s7 + $0x30] sm:$0xf]
    %v3566 = vld [vmem:[%s7 + $0x34] sm:$0xf]
    %v3567 = vld [vmem:[%s7 + $0x38] sm:$0xf]
    %v3568 = vld [vmem:[%s7 + $0x3c] sm:$0xf]
    %v3569 = vld [vmem:[%s7 + $0x40] sm:$0xf]
    %v3570 = vld [vmem:[%s7 + $0x44] sm:$0xf]
    %v3571 = vld [vmem:[%s7 + $0x48] sm:$0xf]
    %v3572 = vld [vmem:[%s7 + $0x4c] sm:$0xf]
    %v3573 = vld [vmem:[%s7 + $0x50] sm:$0xf]
    %v3574 = vld [vmem:[%s7 + $0x54] sm:$0xf]
    %v3575 = vld [vmem:[%s7 + $0x58] sm:$0xf]
    %v3576 = vld [vmem:[%s7 + $0x5c] sm:$0xf]
    %v3577 = vld [vmem:[%s7 + $0x60] sm:$0xf]
    %v3578 = vld [vmem:[%s7 + $0x64] sm:$0xf]
    %v3579 = vld [vmem:[%s7 + $0x68] sm:$0xf]
    %v3580 = vld [vmem:[%s7 + $0x6c] sm:$0xf]
    %v3581 = vld [vmem:[%s7 + $0x70] sm:$0xf]
    %v3582 = vld [vmem:[%s7 + $0x74] sm:$0xf]
    %v3583 = vld [vmem:[%s7 + $0x78] sm:$0xf]
    %v3584 = vld [vmem:[%s7 + $0x7c] sm:$0xf]
    %v3585 = vld [vmem:[%s8] sm:$0x1]
    %v3587 = vperm.slane %v3585, 0
    %v3621 = vunpack.c.l.b16 %v3553
    %v3622 = vunpack.c.l.b16 %v3554
    %v3623 = vunpack.c.l.b16 %v3555
    %v3624 = vunpack.c.l.b16 %v3556
    %v3625 = vunpack.c.l.b16 %v3557
    %v3626 = vunpack.c.l.b16 %v3558
    %v3627 = vunpack.c.l.b16 %v3559
    %v3628 = vunpack.c.l.b16 %v3560
    %v3629 = vunpack.c.l.b16 %v3561
    %v3630 = vunpack.c.l.b16 %v3562
    %v3631 = vunpack.c.l.b16 %v3563
    %v3632 = vunpack.c.l.b16 %v3564
    %v3633 = vunpack.c.l.b16 %v3565
    %v3634 = vunpack.c.l.b16 %v3566
    %v3635 = vunpack.c.l.b16 %v3567
    %v3636 = vunpack.c.l.b16 %v3568
    %v3637 = vunpack.c.l.b16 %v3569
    %v3638 = vunpack.c.l.b16 %v3570
    %v3639 = vunpack.c.l.b16 %v3571
    %v3640 = vunpack.c.l.b16 %v3572
    %v3641 = vunpack.c.l.b16 %v3573
    %v3642 = vunpack.c.l.b16 %v3574
    %v3643 = vunpack.c.l.b16 %v3575
    %v3644 = vunpack.c.l.b16 %v3576
    %v3645 = vunpack.c.l.b16 %v3577
    %v3646 = vunpack.c.l.b16 %v3578
    %v3647 = vunpack.c.l.b16 %v3579
    %v3648 = vunpack.c.l.b16 %v3580
    %v3649 = vunpack.c.l.b16 %v3581
    %v3650 = vunpack.c.l.b16 %v3582
    %v3651 = vunpack.c.l.b16 %v3583
    %v3652 = vunpack.c.l.b16 %v3584
    %v3653 = vpack.c.b16 %v3622, %v3621
    %v3654 = vpack.c.b16 %v3624, %v3623
    %v3655 = vpack.c.b16 %v3626, %v3625
    %v3656 = vpack.c.b16 %v3628, %v3627
    %v3657 = vpack.c.b16 %v3630, %v3629
    %v3658 = vpack.c.b16 %v3632, %v3631
    %v3659 = vpack.c.b16 %v3634, %v3633
    %v3660 = vpack.c.b16 %v3636, %v3635
    %v3661 = vpack.c.b16 %v3638, %v3637
    %v3662 = vpack.c.b16 %v3640, %v3639
    %v3663 = vpack.c.b16 %v3642, %v3641
    %v3664 = vpack.c.b16 %v3644, %v3643
    %v3665 = vpack.c.b16 %v3646, %v3645
    %v3666 = vpack.c.b16 %v3648, %v3647
    %v3667 = vpack.c.b16 %v3650, %v3649
    %v3668 = vpack.c.b16 %v3652, %v3651
    %3685 = vmatpush.bf16.msra.mxu0 %v3660
    %3686 = vmatpush.bf16.msra.mxu0 %v3659
    %3687 = vmatpush.bf16.msra.mxu0 %v3658
    %3688 = vmatpush.bf16.msra.mxu0 %v3657
    %3689 = vmatpush.bf16.msra.mxu0 %v3656
    %3690 = vmatpush.bf16.msra.mxu0 %v3655
    %3691 = vmatpush.bf16.msra.mxu0 %v3654
    %3692 = vmatpush.bf16.msra.mxu0 %v3653
    %3693 = vmatmul.bf16.gmra.mxu0 %v3551
    %v3694 = vpop.f32.mrf.mxu0
    %v3695 = vadd.f32 %v3587, %v3694
    %v3696 = vpop.f32.mrf.mxu0
    %v3697 = vadd.f32 %v3587, %v3696
    %3698 = vdwg.mxu0
    %3699 = vmatpush.bf16.msra.mxu0 %v3668
    %3700 = vmatpush.bf16.msra.mxu0 %v3667
    %3701 = vmatpush.bf16.msra.mxu0 %v3666
    %3702 = vmatpush.bf16.msra.mxu0 %v3665
    %3703 = vmatpush.bf16.msra.mxu0 %v3664
    %3704 = vmatpush.bf16.msra.mxu0 %v3663
    %3705 = vmatpush.bf16.msra.mxu0 %v3662
    %3706 = vmatpush.bf16.msra.mxu0 %v3661
    %3707 = vmatmul.bf16.gmra.mxu0 %v3552
    %v3708 = vpop.f32.mrf.mxu0
    %v3709 = vadd.f32 %v3695, %v3708
    %v3710 = vpop.f32.mrf.mxu0
    %v3711 = vadd.f32 %v3697, %v3710
    %3712 = vdwg.mxu0
    %v3713 = vmax.f32 %v3709, 0.0
    %v3714 = vmax.f32 %v3711, 0.0
    %v3715 = vpack.c.bf16 %v3714, %v3713
    %v3716 = vld [vmem:[%s9] sm:$0xf]
    %v3717 = vld [vmem:[%s9 + $0x4] sm:$0xf]
    %v3718 = vld [vmem:[%s9 + $0x8] sm:$0xf]
    %v3719 = vld [vmem:[%s9 + $0xc] sm:$0xf]
    %v3720 = vld [vmem:[%s10] sm:$0x1]
    %v3722 = vperm.slane %v3720, 0
    %v3728 = vunpack.c.l.b16 %v3716
    %v3729 = vunpack.c.l.b16 %v3717
    %v3730 = vunpack.c.l.b16 %v3718
    %v3731 = vunpack.c.l.b16 %v3719
    %v3732 = vpack.c.b16 %v3729, %v3728
    %v3733 = vpack.c.b16 %v3731, %v3730
    %vm3736 = vcmask 261120
    %v3738 = vsel %vm3736, %v3715, 0
    %3740 = vmatpush.bf16.msra.mxu0 0
    %3741 = vmatpush.bf16.msra.mxu0 0
    %3742 = vmatpush.bf16.msra.mxu0 0
    %3743 = vmatpush.bf16.msra.mxu0 0
    %3744 = vmatpush.bf16.msra.mxu0 0
    %3745 = vmatpush.bf16.msra.mxu0 0
    %3746 = vmatpush.bf16.msra.mxu0 %v3733
    %3747 = vmatpush.bf16.msra.mxu0 %v3732
    %3748 = vmatmul.bf16.gmra.mxu0 %v3738
    %v3749 = vpop.f32.mrf.mxu0
    %v3750 = vadd.f32 %v3722, %v3749
    %v3751 = vpop.f32.mrf.mxu0
    %v3752 = vadd.f32 %v3722, %v3751
    %3753 = vdwg.mxu0
    %3754 = vst.msk [vmem:[#allocation4] sm:$0xff] %vm2400, %v3750
    %3755 = vst.msk [vmem:[#allocation4 + $0x8] sm:$0xff] %vm2400, %v3752
    %v3756 = vld [vmem:[%s3] sm:$0xff]
    %v3757 = vld [vmem:[%s3 + $0x8] sm:$0xff]
    %v3758 = vld [vmem:[%s3 + $0x10] sm:$0xff]
    %v3759 = vld [vmem:[%s3 + $0x18] sm:$0xff]
    %v3760 = vld [vmem:[%s3 + $0x20] sm:$0xff]
    %v3761 = vld [vmem:[%s3 + $0x28] sm:$0xff]
    %v3762 = vld [vmem:[%s3 + $0x30] sm:$0xff]
    %v3763 = vld [vmem:[%s3 + $0x38] sm:$0xff]
    %v3764 = vld [vmem:[%s3 + $0x40] sm:$0xff]
    %v3765 = vld [vmem:[%s3 + $0x48] sm:$0xff]
    %v3766 = vld [vmem:[%s3 + $0x50] sm:$0xff]
    %v3767 = vld [vmem:[%s3 + $0x58] sm:$0xff]
    %v3768 = vld [vmem:[%s3 + $0x60] sm:$0xff]
    %v3769 = vld [vmem:[%s3 + $0x68] sm:$0xff]
    %v3770 = vld [vmem:[%s3 + $0x70] sm:$0xff]
    %v3771 = vld [vmem:[%s3 + $0x78] sm:$0xff]
    %v3772 = vld [vmem:[%s3 + $0x80] sm:$0xff]
    %v3773 = vld [vmem:[%s3 + $0x88] sm:$0xff]
    %v3774 = vld [vmem:[%s3 + $0x90] sm:$0xff]
    %v3775 = vld [vmem:[%s3 + $0x98] sm:$0xff]
    %v3776 = vld [vmem:[%s3 + $0xa0] sm:$0xff]
    %v3777 = vld [vmem:[%s3 + $0xa8] sm:$0xff]
    %v3778 = vld [vmem:[%s3 + $0xb0] sm:$0xff]
    %v3779 = vld [vmem:[%s3 + $0xb8] sm:$0xff]
    %v3780 = vld [vmem:[%s3 + $0xc0] sm:$0xff]
    %v3781 = vld [vmem:[%s3 + $0xc8] sm:$0xff]
    %v3782 = vld [vmem:[%s3 + $0xd0] sm:$0xff]
    %v3783 = vld [vmem:[%s3 + $0xd8] sm:$0xff]
    %v3784 = vld [vmem:[%s3 + $0xe0] sm:$0xff]
    %v3785 = vld [vmem:[%s3 + $0xe8] sm:$0xff]
    %v3786 = vld [vmem:[%s3 + $0xf0] sm:$0xff]
    %v3787 = vld [vmem:[%s3 + $0xf8] sm:$0xff]
    %v3788 = vld [vmem:[%s3 + $0x100] sm:$0xff]
    %v3789 = vld [vmem:[%s3 + $0x108] sm:$0xff]
    %v3790 = vld [vmem:[%s3 + $0x110] sm:$0xff]
    %v3791 = vld [vmem:[%s3 + $0x118] sm:$0xff]
    %v3792 = vld [vmem:[%s3 + $0x120] sm:$0xff]
    %v3793 = vld [vmem:[%s3 + $0x128] sm:$0xff]
    %v3794 = vld [vmem:[%s3 + $0x130] sm:$0xff]
    %v3795 = vld [vmem:[%s3 + $0x138] sm:$0xff]
    %v3796 = vld [vmem:[%s3 + $0x140] sm:$0xff]
    %v3797 = vld [vmem:[%s3 + $0x148] sm:$0xff]
    %v3798 = vld [vmem:[%s3 + $0x150] sm:$0xff]
    %v3799 = vld [vmem:[%s3 + $0x158] sm:$0xff]
    %v3800 = vld [vmem:[%s3 + $0x160] sm:$0xff]
    %v3801 = vld [vmem:[%s3 + $0x168] sm:$0xff]
    %v3802 = vld [vmem:[%s3 + $0x170] sm:$0xff]
    %v3803 = vld [vmem:[%s3 + $0x178] sm:$0xff]
    %v3804 = vld [vmem:[%s3 + $0x180] sm:$0xff]
    %v3805 = vld [vmem:[%s3 + $0x188] sm:$0xff]
    %v3806 = vld [vmem:[%s3 + $0x190] sm:$0xff]
    %v3807 = vld [vmem:[%s3 + $0x198] sm:$0xff]
    %v3808 = vld [vmem:[%s3 + $0x1a0] sm:$0xff]
    %v3809 = vld [vmem:[%s3 + $0x1a8] sm:$0xff]
    %v3810 = vld [vmem:[%s3 + $0x1b0] sm:$0xff]
    %v3811 = vld [vmem:[%s3 + $0x1b8] sm:$0xff]
    %v3812 = vld [vmem:[%s3 + $0x1c0] sm:$0xff]
    %v3813 = vld [vmem:[%s3 + $0x1c8] sm:$0xff]
    %v3814 = vld [vmem:[%s3 + $0x1d0] sm:$0xff]
    %v3815 = vld [vmem:[%s3 + $0x1d8] sm:$0xff]
    %v3816 = vld [vmem:[%s3 + $0x1e0] sm:$0xff]
    %v3817 = vld [vmem:[%s3 + $0x1e8] sm:$0xff]
    %v3818 = vld [vmem:[%s3 + $0x1f0] sm:$0xff]
    %v3819 = vld [vmem:[%s3 + $0x1f8] sm:$0xff]
    %v3820 = vld [vmem:[%s3 + $0x200] sm:$0xff]
    %v3821 = vld [vmem:[%s3 + $0x208] sm:$0xff]
    %v3822 = vld [vmem:[%s3 + $0x210] sm:$0xff]
    %v3823 = vld [vmem:[%s3 + $0x218] sm:$0xff]
    %v3824 = vld [vmem:[%s3 + $0x220] sm:$0xff]
    %v3825 = vld [vmem:[%s3 + $0x228] sm:$0xff]
    %v3826 = vld [vmem:[%s3 + $0x230] sm:$0xff]
    %v3827 = vld [vmem:[%s3 + $0x238] sm:$0xff]
    %v3828 = vld [vmem:[%s3 + $0x240] sm:$0xff]
    %v3829 = vld [vmem:[%s3 + $0x248] sm:$0xff]
    %v3830 = vld [vmem:[%s3 + $0x250] sm:$0xff]
    %v3831 = vld [vmem:[%s3 + $0x258] sm:$0xff]
    %v3832 = vld [vmem:[%s3 + $0x260] sm:$0xff]
    %v3833 = vld [vmem:[%s3 + $0x268] sm:$0xff]
    %v3834 = vld [vmem:[%s3 + $0x270] sm:$0xff]
    %v3835 = vld [vmem:[%s3 + $0x278] sm:$0xff]
    %v3836 = vld [vmem:[%s3 + $0x280] sm:$0xff]
    %v3837 = vld [vmem:[%s3 + $0x288] sm:$0xff]
    %v3838 = vld [vmem:[%s3 + $0x290] sm:$0xff]
    %v3839 = vld [vmem:[%s3 + $0x298] sm:$0xff]
    %v3840 = vld [vmem:[%s3 + $0x2a0] sm:$0xff]
    %v3841 = vld [vmem:[%s3 + $0x2a8] sm:$0xff]
    %v3842 = vld [vmem:[%s3 + $0x2b0] sm:$0xff]
    %v3843 = vld [vmem:[%s3 + $0x2b8] sm:$0xff]
    %v3844 = vld [vmem:[%s3 + $0x2c0] sm:$0xff]
    %v3845 = vld [vmem:[%s3 + $0x2c8] sm:$0xff]
    %v3846 = vld [vmem:[%s3 + $0x2d0] sm:$0xff]
    %v3847 = vld [vmem:[%s3 + $0x2d8] sm:$0xff]
    %v3848 = vld [vmem:[%s3 + $0x2e0] sm:$0xff]
    %v3849 = vld [vmem:[%s3 + $0x2e8] sm:$0xff]
    %v3850 = vld [vmem:[%s3 + $0x2f0] sm:$0xff]
    %v3851 = vld [vmem:[%s3 + $0x2f8] sm:$0xff]
    %v3852 = vld [vmem:[%s3 + $0x300] sm:$0xff]
    %v3853 = vld [vmem:[%s3 + $0x308] sm:$0xff]
    %v3854 = vld [vmem:[%s3 + $0x310] sm:$0xff]
    %v3855 = vld [vmem:[%s3 + $0x318] sm:$0xff]
    %v3856 = vld [vmem:[%s3 + $0x320] sm:$0xff]
    %v3857 = vld [vmem:[%s3 + $0x328] sm:$0xff]
    %v3858 = vld [vmem:[%s3 + $0x330] sm:$0xff]
    %v3859 = vld [vmem:[%s3 + $0x338] sm:$0xff]
    %v3860 = vld [vmem:[%s3 + $0x340] sm:$0xff]
    %v3861 = vld [vmem:[%s3 + $0x348] sm:$0xff]
    %v3862 = vld [vmem:[%s3 + $0x350] sm:$0xff]
    %v3863 = vld [vmem:[%s3 + $0x358] sm:$0xff]
    %v3864 = vld [vmem:[%s3 + $0x360] sm:$0xff]
    %v3865 = vld [vmem:[%s3 + $0x368] sm:$0xff]
    %v3866 = vld [vmem:[%s3 + $0x370] sm:$0xff]
    %v3867 = vld [vmem:[%s3 + $0x378] sm:$0xff]
    %v3868 = vld [vmem:[%s3 + $0x380] sm:$0xff]
    %v3869 = vld [vmem:[%s3 + $0x388] sm:$0xff]
    %v3870 = vld [vmem:[%s3 + $0x390] sm:$0xff]
    %v3871 = vld [vmem:[%s3 + $0x398] sm:$0xff]
    %v3872 = vld [vmem:[%s3 + $0x3a0] sm:$0xff]
    %v3873 = vld [vmem:[%s3 + $0x3a8] sm:$0xff]
    %v3874 = vld [vmem:[%s3 + $0x3b0] sm:$0xff]
    %v3875 = vld [vmem:[%s3 + $0x3b8] sm:$0xff]
    %v3876 = vld [vmem:[%s3 + $0x3c0] sm:$0xff]
    %v3877 = vld [vmem:[%s3 + $0x3c8] sm:$0xff]
    %v3878 = vld [vmem:[%s3 + $0x3d0] sm:$0xff]
    %v3879 = vld [vmem:[%s3 + $0x3d8] sm:$0xff]
    %v3880 = vld [vmem:[%s3 + $0x3e0] sm:$0xff]
    %v3881 = vld [vmem:[%s3 + $0x3e8] sm:$0xff]
    %v3882 = vld [vmem:[%s3 + $0x3f0] sm:$0xff]
    %v3883 = vld [vmem:[%s3 + $0x3f8] sm:$0xff]
    %v3884 = vpack.c.bf16 %v927, %v926
    %v3885 = vpack.c.bf16 %v929, %v928
    %v3886 = vpack.c.bf16 %v931, %v930
    %v3887 = vpack.c.bf16 %v933, %v932
    %v3888 = vpack.c.bf16 %v935, %v934
    %v3889 = vpack.c.bf16 %v937, %v936
    %v3890 = vpack.c.bf16 %v939, %v938
    %v3891 = vpack.c.bf16 %v941, %v940
    %v3892 = vpack.c.bf16 %v943, %v942
    %v3893 = vpack.c.bf16 %v945, %v944
    %v3894 = vpack.c.bf16 %v947, %v946
    %v3895 = vpack.c.bf16 %v949, %v948
    %v3896 = vpack.c.bf16 %v951, %v950
    %v3897 = vpack.c.bf16 %v953, %v952
    %v3898 = vpack.c.bf16 %v955, %v954
    %v3899 = vpack.c.bf16 %v957, %v956
    %v4028 = vunpack.c.l.b16 %v3756
    %v4029 = vunpack.c.h.b16 %v3756
    %v4030 = vunpack.c.l.b16 %v3757
    %v4031 = vunpack.c.h.b16 %v3757
    %v4032 = vunpack.c.l.b16 %v3758
    %v4033 = vunpack.c.h.b16 %v3758
    %v4034 = vunpack.c.l.b16 %v3759
    %v4035 = vunpack.c.h.b16 %v3759
    %v4036 = vunpack.c.l.b16 %v3760
    %v4037 = vunpack.c.h.b16 %v3760
    %v4038 = vunpack.c.l.b16 %v3761
    %v4039 = vunpack.c.h.b16 %v3761
    %v4040 = vunpack.c.l.b16 %v3762
    %v4041 = vunpack.c.h.b16 %v3762
    %v4042 = vunpack.c.l.b16 %v3763
    %v4043 = vunpack.c.h.b16 %v3763
    %v4044 = vunpack.c.l.b16 %v3764
    %v4045 = vunpack.c.h.b16 %v3764
    %v4046 = vunpack.c.l.b16 %v3765
    %v4047 = vunpack.c.h.b16 %v3765
    %v4048 = vunpack.c.l.b16 %v3766
    %v4049 = vunpack.c.h.b16 %v3766
    %v4050 = vunpack.c.l.b16 %v3767
    %v4051 = vunpack.c.h.b16 %v3767
    %v4052 = vunpack.c.l.b16 %v3768
    %v4053 = vunpack.c.h.b16 %v3768
    %v4054 = vunpack.c.l.b16 %v3769
    %v4055 = vunpack.c.h.b16 %v3769
    %v4056 = vunpack.c.l.b16 %v3770
    %v4057 = vunpack.c.h.b16 %v3770
    %v4058 = vunpack.c.l.b16 %v3771
    %v4059 = vunpack.c.h.b16 %v3771
    %v4060 = vunpack.c.l.b16 %v3772
    %v4061 = vunpack.c.h.b16 %v3772
    %v4062 = vunpack.c.l.b16 %v3773
    %v4063 = vunpack.c.h.b16 %v3773
    %v4064 = vunpack.c.l.b16 %v3774
    %v4065 = vunpack.c.h.b16 %v3774
    %v4066 = vunpack.c.l.b16 %v3775
    %v4067 = vunpack.c.h.b16 %v3775
    %v4068 = vunpack.c.l.b16 %v3776
    %v4069 = vunpack.c.h.b16 %v3776
    %v4070 = vunpack.c.l.b16 %v3777
    %v4071 = vunpack.c.h.b16 %v3777
    %v4072 = vunpack.c.l.b16 %v3778
    %v4073 = vunpack.c.h.b16 %v3778
    %v4074 = vunpack.c.l.b16 %v3779
    %v4075 = vunpack.c.h.b16 %v3779
    %v4076 = vunpack.c.l.b16 %v3780
    %v4077 = vunpack.c.h.b16 %v3780
    %v4078 = vunpack.c.l.b16 %v3781
    %v4079 = vunpack.c.h.b16 %v3781
    %v4080 = vunpack.c.l.b16 %v3782
    %v4081 = vunpack.c.h.b16 %v3782
    %v4082 = vunpack.c.l.b16 %v3783
    %v4083 = vunpack.c.h.b16 %v3783
    %v4084 = vunpack.c.l.b16 %v3784
    %v4085 = vunpack.c.h.b16 %v3784
    %v4086 = vunpack.c.l.b16 %v3785
    %v4087 = vunpack.c.h.b16 %v3785
    %v4088 = vunpack.c.l.b16 %v3786
    %v4089 = vunpack.c.h.b16 %v3786
    %v4090 = vunpack.c.l.b16 %v3787
    %v4091 = vunpack.c.h.b16 %v3787
    %v4092 = vunpack.c.l.b16 %v3788
    %v4093 = vunpack.c.h.b16 %v3788
    %v4094 = vunpack.c.l.b16 %v3789
    %v4095 = vunpack.c.h.b16 %v3789
    %v4096 = vunpack.c.l.b16 %v3790
    %v4097 = vunpack.c.h.b16 %v3790
    %v4098 = vunpack.c.l.b16 %v3791
    %v4099 = vunpack.c.h.b16 %v3791
    %v4100 = vunpack.c.l.b16 %v3792
    %v4101 = vunpack.c.h.b16 %v3792
    %v4102 = vunpack.c.l.b16 %v3793
    %v4103 = vunpack.c.h.b16 %v3793
    %v4104 = vunpack.c.l.b16 %v3794
    %v4105 = vunpack.c.h.b16 %v3794
    %v4106 = vunpack.c.l.b16 %v3795
    %v4107 = vunpack.c.h.b16 %v3795
    %v4108 = vunpack.c.l.b16 %v3796
    %v4109 = vunpack.c.h.b16 %v3796
    %v4110 = vunpack.c.l.b16 %v3797
    %v4111 = vunpack.c.h.b16 %v3797
    %v4112 = vunpack.c.l.b16 %v3798
    %v4113 = vunpack.c.h.b16 %v3798
    %v4114 = vunpack.c.l.b16 %v3799
    %v4115 = vunpack.c.h.b16 %v3799
    %v4116 = vunpack.c.l.b16 %v3800
    %v4117 = vunpack.c.h.b16 %v3800
    %v4118 = vunpack.c.l.b16 %v3801
    %v4119 = vunpack.c.h.b16 %v3801
    %v4120 = vunpack.c.l.b16 %v3802
    %v4121 = vunpack.c.h.b16 %v3802
    %v4122 = vunpack.c.l.b16 %v3803
    %v4123 = vunpack.c.h.b16 %v3803
    %v4124 = vunpack.c.l.b16 %v3804
    %v4125 = vunpack.c.h.b16 %v3804
    %v4126 = vunpack.c.l.b16 %v3805
    %v4127 = vunpack.c.h.b16 %v3805
    %v4128 = vunpack.c.l.b16 %v3806
    %v4129 = vunpack.c.h.b16 %v3806
    %v4130 = vunpack.c.l.b16 %v3807
    %v4131 = vunpack.c.h.b16 %v3807
    %v4132 = vunpack.c.l.b16 %v3808
    %v4133 = vunpack.c.h.b16 %v3808
    %v4134 = vunpack.c.l.b16 %v3809
    %v4135 = vunpack.c.h.b16 %v3809
    %v4136 = vunpack.c.l.b16 %v3810
    %v4137 = vunpack.c.h.b16 %v3810
    %v4138 = vunpack.c.l.b16 %v3811
    %v4139 = vunpack.c.h.b16 %v3811
    %v4140 = vunpack.c.l.b16 %v3812
    %v4141 = vunpack.c.h.b16 %v3812
    %v4142 = vunpack.c.l.b16 %v3813
    %v4143 = vunpack.c.h.b16 %v3813
    %v4144 = vunpack.c.l.b16 %v3814
    %v4145 = vunpack.c.h.b16 %v3814
    %v4146 = vunpack.c.l.b16 %v3815
    %v4147 = vunpack.c.h.b16 %v3815
    %v4148 = vunpack.c.l.b16 %v3816
    %v4149 = vunpack.c.h.b16 %v3816
    %v4150 = vunpack.c.l.b16 %v3817
    %v4151 = vunpack.c.h.b16 %v3817
    %v4152 = vunpack.c.l.b16 %v3818
    %v4153 = vunpack.c.h.b16 %v3818
    %v4154 = vunpack.c.l.b16 %v3819
    %v4155 = vunpack.c.h.b16 %v3819
    %v4156 = vunpack.c.l.b16 %v3820
    %v4157 = vunpack.c.h.b16 %v3820
    %v4158 = vunpack.c.l.b16 %v3821
    %v4159 = vunpack.c.h.b16 %v3821
    %v4160 = vunpack.c.l.b16 %v3822
    %v4161 = vunpack.c.h.b16 %v3822
    %v4162 = vunpack.c.l.b16 %v3823
    %v4163 = vunpack.c.h.b16 %v3823
    %v4164 = vunpack.c.l.b16 %v3824
    %v4165 = vunpack.c.h.b16 %v3824
    %v4166 = vunpack.c.l.b16 %v3825
    %v4167 = vunpack.c.h.b16 %v3825
    %v4168 = vunpack.c.l.b16 %v3826
    %v4169 = vunpack.c.h.b16 %v3826
    %v4170 = vunpack.c.l.b16 %v3827
    %v4171 = vunpack.c.h.b16 %v3827
    %v4172 = vunpack.c.l.b16 %v3828
    %v4173 = vunpack.c.h.b16 %v3828
    %v4174 = vunpack.c.l.b16 %v3829
    %v4175 = vunpack.c.h.b16 %v3829
    %v4176 = vunpack.c.l.b16 %v3830
    %v4177 = vunpack.c.h.b16 %v3830
    %v4178 = vunpack.c.l.b16 %v3831
    %v4179 = vunpack.c.h.b16 %v3831
    %v4180 = vunpack.c.l.b16 %v3832
    %v4181 = vunpack.c.h.b16 %v3832
    %v4182 = vunpack.c.l.b16 %v3833
    %v4183 = vunpack.c.h.b16 %v3833
    %v4184 = vunpack.c.l.b16 %v3834
    %v4185 = vunpack.c.h.b16 %v3834
    %v4186 = vunpack.c.l.b16 %v3835
    %v4187 = vunpack.c.h.b16 %v3835
    %v4188 = vunpack.c.l.b16 %v3836
    %v4189 = vunpack.c.h.b16 %v3836
    %v4190 = vunpack.c.l.b16 %v3837
    %v4191 = vunpack.c.h.b16 %v3837
    %v4192 = vunpack.c.l.b16 %v3838
    %v4193 = vunpack.c.h.b16 %v3838
    %v4194 = vunpack.c.l.b16 %v3839
    %v4195 = vunpack.c.h.b16 %v3839
    %v4196 = vunpack.c.l.b16 %v3840
    %v4197 = vunpack.c.h.b16 %v3840
    %v4198 = vunpack.c.l.b16 %v3841
    %v4199 = vunpack.c.h.b16 %v3841
    %v4200 = vunpack.c.l.b16 %v3842
    %v4201 = vunpack.c.h.b16 %v3842
    %v4202 = vunpack.c.l.b16 %v3843
    %v4203 = vunpack.c.h.b16 %v3843
    %v4204 = vunpack.c.l.b16 %v3844
    %v4205 = vunpack.c.h.b16 %v3844
    %v4206 = vunpack.c.l.b16 %v3845
    %v4207 = vunpack.c.h.b16 %v3845
    %v4208 = vunpack.c.l.b16 %v3846
    %v4209 = vunpack.c.h.b16 %v3846
    %v4210 = vunpack.c.l.b16 %v3847
    %v4211 = vunpack.c.h.b16 %v3847
    %v4212 = vunpack.c.l.b16 %v3848
    %v4213 = vunpack.c.h.b16 %v3848
    %v4214 = vunpack.c.l.b16 %v3849
    %v4215 = vunpack.c.h.b16 %v3849
    %v4216 = vunpack.c.l.b16 %v3850
    %v4217 = vunpack.c.h.b16 %v3850
    %v4218 = vunpack.c.l.b16 %v3851
    %v4219 = vunpack.c.h.b16 %v3851
    %v4220 = vunpack.c.l.b16 %v3852
    %v4221 = vunpack.c.h.b16 %v3852
    %v4222 = vunpack.c.l.b16 %v3853
    %v4223 = vunpack.c.h.b16 %v3853
    %v4224 = vunpack.c.l.b16 %v3854
    %v4225 = vunpack.c.h.b16 %v3854
    %v4226 = vunpack.c.l.b16 %v3855
    %v4227 = vunpack.c.h.b16 %v3855
    %v4228 = vunpack.c.l.b16 %v3856
    %v4229 = vunpack.c.h.b16 %v3856
    %v4230 = vunpack.c.l.b16 %v3857
    %v4231 = vunpack.c.h.b16 %v3857
    %v4232 = vunpack.c.l.b16 %v3858
    %v4233 = vunpack.c.h.b16 %v3858
    %v4234 = vunpack.c.l.b16 %v3859
    %v4235 = vunpack.c.h.b16 %v3859
    %v4236 = vunpack.c.l.b16 %v3860
    %v4237 = vunpack.c.h.b16 %v3860
    %v4238 = vunpack.c.l.b16 %v3861
    %v4239 = vunpack.c.h.b16 %v3861
    %v4240 = vunpack.c.l.b16 %v3862
    %v4241 = vunpack.c.h.b16 %v3862
    %v4242 = vunpack.c.l.b16 %v3863
    %v4243 = vunpack.c.h.b16 %v3863
    %v4244 = vunpack.c.l.b16 %v3864
    %v4245 = vunpack.c.h.b16 %v3864
    %v4246 = vunpack.c.l.b16 %v3865
    %v4247 = vunpack.c.h.b16 %v3865
    %v4248 = vunpack.c.l.b16 %v3866
    %v4249 = vunpack.c.h.b16 %v3866
    %v4250 = vunpack.c.l.b16 %v3867
    %v4251 = vunpack.c.h.b16 %v3867
    %v4252 = vunpack.c.l.b16 %v3868
    %v4253 = vunpack.c.h.b16 %v3868
    %v4254 = vunpack.c.l.b16 %v3869
    %v4255 = vunpack.c.h.b16 %v3869
    %v4256 = vunpack.c.l.b16 %v3870
    %v4257 = vunpack.c.h.b16 %v3870
    %v4258 = vunpack.c.l.b16 %v3871
    %v4259 = vunpack.c.h.b16 %v3871
    %v4260 = vunpack.c.l.b16 %v3872
    %v4261 = vunpack.c.h.b16 %v3872
    %v4262 = vunpack.c.l.b16 %v3873
    %v4263 = vunpack.c.h.b16 %v3873
    %v4264 = vunpack.c.l.b16 %v3874
    %v4265 = vunpack.c.h.b16 %v3874
    %v4266 = vunpack.c.l.b16 %v3875
    %v4267 = vunpack.c.h.b16 %v3875
    %v4268 = vunpack.c.l.b16 %v3876
    %v4269 = vunpack.c.h.b16 %v3876
    %v4270 = vunpack.c.l.b16 %v3877
    %v4271 = vunpack.c.h.b16 %v3877
    %v4272 = vunpack.c.l.b16 %v3878
    %v4273 = vunpack.c.h.b16 %v3878
    %v4274 = vunpack.c.l.b16 %v3879
    %v4275 = vunpack.c.h.b16 %v3879
    %v4276 = vunpack.c.l.b16 %v3880
    %v4277 = vunpack.c.h.b16 %v3880
    %v4278 = vunpack.c.l.b16 %v3881
    %v4279 = vunpack.c.h.b16 %v3881
    %v4280 = vunpack.c.l.b16 %v3882
    %v4281 = vunpack.c.h.b16 %v3882
    %v4282 = vunpack.c.l.b16 %v3883
    %v4283 = vunpack.c.h.b16 %v3883
    %v4284 = vpack.c.b16 %v4030, %v4028
    %v4285 = vpack.c.b16 %v4031, %v4029
    %v4286 = vpack.c.b16 %v4034, %v4032
    %v4287 = vpack.c.b16 %v4035, %v4033
    %v4288 = vpack.c.b16 %v4038, %v4036
    %v4289 = vpack.c.b16 %v4039, %v4037
    %v4290 = vpack.c.b16 %v4042, %v4040
    %v4291 = vpack.c.b16 %v4043, %v4041
    %v4292 = vpack.c.b16 %v4046, %v4044
    %v4293 = vpack.c.b16 %v4047, %v4045
    %v4294 = vpack.c.b16 %v4050, %v4048
    %v4295 = vpack.c.b16 %v4051, %v4049
    %v4296 = vpack.c.b16 %v4054, %v4052
    %v4297 = vpack.c.b16 %v4055, %v4053
    %v4298 = vpack.c.b16 %v4058, %v4056
    %v4299 = vpack.c.b16 %v4059, %v4057
    %v4300 = vpack.c.b16 %v4062, %v4060
    %v4301 = vpack.c.b16 %v4063, %v4061
    %v4302 = vpack.c.b16 %v4066, %v4064
    %v4303 = vpack.c.b16 %v4067, %v4065
    %v4304 = vpack.c.b16 %v4070, %v4068
    %v4305 = vpack.c.b16 %v4071, %v4069
    %v4306 = vpack.c.b16 %v4074, %v4072
    %v4307 = vpack.c.b16 %v4075, %v4073
    %v4308 = vpack.c.b16 %v4078, %v4076
    %v4309 = vpack.c.b16 %v4079, %v4077
    %v4310 = vpack.c.b16 %v4082, %v4080
    %v4311 = vpack.c.b16 %v4083, %v4081
    %v4312 = vpack.c.b16 %v4086, %v4084
    %v4313 = vpack.c.b16 %v4087, %v4085
    %v4314 = vpack.c.b16 %v4090, %v4088
    %v4315 = vpack.c.b16 %v4091, %v4089
    %v4316 = vpack.c.b16 %v4094, %v4092
    %v4317 = vpack.c.b16 %v4095, %v4093
    %v4318 = vpack.c.b16 %v4098, %v4096
    %v4319 = vpack.c.b16 %v4099, %v4097
    %v4320 = vpack.c.b16 %v4102, %v4100
    %v4321 = vpack.c.b16 %v4103, %v4101
    %v4322 = vpack.c.b16 %v4106, %v4104
    %v4323 = vpack.c.b16 %v4107, %v4105
    %v4324 = vpack.c.b16 %v4110, %v4108
    %v4325 = vpack.c.b16 %v4111, %v4109
    %v4326 = vpack.c.b16 %v4114, %v4112
    %v4327 = vpack.c.b16 %v4115, %v4113
    %v4328 = vpack.c.b16 %v4118, %v4116
    %v4329 = vpack.c.b16 %v4119, %v4117
    %v4330 = vpack.c.b16 %v4122, %v4120
    %v4331 = vpack.c.b16 %v4123, %v4121
    %v4332 = vpack.c.b16 %v4126, %v4124
    %v4333 = vpack.c.b16 %v4127, %v4125
    %v4334 = vpack.c.b16 %v4130, %v4128
    %v4335 = vpack.c.b16 %v4131, %v4129
    %v4336 = vpack.c.b16 %v4134, %v4132
    %v4337 = vpack.c.b16 %v4135, %v4133
    %v4338 = vpack.c.b16 %v4138, %v4136
    %v4339 = vpack.c.b16 %v4139, %v4137
    %v4340 = vpack.c.b16 %v4142, %v4140
    %v4341 = vpack.c.b16 %v4143, %v4141
    %v4342 = vpack.c.b16 %v4146, %v4144
    %v4343 = vpack.c.b16 %v4147, %v4145
    %v4344 = vpack.c.b16 %v4150, %v4148
    %v4345 = vpack.c.b16 %v4151, %v4149
    %v4346 = vpack.c.b16 %v4154, %v4152
    %v4347 = vpack.c.b16 %v4155, %v4153
    %v4348 = vpack.c.b16 %v4158, %v4156
    %v4349 = vpack.c.b16 %v4159, %v4157
    %v4350 = vpack.c.b16 %v4162, %v4160
    %v4351 = vpack.c.b16 %v4163, %v4161
    %v4352 = vpack.c.b16 %v4166, %v4164
    %v4353 = vpack.c.b16 %v4167, %v4165
    %v4354 = vpack.c.b16 %v4170, %v4168
    %v4355 = vpack.c.b16 %v4171, %v4169
    %v4356 = vpack.c.b16 %v4174, %v4172
    %v4357 = vpack.c.b16 %v4175, %v4173
    %v4358 = vpack.c.b16 %v4178, %v4176
    %v4359 = vpack.c.b16 %v4179, %v4177
    %v4360 = vpack.c.b16 %v4182, %v4180
    %v4361 = vpack.c.b16 %v4183, %v4181
    %v4362 = vpack.c.b16 %v4186, %v4184
    %v4363 = vpack.c.b16 %v4187, %v4185
    %v4364 = vpack.c.b16 %v4190, %v4188
    %v4365 = vpack.c.b16 %v4191, %v4189
    %v4366 = vpack.c.b16 %v4194, %v4192
    %v4367 = vpack.c.b16 %v4195, %v4193
    %v4368 = vpack.c.b16 %v4198, %v4196
    %v4369 = vpack.c.b16 %v4199, %v4197
    %v4370 = vpack.c.b16 %v4202, %v4200
    %v4371 = vpack.c.b16 %v4203, %v4201
    %v4372 = vpack.c.b16 %v4206, %v4204
    %v4373 = vpack.c.b16 %v4207, %v4205
    %v4374 = vpack.c.b16 %v4210, %v4208
    %v4375 = vpack.c.b16 %v4211, %v4209
    %v4376 = vpack.c.b16 %v4214, %v4212
    %v4377 = vpack.c.b16 %v4215, %v4213
    %v4378 = vpack.c.b16 %v4218, %v4216
    %v4379 = vpack.c.b16 %v4219, %v4217
    %v4380 = vpack.c.b16 %v4222, %v4220
    %v4381 = vpack.c.b16 %v4223, %v4221
    %v4382 = vpack.c.b16 %v4226, %v4224
    %v4383 = vpack.c.b16 %v4227, %v4225
    %v4384 = vpack.c.b16 %v4230, %v4228
    %v4385 = vpack.c.b16 %v4231, %v4229
    %v4386 = vpack.c.b16 %v4234, %v4232
    %v4387 = vpack.c.b16 %v4235, %v4233
    %v4388 = vpack.c.b16 %v4238, %v4236
    %v4389 = vpack.c.b16 %v4239, %v4237
    %v4390 = vpack.c.b16 %v4242, %v4240
    %v4391 = vpack.c.b16 %v4243, %v4241
    %v4392 = vpack.c.b16 %v4246, %v4244
    %v4393 = vpack.c.b16 %v4247, %v4245
    %v4394 = vpack.c.b16 %v4250, %v4248
    %v4395 = vpack.c.b16 %v4251, %v4249
    %v4396 = vpack.c.b16 %v4254, %v4252
    %v4397 = vpack.c.b16 %v4255, %v4253
    %v4398 = vpack.c.b16 %v4258, %v4256
    %v4399 = vpack.c.b16 %v4259, %v4257
    %v4400 = vpack.c.b16 %v4262, %v4260
    %v4401 = vpack.c.b16 %v4263, %v4261
    %v4402 = vpack.c.b16 %v4266, %v4264
    %v4403 = vpack.c.b16 %v4267, %v4265
    %v4404 = vpack.c.b16 %v4270, %v4268
    %v4405 = vpack.c.b16 %v4271, %v4269
    %v4406 = vpack.c.b16 %v4274, %v4272
    %v4407 = vpack.c.b16 %v4275, %v4273
    %v4408 = vpack.c.b16 %v4278, %v4276
    %v4409 = vpack.c.b16 %v4279, %v4277
    %v4410 = vpack.c.b16 %v4282, %v4280
    %v4411 = vpack.c.b16 %v4283, %v4281
    %4540 = vmatpush.bf16.msra.mxu0 %v3891
    %4541 = vmatpush.bf16.msra.mxu0 %v3890
    %4542 = vmatpush.bf16.msra.mxu0 %v3889
    %4543 = vmatpush.bf16.msra.mxu0 %v3888
    %4544 = vmatpush.bf16.msra.mxu0 %v3887
    %4545 = vmatpush.bf16.msra.mxu0 %v3886
    %4546 = vmatpush.bf16.msra.mxu0 %v3885
    %4547 = vmatpush.bf16.msra.mxu0 %v3884
    %4548 = vmatmul.bf16.gmra.mxu0 %v4284
    %v4549 = vpop.f32.mrf.mxu0
    %v4550 = vadd.f32 0.0, %v4549
    %v4551 = vpop.f32.mrf.mxu0
    %v4552 = vadd.f32 0.0, %v4551
    %4553 = vmatmul.bf16.gmra.mxu0 %v4286
    %v4554 = vpop.f32.mrf.mxu0
    %v4555 = vadd.f32 0.0, %v4554
    %v4556 = vpop.f32.mrf.mxu0
    %v4557 = vadd.f32 0.0, %v4556
    %4558 = vmatmul.bf16.gmra.mxu0 %v4288
    %v4559 = vpop.f32.mrf.mxu0
    %v4560 = vadd.f32 0.0, %v4559
    %v4561 = vpop.f32.mrf.mxu0
    %v4562 = vadd.f32 0.0, %v4561
    %4563 = vmatmul.bf16.gmra.mxu0 %v4290
    %v4564 = vpop.f32.mrf.mxu0
    %v4565 = vadd.f32 0.0, %v4564
    %v4566 = vpop.f32.mrf.mxu0
    %v4567 = vadd.f32 0.0, %v4566
    %4568 = vmatmul.bf16.gmra.mxu0 %v4292
    %v4569 = vpop.f32.mrf.mxu0
    %v4570 = vadd.f32 0.0, %v4569
    %v4571 = vpop.f32.mrf.mxu0
    %v4572 = vadd.f32 0.0, %v4571
    %4573 = vmatmul.bf16.gmra.mxu0 %v4294
    %v4574 = vpop.f32.mrf.mxu0
    %v4575 = vadd.f32 0.0, %v4574
    %v4576 = vpop.f32.mrf.mxu0
    %v4577 = vadd.f32 0.0, %v4576
    %4578 = vmatmul.bf16.gmra.mxu0 %v4296
    %v4579 = vpop.f32.mrf.mxu0
    %v4580 = vadd.f32 0.0, %v4579
    %v4581 = vpop.f32.mrf.mxu0
    %v4582 = vadd.f32 0.0, %v4581
    %4583 = vmatmul.bf16.gmra.mxu0 %v4298
    %v4584 = vpop.f32.mrf.mxu0
    %v4585 = vadd.f32 0.0, %v4584
    %v4586 = vpop.f32.mrf.mxu0
    %v4587 = vadd.f32 0.0, %v4586
    %4588 = vmatmul.bf16.gmra.mxu0 %v4300
    %v4589 = vpop.f32.mrf.mxu0
    %v4590 = vadd.f32 0.0, %v4589
    %v4591 = vpop.f32.mrf.mxu0
    %v4592 = vadd.f32 0.0, %v4591
    %4593 = vmatmul.bf16.gmra.mxu0 %v4302
    %v4594 = vpop.f32.mrf.mxu0
    %v4595 = vadd.f32 0.0, %v4594
    %v4596 = vpop.f32.mrf.mxu0
    %v4597 = vadd.f32 0.0, %v4596
    %4598 = vmatmul.bf16.gmra.mxu0 %v4304
    %v4599 = vpop.f32.mrf.mxu0
    %v4600 = vadd.f32 0.0, %v4599
    %v4601 = vpop.f32.mrf.mxu0
    %v4602 = vadd.f32 0.0, %v4601
    %4603 = vmatmul.bf16.gmra.mxu0 %v4306
    %v4604 = vpop.f32.mrf.mxu0
    %v4605 = vadd.f32 0.0, %v4604
    %v4606 = vpop.f32.mrf.mxu0
    %v4607 = vadd.f32 0.0, %v4606
    %4608 = vmatmul.bf16.gmra.mxu0 %v4308
    %v4609 = vpop.f32.mrf.mxu0
    %v4610 = vadd.f32 0.0, %v4609
    %v4611 = vpop.f32.mrf.mxu0
    %v4612 = vadd.f32 0.0, %v4611
    %4613 = vmatmul.bf16.gmra.mxu0 %v4310
    %v4614 = vpop.f32.mrf.mxu0
    %v4615 = vadd.f32 0.0, %v4614
    %v4616 = vpop.f32.mrf.mxu0
    %v4617 = vadd.f32 0.0, %v4616
    %4618 = vmatmul.bf16.gmra.mxu0 %v4312
    %v4619 = vpop.f32.mrf.mxu0
    %v4620 = vadd.f32 0.0, %v4619
    %v4621 = vpop.f32.mrf.mxu0
    %v4622 = vadd.f32 0.0, %v4621
    %4623 = vmatmul.bf16.gmra.mxu0 %v4314
    %v4624 = vpop.f32.mrf.mxu0
    %v4625 = vadd.f32 0.0, %v4624
    %v4626 = vpop.f32.mrf.mxu0
    %v4627 = vadd.f32 0.0, %v4626
    %4628 = vmatmul.bf16.gmra.mxu0 %v4316
    %v4629 = vpop.f32.mrf.mxu0
    %v4630 = vadd.f32 0.0, %v4629
    %v4631 = vpop.f32.mrf.mxu0
    %v4632 = vadd.f32 0.0, %v4631
    %4633 = vmatmul.bf16.gmra.mxu0 %v4318
    %v4634 = vpop.f32.mrf.mxu0
    %v4635 = vadd.f32 0.0, %v4634
    %v4636 = vpop.f32.mrf.mxu0
    %v4637 = vadd.f32 0.0, %v4636
    %4638 = vmatmul.bf16.gmra.mxu0 %v4320
    %v4639 = vpop.f32.mrf.mxu0
    %v4640 = vadd.f32 0.0, %v4639
    %v4641 = vpop.f32.mrf.mxu0
    %v4642 = vadd.f32 0.0, %v4641
    %4643 = vmatmul.bf16.gmra.mxu0 %v4322
    %v4644 = vpop.f32.mrf.mxu0
    %v4645 = vadd.f32 0.0, %v4644
    %v4646 = vpop.f32.mrf.mxu0
    %v4647 = vadd.f32 0.0, %v4646
    %4648 = vmatmul.bf16.gmra.mxu0 %v4324
    %v4649 = vpop.f32.mrf.mxu0
    %v4650 = vadd.f32 0.0, %v4649
    %v4651 = vpop.f32.mrf.mxu0
    %v4652 = vadd.f32 0.0, %v4651
    %4653 = vmatmul.bf16.gmra.mxu0 %v4326
    %v4654 = vpop.f32.mrf.mxu0
    %v4655 = vadd.f32 0.0, %v4654
    %v4656 = vpop.f32.mrf.mxu0
    %v4657 = vadd.f32 0.0, %v4656
    %4658 = vmatmul.bf16.gmra.mxu0 %v4328
    %v4659 = vpop.f32.mrf.mxu0
    %v4660 = vadd.f32 0.0, %v4659
    %v4661 = vpop.f32.mrf.mxu0
    %v4662 = vadd.f32 0.0, %v4661
    %4663 = vmatmul.bf16.gmra.mxu0 %v4330
    %v4664 = vpop.f32.mrf.mxu0
    %v4665 = vadd.f32 0.0, %v4664
    %v4666 = vpop.f32.mrf.mxu0
    %v4667 = vadd.f32 0.0, %v4666
    %4668 = vmatmul.bf16.gmra.mxu0 %v4332
    %v4669 = vpop.f32.mrf.mxu0
    %v4670 = vadd.f32 0.0, %v4669
    %v4671 = vpop.f32.mrf.mxu0
    %v4672 = vadd.f32 0.0, %v4671
    %4673 = vmatmul.bf16.gmra.mxu0 %v4334
    %v4674 = vpop.f32.mrf.mxu0
    %v4675 = vadd.f32 0.0, %v4674
    %v4676 = vpop.f32.mrf.mxu0
    %v4677 = vadd.f32 0.0, %v4676
    %4678 = vmatmul.bf16.gmra.mxu0 %v4336
    %v4679 = vpop.f32.mrf.mxu0
    %v4680 = vadd.f32 0.0, %v4679
    %v4681 = vpop.f32.mrf.mxu0
    %v4682 = vadd.f32 0.0, %v4681
    %4683 = vmatmul.bf16.gmra.mxu0 %v4338
    %v4684 = vpop.f32.mrf.mxu0
    %v4685 = vadd.f32 0.0, %v4684
    %v4686 = vpop.f32.mrf.mxu0
    %v4687 = vadd.f32 0.0, %v4686
    %4688 = vmatmul.bf16.gmra.mxu0 %v4340
    %v4689 = vpop.f32.mrf.mxu0
    %v4690 = vadd.f32 0.0, %v4689
    %v4691 = vpop.f32.mrf.mxu0
    %v4692 = vadd.f32 0.0, %v4691
    %4693 = vmatmul.bf16.gmra.mxu0 %v4342
    %v4694 = vpop.f32.mrf.mxu0
    %v4695 = vadd.f32 0.0, %v4694
    %v4696 = vpop.f32.mrf.mxu0
    %v4697 = vadd.f32 0.0, %v4696
    %4698 = vmatmul.bf16.gmra.mxu0 %v4344
    %v4699 = vpop.f32.mrf.mxu0
    %v4700 = vadd.f32 0.0, %v4699
    %v4701 = vpop.f32.mrf.mxu0
    %v4702 = vadd.f32 0.0, %v4701
    %4703 = vmatmul.bf16.gmra.mxu0 %v4346
    %v4704 = vpop.f32.mrf.mxu0
    %v4705 = vadd.f32 0.0, %v4704
    %v4706 = vpop.f32.mrf.mxu0
    %v4707 = vadd.f32 0.0, %v4706
    %4708 = vmatmul.bf16.gmra.mxu0 %v4348
    %v4709 = vpop.f32.mrf.mxu0
    %v4710 = vadd.f32 0.0, %v4709
    %v4711 = vpop.f32.mrf.mxu0
    %v4712 = vadd.f32 0.0, %v4711
    %4713 = vmatmul.bf16.gmra.mxu0 %v4350
    %v4714 = vpop.f32.mrf.mxu0
    %v4715 = vadd.f32 0.0, %v4714
    %v4716 = vpop.f32.mrf.mxu0
    %v4717 = vadd.f32 0.0, %v4716
    %4718 = vmatmul.bf16.gmra.mxu0 %v4352
    %v4719 = vpop.f32.mrf.mxu0
    %v4720 = vadd.f32 0.0, %v4719
    %v4721 = vpop.f32.mrf.mxu0
    %v4722 = vadd.f32 0.0, %v4721
    %4723 = vmatmul.bf16.gmra.mxu0 %v4354
    %v4724 = vpop.f32.mrf.mxu0
    %v4725 = vadd.f32 0.0, %v4724
    %v4726 = vpop.f32.mrf.mxu0
    %v4727 = vadd.f32 0.0, %v4726
    %4728 = vmatmul.bf16.gmra.mxu0 %v4356
    %v4729 = vpop.f32.mrf.mxu0
    %v4730 = vadd.f32 0.0, %v4729
    %v4731 = vpop.f32.mrf.mxu0
    %v4732 = vadd.f32 0.0, %v4731
    %4733 = vmatmul.bf16.gmra.mxu0 %v4358
    %v4734 = vpop.f32.mrf.mxu0
    %v4735 = vadd.f32 0.0, %v4734
    %v4736 = vpop.f32.mrf.mxu0
    %v4737 = vadd.f32 0.0, %v4736
    %4738 = vmatmul.bf16.gmra.mxu0 %v4360
    %v4739 = vpop.f32.mrf.mxu0
    %v4740 = vadd.f32 0.0, %v4739
    %v4741 = vpop.f32.mrf.mxu0
    %v4742 = vadd.f32 0.0, %v4741
    %4743 = vmatmul.bf16.gmra.mxu0 %v4362
    %v4744 = vpop.f32.mrf.mxu0
    %v4745 = vadd.f32 0.0, %v4744
    %v4746 = vpop.f32.mrf.mxu0
    %v4747 = vadd.f32 0.0, %v4746
    %4748 = vmatmul.bf16.gmra.mxu0 %v4364
    %v4749 = vpop.f32.mrf.mxu0
    %v4750 = vadd.f32 0.0, %v4749
    %v4751 = vpop.f32.mrf.mxu0
    %v4752 = vadd.f32 0.0, %v4751
    %4753 = vmatmul.bf16.gmra.mxu0 %v4366
    %v4754 = vpop.f32.mrf.mxu0
    %v4755 = vadd.f32 0.0, %v4754
    %v4756 = vpop.f32.mrf.mxu0
    %v4757 = vadd.f32 0.0, %v4756
    %4758 = vmatmul.bf16.gmra.mxu0 %v4368
    %v4759 = vpop.f32.mrf.mxu0
    %v4760 = vadd.f32 0.0, %v4759
    %v4761 = vpop.f32.mrf.mxu0
    %v4762 = vadd.f32 0.0, %v4761
    %4763 = vmatmul.bf16.gmra.mxu0 %v4370
    %v4764 = vpop.f32.mrf.mxu0
    %v4765 = vadd.f32 0.0, %v4764
    %v4766 = vpop.f32.mrf.mxu0
    %v4767 = vadd.f32 0.0, %v4766
    %4768 = vmatmul.bf16.gmra.mxu0 %v4372
    %v4769 = vpop.f32.mrf.mxu0
    %v4770 = vadd.f32 0.0, %v4769
    %v4771 = vpop.f32.mrf.mxu0
    %v4772 = vadd.f32 0.0, %v4771
    %4773 = vmatmul.bf16.gmra.mxu0 %v4374
    %v4774 = vpop.f32.mrf.mxu0
    %v4775 = vadd.f32 0.0, %v4774
    %v4776 = vpop.f32.mrf.mxu0
    %v4777 = vadd.f32 0.0, %v4776
    %4778 = vmatmul.bf16.gmra.mxu0 %v4376
    %v4779 = vpop.f32.mrf.mxu0
    %v4780 = vadd.f32 0.0, %v4779
    %v4781 = vpop.f32.mrf.mxu0
    %v4782 = vadd.f32 0.0, %v4781
    %4783 = vmatmul.bf16.gmra.mxu0 %v4378
    %v4784 = vpop.f32.mrf.mxu0
    %v4785 = vadd.f32 0.0, %v4784
    %v4786 = vpop.f32.mrf.mxu0
    %v4787 = vadd.f32 0.0, %v4786
    %4788 = vmatmul.bf16.gmra.mxu0 %v4380
    %v4789 = vpop.f32.mrf.mxu0
    %v4790 = vadd.f32 0.0, %v4789
    %v4791 = vpop.f32.mrf.mxu0
    %v4792 = vadd.f32 0.0, %v4791
    %4793 = vmatmul.bf16.gmra.mxu0 %v4382
    %v4794 = vpop.f32.mrf.mxu0
    %v4795 = vadd.f32 0.0, %v4794
    %v4796 = vpop.f32.mrf.mxu0
    %v4797 = vadd.f32 0.0, %v4796
    %4798 = vmatmul.bf16.gmra.mxu0 %v4384
    %v4799 = vpop.f32.mrf.mxu0
    %v4800 = vadd.f32 0.0, %v4799
    %v4801 = vpop.f32.mrf.mxu0
    %v4802 = vadd.f32 0.0, %v4801
    %4803 = vmatmul.bf16.gmra.mxu0 %v4386
    %v4804 = vpop.f32.mrf.mxu0
    %v4805 = vadd.f32 0.0, %v4804
    %v4806 = vpop.f32.mrf.mxu0
    %v4807 = vadd.f32 0.0, %v4806
    %4808 = vmatmul.bf16.gmra.mxu0 %v4388
    %v4809 = vpop.f32.mrf.mxu0
    %v4810 = vadd.f32 0.0, %v4809
    %v4811 = vpop.f32.mrf.mxu0
    %v4812 = vadd.f32 0.0, %v4811
    %4813 = vmatmul.bf16.gmra.mxu0 %v4390
    %v4814 = vpop.f32.mrf.mxu0
    %v4815 = vadd.f32 0.0, %v4814
    %v4816 = vpop.f32.mrf.mxu0
    %v4817 = vadd.f32 0.0, %v4816
    %4818 = vmatmul.bf16.gmra.mxu0 %v4392
    %v4819 = vpop.f32.mrf.mxu0
    %v4820 = vadd.f32 0.0, %v4819
    %v4821 = vpop.f32.mrf.mxu0
    %v4822 = vadd.f32 0.0, %v4821
    %4823 = vmatmul.bf16.gmra.mxu0 %v4394
    %v4824 = vpop.f32.mrf.mxu0
    %v4825 = vadd.f32 0.0, %v4824
    %v4826 = vpop.f32.mrf.mxu0
    %v4827 = vadd.f32 0.0, %v4826
    %4828 = vmatmul.bf16.gmra.mxu0 %v4396
    %v4829 = vpop.f32.mrf.mxu0
    %v4830 = vadd.f32 0.0, %v4829
    %v4831 = vpop.f32.mrf.mxu0
    %v4832 = vadd.f32 0.0, %v4831
    %4833 = vmatmul.bf16.gmra.mxu0 %v4398
    %v4834 = vpop.f32.mrf.mxu0
    %v4835 = vadd.f32 0.0, %v4834
    %v4836 = vpop.f32.mrf.mxu0
    %v4837 = vadd.f32 0.0, %v4836
    %4838 = vmatmul.bf16.gmra.mxu0 %v4400
    %v4839 = vpop.f32.mrf.mxu0
    %v4840 = vadd.f32 0.0, %v4839
    %v4841 = vpop.f32.mrf.mxu0
    %v4842 = vadd.f32 0.0, %v4841
    %4843 = vmatmul.bf16.gmra.mxu0 %v4402
    %v4844 = vpop.f32.mrf.mxu0
    %v4845 = vadd.f32 0.0, %v4844
    %v4846 = vpop.f32.mrf.mxu0
    %v4847 = vadd.f32 0.0, %v4846
    %4848 = vmatmul.bf16.gmra.mxu0 %v4404
    %v4849 = vpop.f32.mrf.mxu0
    %v4850 = vadd.f32 0.0, %v4849
    %v4851 = vpop.f32.mrf.mxu0
    %v4852 = vadd.f32 0.0, %v4851
    %4853 = vmatmul.bf16.gmra.mxu0 %v4406
    %v4854 = vpop.f32.mrf.mxu0
    %v4855 = vadd.f32 0.0, %v4854
    %v4856 = vpop.f32.mrf.mxu0
    %v4857 = vadd.f32 0.0, %v4856
    %4858 = vmatmul.bf16.gmra.mxu0 %v4408
    %v4859 = vpop.f32.mrf.mxu0
    %v4860 = vadd.f32 0.0, %v4859
    %v4861 = vpop.f32.mrf.mxu0
    %v4862 = vadd.f32 0.0, %v4861
    %4863 = vmatmul.bf16.gmra.mxu0 %v4410
    %v4864 = vpop.f32.mrf.mxu0
    %v4865 = vadd.f32 0.0, %v4864
    %v4866 = vpop.f32.mrf.mxu0
    %v4867 = vadd.f32 0.0, %v4866
    %4868 = vdwg.mxu0
    %4869 = vmatpush.bf16.msra.mxu0 %v3899
    %4870 = vmatpush.bf16.msra.mxu0 %v3898
    %4871 = vmatpush.bf16.msra.mxu0 %v3897
    %4872 = vmatpush.bf16.msra.mxu0 %v3896
    %4873 = vmatpush.bf16.msra.mxu0 %v3895
    %4874 = vmatpush.bf16.msra.mxu0 %v3894
    %4875 = vmatpush.bf16.msra.mxu0 %v3893
    %4876 = vmatpush.bf16.msra.mxu0 %v3892
    %4877 = vmatmul.bf16.gmra.mxu0 %v4285
    %v4878 = vpop.f32.mrf.mxu0
    %v4879 = vadd.f32 %v4550, %v4878
    %v4880 = vpop.f32.mrf.mxu0
    %v4881 = vadd.f32 %v4552, %v4880
    %4882 = vmatmul.bf16.gmra.mxu0 %v4287
    %v4883 = vpop.f32.mrf.mxu0
    %v4884 = vadd.f32 %v4555, %v4883
    %v4885 = vpop.f32.mrf.mxu0
    %v4886 = vadd.f32 %v4557, %v4885
    %4887 = vmatmul.bf16.gmra.mxu0 %v4289
    %v4888 = vpop.f32.mrf.mxu0
    %v4889 = vadd.f32 %v4560, %v4888
    %v4890 = vpop.f32.mrf.mxu0
    %v4891 = vadd.f32 %v4562, %v4890
    %4892 = vmatmul.bf16.gmra.mxu0 %v4291
    %v4893 = vpop.f32.mrf.mxu0
    %v4894 = vadd.f32 %v4565, %v4893
    %v4895 = vpop.f32.mrf.mxu0
    %v4896 = vadd.f32 %v4567, %v4895
    %4897 = vmatmul.bf16.gmra.mxu0 %v4293
    %v4898 = vpop.f32.mrf.mxu0
    %v4899 = vadd.f32 %v4570, %v4898
    %v4900 = vpop.f32.mrf.mxu0
    %v4901 = vadd.f32 %v4572, %v4900
    %4902 = vmatmul.bf16.gmra.mxu0 %v4295
    %v4903 = vpop.f32.mrf.mxu0
    %v4904 = vadd.f32 %v4575, %v4903
    %v4905 = vpop.f32.mrf.mxu0
    %v4906 = vadd.f32 %v4577, %v4905
    %4907 = vmatmul.bf16.gmra.mxu0 %v4297
    %v4908 = vpop.f32.mrf.mxu0
    %v4909 = vadd.f32 %v4580, %v4908
    %v4910 = vpop.f32.mrf.mxu0
    %v4911 = vadd.f32 %v4582, %v4910
    %4912 = vmatmul.bf16.gmra.mxu0 %v4299
    %v4913 = vpop.f32.mrf.mxu0
    %v4914 = vadd.f32 %v4585, %v4913
    %v4915 = vpop.f32.mrf.mxu0
    %v4916 = vadd.f32 %v4587, %v4915
    %4917 = vmatmul.bf16.gmra.mxu0 %v4301
    %v4918 = vpop.f32.mrf.mxu0
    %v4919 = vadd.f32 %v4590, %v4918
    %v4920 = vpop.f32.mrf.mxu0
    %v4921 = vadd.f32 %v4592, %v4920
    %4922 = vmatmul.bf16.gmra.mxu0 %v4303
    %v4923 = vpop.f32.mrf.mxu0
    %v4924 = vadd.f32 %v4595, %v4923
    %v4925 = vpop.f32.mrf.mxu0
    %v4926 = vadd.f32 %v4597, %v4925
    %4927 = vmatmul.bf16.gmra.mxu0 %v4305
    %v4928 = vpop.f32.mrf.mxu0
    %v4929 = vadd.f32 %v4600, %v4928
    %v4930 = vpop.f32.mrf.mxu0
    %v4931 = vadd.f32 %v4602, %v4930
    %4932 = vmatmul.bf16.gmra.mxu0 %v4307
    %v4933 = vpop.f32.mrf.mxu0
    %v4934 = vadd.f32 %v4605, %v4933
    %v4935 = vpop.f32.mrf.mxu0
    %v4936 = vadd.f32 %v4607, %v4935
    %4937 = vmatmul.bf16.gmra.mxu0 %v4309
    %v4938 = vpop.f32.mrf.mxu0
    %v4939 = vadd.f32 %v4610, %v4938
    %v4940 = vpop.f32.mrf.mxu0
    %v4941 = vadd.f32 %v4612, %v4940
    %4942 = vmatmul.bf16.gmra.mxu0 %v4311
    %v4943 = vpop.f32.mrf.mxu0
    %v4944 = vadd.f32 %v4615, %v4943
    %v4945 = vpop.f32.mrf.mxu0
    %v4946 = vadd.f32 %v4617, %v4945
    %4947 = vmatmul.bf16.gmra.mxu0 %v4313
    %v4948 = vpop.f32.mrf.mxu0
    %v4949 = vadd.f32 %v4620, %v4948
    %v4950 = vpop.f32.mrf.mxu0
    %v4951 = vadd.f32 %v4622, %v4950
    %4952 = vmatmul.bf16.gmra.mxu0 %v4315
    %v4953 = vpop.f32.mrf.mxu0
    %v4954 = vadd.f32 %v4625, %v4953
    %v4955 = vpop.f32.mrf.mxu0
    %v4956 = vadd.f32 %v4627, %v4955
    %4957 = vmatmul.bf16.gmra.mxu0 %v4317
    %v4958 = vpop.f32.mrf.mxu0
    %v4959 = vadd.f32 %v4630, %v4958
    %v4960 = vpop.f32.mrf.mxu0
    %v4961 = vadd.f32 %v4632, %v4960
    %4962 = vmatmul.bf16.gmra.mxu0 %v4319
    %v4963 = vpop.f32.mrf.mxu0
    %v4964 = vadd.f32 %v4635, %v4963
    %v4965 = vpop.f32.mrf.mxu0
    %v4966 = vadd.f32 %v4637, %v4965
    %4967 = vmatmul.bf16.gmra.mxu0 %v4321
    %v4968 = vpop.f32.mrf.mxu0
    %v4969 = vadd.f32 %v4640, %v4968
    %v4970 = vpop.f32.mrf.mxu0
    %v4971 = vadd.f32 %v4642, %v4970
    %4972 = vmatmul.bf16.gmra.mxu0 %v4323
    %v4973 = vpop.f32.mrf.mxu0
    %v4974 = vadd.f32 %v4645, %v4973
    %v4975 = vpop.f32.mrf.mxu0
    %v4976 = vadd.f32 %v4647, %v4975
    %4977 = vmatmul.bf16.gmra.mxu0 %v4325
    %v4978 = vpop.f32.mrf.mxu0
    %v4979 = vadd.f32 %v4650, %v4978
    %v4980 = vpop.f32.mrf.mxu0
    %v4981 = vadd.f32 %v4652, %v4980
    %4982 = vmatmul.bf16.gmra.mxu0 %v4327
    %v4983 = vpop.f32.mrf.mxu0
    %v4984 = vadd.f32 %v4655, %v4983
    %v4985 = vpop.f32.mrf.mxu0
    %v4986 = vadd.f32 %v4657, %v4985
    %4987 = vmatmul.bf16.gmra.mxu0 %v4329
    %v4988 = vpop.f32.mrf.mxu0
    %v4989 = vadd.f32 %v4660, %v4988
    %v4990 = vpop.f32.mrf.mxu0
    %v4991 = vadd.f32 %v4662, %v4990
    %4992 = vmatmul.bf16.gmra.mxu0 %v4331
    %v4993 = vpop.f32.mrf.mxu0
    %v4994 = vadd.f32 %v4665, %v4993
    %v4995 = vpop.f32.mrf.mxu0
    %v4996 = vadd.f32 %v4667, %v4995
    %4997 = vmatmul.bf16.gmra.mxu0 %v4333
    %v4998 = vpop.f32.mrf.mxu0
    %v4999 = vadd.f32 %v4670, %v4998
    %v5000 = vpop.f32.mrf.mxu0
    %v5001 = vadd.f32 %v4672, %v5000
    %5002 = vmatmul.bf16.gmra.mxu0 %v4335
    %v5003 = vpop.f32.mrf.mxu0
    %v5004 = vadd.f32 %v4675, %v5003
    %v5005 = vpop.f32.mrf.mxu0
    %v5006 = vadd.f32 %v4677, %v5005
    %5007 = vmatmul.bf16.gmra.mxu0 %v4337
    %v5008 = vpop.f32.mrf.mxu0
    %v5009 = vadd.f32 %v4680, %v5008
    %v5010 = vpop.f32.mrf.mxu0
    %v5011 = vadd.f32 %v4682, %v5010
    %5012 = vmatmul.bf16.gmra.mxu0 %v4339
    %v5013 = vpop.f32.mrf.mxu0
    %v5014 = vadd.f32 %v4685, %v5013
    %v5015 = vpop.f32.mrf.mxu0
    %v5016 = vadd.f32 %v4687, %v5015
    %5017 = vmatmul.bf16.gmra.mxu0 %v4341
    %v5018 = vpop.f32.mrf.mxu0
    %v5019 = vadd.f32 %v4690, %v5018
    %v5020 = vpop.f32.mrf.mxu0
    %v5021 = vadd.f32 %v4692, %v5020
    %5022 = vmatmul.bf16.gmra.mxu0 %v4343
    %v5023 = vpop.f32.mrf.mxu0
    %v5024 = vadd.f32 %v4695, %v5023
    %v5025 = vpop.f32.mrf.mxu0
    %v5026 = vadd.f32 %v4697, %v5025
    %5027 = vmatmul.bf16.gmra.mxu0 %v4345
    %v5028 = vpop.f32.mrf.mxu0
    %v5029 = vadd.f32 %v4700, %v5028
    %v5030 = vpop.f32.mrf.mxu0
    %v5031 = vadd.f32 %v4702, %v5030
    %5032 = vmatmul.bf16.gmra.mxu0 %v4347
    %v5033 = vpop.f32.mrf.mxu0
    %v5034 = vadd.f32 %v4705, %v5033
    %v5035 = vpop.f32.mrf.mxu0
    %v5036 = vadd.f32 %v4707, %v5035
    %5037 = vmatmul.bf16.gmra.mxu0 %v4349
    %v5038 = vpop.f32.mrf.mxu0
    %v5039 = vadd.f32 %v4710, %v5038
    %v5040 = vpop.f32.mrf.mxu0
    %v5041 = vadd.f32 %v4712, %v5040
    %5042 = vmatmul.bf16.gmra.mxu0 %v4351
    %v5043 = vpop.f32.mrf.mxu0
    %v5044 = vadd.f32 %v4715, %v5043
    %v5045 = vpop.f32.mrf.mxu0
    %v5046 = vadd.f32 %v4717, %v5045
    %5047 = vmatmul.bf16.gmra.mxu0 %v4353
    %v5048 = vpop.f32.mrf.mxu0
    %v5049 = vadd.f32 %v4720, %v5048
    %v5050 = vpop.f32.mrf.mxu0
    %v5051 = vadd.f32 %v4722, %v5050
    %5052 = vmatmul.bf16.gmra.mxu0 %v4355
    %v5053 = vpop.f32.mrf.mxu0
    %v5054 = vadd.f32 %v4725, %v5053
    %v5055 = vpop.f32.mrf.mxu0
    %v5056 = vadd.f32 %v4727, %v5055
    %5057 = vmatmul.bf16.gmra.mxu0 %v4357
    %v5058 = vpop.f32.mrf.mxu0
    %v5059 = vadd.f32 %v4730, %v5058
    %v5060 = vpop.f32.mrf.mxu0
    %v5061 = vadd.f32 %v4732, %v5060
    %5062 = vmatmul.bf16.gmra.mxu0 %v4359
    %v5063 = vpop.f32.mrf.mxu0
    %v5064 = vadd.f32 %v4735, %v5063
    %v5065 = vpop.f32.mrf.mxu0
    %v5066 = vadd.f32 %v4737, %v5065
    %5067 = vmatmul.bf16.gmra.mxu0 %v4361
    %v5068 = vpop.f32.mrf.mxu0
    %v5069 = vadd.f32 %v4740, %v5068
    %v5070 = vpop.f32.mrf.mxu0
    %v5071 = vadd.f32 %v4742, %v5070
    %5072 = vmatmul.bf16.gmra.mxu0 %v4363
    %v5073 = vpop.f32.mrf.mxu0
    %v5074 = vadd.f32 %v4745, %v5073
    %v5075 = vpop.f32.mrf.mxu0
    %v5076 = vadd.f32 %v4747, %v5075
    %5077 = vmatmul.bf16.gmra.mxu0 %v4365
    %v5078 = vpop.f32.mrf.mxu0
    %v5079 = vadd.f32 %v4750, %v5078
    %v5080 = vpop.f32.mrf.mxu0
    %v5081 = vadd.f32 %v4752, %v5080
    %5082 = vmatmul.bf16.gmra.mxu0 %v4367
    %v5083 = vpop.f32.mrf.mxu0
    %v5084 = vadd.f32 %v4755, %v5083
    %v5085 = vpop.f32.mrf.mxu0
    %v5086 = vadd.f32 %v4757, %v5085
    %5087 = vmatmul.bf16.gmra.mxu0 %v4369
    %v5088 = vpop.f32.mrf.mxu0
    %v5089 = vadd.f32 %v4760, %v5088
    %v5090 = vpop.f32.mrf.mxu0
    %v5091 = vadd.f32 %v4762, %v5090
    %5092 = vmatmul.bf16.gmra.mxu0 %v4371
    %v5093 = vpop.f32.mrf.mxu0
    %v5094 = vadd.f32 %v4765, %v5093
    %v5095 = vpop.f32.mrf.mxu0
    %v5096 = vadd.f32 %v4767, %v5095
    %5097 = vmatmul.bf16.gmra.mxu0 %v4373
    %v5098 = vpop.f32.mrf.mxu0
    %v5099 = vadd.f32 %v4770, %v5098
    %v5100 = vpop.f32.mrf.mxu0
    %v5101 = vadd.f32 %v4772, %v5100
    %5102 = vmatmul.bf16.gmra.mxu0 %v4375
    %v5103 = vpop.f32.mrf.mxu0
    %v5104 = vadd.f32 %v4775, %v5103
    %v5105 = vpop.f32.mrf.mxu0
    %v5106 = vadd.f32 %v4777, %v5105
    %5107 = vmatmul.bf16.gmra.mxu0 %v4377
    %v5108 = vpop.f32.mrf.mxu0
    %v5109 = vadd.f32 %v4780, %v5108
    %v5110 = vpop.f32.mrf.mxu0
    %v5111 = vadd.f32 %v4782, %v5110
    %5112 = vmatmul.bf16.gmra.mxu0 %v4379
    %v5113 = vpop.f32.mrf.mxu0
    %v5114 = vadd.f32 %v4785, %v5113
    %v5115 = vpop.f32.mrf.mxu0
    %v5116 = vadd.f32 %v4787, %v5115
    %5117 = vmatmul.bf16.gmra.mxu0 %v4381
    %v5118 = vpop.f32.mrf.mxu0
    %v5119 = vadd.f32 %v4790, %v5118
    %v5120 = vpop.f32.mrf.mxu0
    %v5121 = vadd.f32 %v4792, %v5120
    %5122 = vmatmul.bf16.gmra.mxu0 %v4383
    %v5123 = vpop.f32.mrf.mxu0
    %v5124 = vadd.f32 %v4795, %v5123
    %v5125 = vpop.f32.mrf.mxu0
    %v5126 = vadd.f32 %v4797, %v5125
    %5127 = vmatmul.bf16.gmra.mxu0 %v4385
    %v5128 = vpop.f32.mrf.mxu0
    %v5129 = vadd.f32 %v4800, %v5128
    %v5130 = vpop.f32.mrf.mxu0
    %v5131 = vadd.f32 %v4802, %v5130
    %5132 = vmatmul.bf16.gmra.mxu0 %v4387
    %v5133 = vpop.f32.mrf.mxu0
    %v5134 = vadd.f32 %v4805, %v5133
    %v5135 = vpop.f32.mrf.mxu0
    %v5136 = vadd.f32 %v4807, %v5135
    %5137 = vmatmul.bf16.gmra.mxu0 %v4389
    %v5138 = vpop.f32.mrf.mxu0
    %v5139 = vadd.f32 %v4810, %v5138
    %v5140 = vpop.f32.mrf.mxu0
    %v5141 = vadd.f32 %v4812, %v5140
    %5142 = vmatmul.bf16.gmra.mxu0 %v4391
    %v5143 = vpop.f32.mrf.mxu0
    %v5144 = vadd.f32 %v4815, %v5143
    %v5145 = vpop.f32.mrf.mxu0
    %v5146 = vadd.f32 %v4817, %v5145
    %5147 = vmatmul.bf16.gmra.mxu0 %v4393
    %v5148 = vpop.f32.mrf.mxu0
    %v5149 = vadd.f32 %v4820, %v5148
    %v5150 = vpop.f32.mrf.mxu0
    %v5151 = vadd.f32 %v4822, %v5150
    %5152 = vmatmul.bf16.gmra.mxu0 %v4395
    %v5153 = vpop.f32.mrf.mxu0
    %v5154 = vadd.f32 %v4825, %v5153
    %v5155 = vpop.f32.mrf.mxu0
    %v5156 = vadd.f32 %v4827, %v5155
    %5157 = vmatmul.bf16.gmra.mxu0 %v4397
    %v5158 = vpop.f32.mrf.mxu0
    %v5159 = vadd.f32 %v4830, %v5158
    %v5160 = vpop.f32.mrf.mxu0
    %v5161 = vadd.f32 %v4832, %v5160
    %5162 = vmatmul.bf16.gmra.mxu0 %v4399
    %v5163 = vpop.f32.mrf.mxu0
    %v5164 = vadd.f32 %v4835, %v5163
    %v5165 = vpop.f32.mrf.mxu0
    %v5166 = vadd.f32 %v4837, %v5165
    %5167 = vmatmul.bf16.gmra.mxu0 %v4401
    %v5168 = vpop.f32.mrf.mxu0
    %v5169 = vadd.f32 %v4840, %v5168
    %v5170 = vpop.f32.mrf.mxu0
    %v5171 = vadd.f32 %v4842, %v5170
    %5172 = vmatmul.bf16.gmra.mxu0 %v4403
    %v5173 = vpop.f32.mrf.mxu0
    %v5174 = vadd.f32 %v4845, %v5173
    %v5175 = vpop.f32.mrf.mxu0
    %v5176 = vadd.f32 %v4847, %v5175
    %5177 = vmatmul.bf16.gmra.mxu0 %v4405
    %v5178 = vpop.f32.mrf.mxu0
    %v5179 = vadd.f32 %v4850, %v5178
    %v5180 = vpop.f32.mrf.mxu0
    %v5181 = vadd.f32 %v4852, %v5180
    %5182 = vmatmul.bf16.gmra.mxu0 %v4407
    %v5183 = vpop.f32.mrf.mxu0
    %v5184 = vadd.f32 %v4855, %v5183
    %v5185 = vpop.f32.mrf.mxu0
    %v5186 = vadd.f32 %v4857, %v5185
    %5187 = vmatmul.bf16.gmra.mxu0 %v4409
    %v5188 = vpop.f32.mrf.mxu0
    %v5189 = vadd.f32 %v4860, %v5188
    %v5190 = vpop.f32.mrf.mxu0
    %v5191 = vadd.f32 %v4862, %v5190
    %5192 = vmatmul.bf16.gmra.mxu0 %v4411
    %v5193 = vpop.f32.mrf.mxu0
    %v5194 = vadd.f32 %v4865, %v5193
    %v5195 = vpop.f32.mrf.mxu0
    %v5196 = vadd.f32 %v4867, %v5195
    %5197 = vdwg.mxu0
    %5198 = vst.msk [vmem:[#allocation2] sm:$0xff] %vm2400, %v4879
    %5199 = vst.msk [vmem:[#allocation2 + $0x8] sm:$0xff] %vm2400, %v4881
    %5200 = vst.msk [vmem:[#allocation2 + $0x10] sm:$0xff] %vm2400, %v4884
    %5201 = vst.msk [vmem:[#allocation2 + $0x18] sm:$0xff] %vm2400, %v4886
    %5202 = vst.msk [vmem:[#allocation2 + $0x20] sm:$0xff] %vm2400, %v4889
    %5203 = vst.msk [vmem:[#allocation2 + $0x28] sm:$0xff] %vm2400, %v4891
    %5204 = vst.msk [vmem:[#allocation2 + $0x30] sm:$0xff] %vm2400, %v4894
    %5205 = vst.msk [vmem:[#allocation2 + $0x38] sm:$0xff] %vm2400, %v4896
    %5214 = vrot.lane.b32.xlu0 %v4899, 8
    %v5215 = vpop.permute.xlu0 %5214
    %5216 = vrot.lane.b32.xlu0 %v4901, 8
    %v5217 = vpop.permute.xlu0 %5216
    %5218 = vrot.lane.b32.xlu0 %v4904, 8
    %v5219 = vpop.permute.xlu0 %5218
    %5220 = vrot.lane.b32.xlu0 %v4906, 8
    %v5221 = vpop.permute.xlu0 %5220
    %5222 = vrot.lane.b32.xlu0 %v4909, 8
    %v5223 = vpop.permute.xlu0 %5222
    %5224 = vrot.lane.b32.xlu0 %v4911, 8
    %v5225 = vpop.permute.xlu0 %5224
    %5226 = vrot.lane.b32.xlu0 %v4914, 8
    %v5227 = vpop.permute.xlu0 %5226
    %5228 = vrot.lane.b32.xlu0 %v4916, 8
    %v5229 = vpop.permute.xlu0 %5228
    %5238 = vst.msk [vmem:[#allocation2] sm:$0xff] %vm2441, %v5215
    %5239 = vst.msk [vmem:[#allocation2 + $0x8] sm:$0xff] %vm2441, %v5217
    %5240 = vst.msk [vmem:[#allocation2 + $0x10] sm:$0xff] %vm2441, %v5219
    %5241 = vst.msk [vmem:[#allocation2 + $0x18] sm:$0xff] %vm2441, %v5221
    %5242 = vst.msk [vmem:[#allocation2 + $0x20] sm:$0xff] %vm2441, %v5223
    %5243 = vst.msk [vmem:[#allocation2 + $0x28] sm:$0xff] %vm2441, %v5225
    %5244 = vst.msk [vmem:[#allocation2 + $0x30] sm:$0xff] %vm2441, %v5227
    %5245 = vst.msk [vmem:[#allocation2 + $0x38] sm:$0xff] %vm2441, %v5229
    %5254 = vrot.lane.b32.xlu0 %v4919, 16
    %v5255 = vpop.permute.xlu0 %5254
    %5256 = vrot.lane.b32.xlu0 %v4921, 16
    %v5257 = vpop.permute.xlu0 %5256
    %5258 = vrot.lane.b32.xlu0 %v4924, 16
    %v5259 = vpop.permute.xlu0 %5258
    %5260 = vrot.lane.b32.xlu0 %v4926, 16
    %v5261 = vpop.permute.xlu0 %5260
    %5262 = vrot.lane.b32.xlu0 %v4929, 16
    %v5263 = vpop.permute.xlu0 %5262
    %5264 = vrot.lane.b32.xlu0 %v4931, 16
    %v5265 = vpop.permute.xlu0 %5264
    %5266 = vrot.lane.b32.xlu0 %v4934, 16
    %v5267 = vpop.permute.xlu0 %5266
    %5268 = vrot.lane.b32.xlu0 %v4936, 16
    %v5269 = vpop.permute.xlu0 %5268
    %5278 = vst.msk [vmem:[#allocation2] sm:$0xff] %vm2482, %v5255
    %5279 = vst.msk [vmem:[#allocation2 + $0x8] sm:$0xff] %vm2482, %v5257
    %5280 = vst.msk [vmem:[#allocation2 + $0x10] sm:$0xff] %vm2482, %v5259
    %5281 = vst.msk [vmem:[#allocation2 + $0x18] sm:$0xff] %vm2482, %v5261
    %5282 = vst.msk [vmem:[#allocation2 + $0x20] sm:$0xff] %vm2482, %v5263
    %5283 = vst.msk [vmem:[#allocation2 + $0x28] sm:$0xff] %vm2482, %v5265
    %5284 = vst.msk [vmem:[#allocation2 + $0x30] sm:$0xff] %vm2482, %v5267
    %5285 = vst.msk [vmem:[#allocation2 + $0x38] sm:$0xff] %vm2482, %v5269
    %5294 = vrot.lane.b32.xlu0 %v4939, 24
    %v5295 = vpop.permute.xlu0 %5294
    %5296 = vrot.lane.b32.xlu0 %v4941, 24
    %v5297 = vpop.permute.xlu0 %5296
    %5298 = vrot.lane.b32.xlu0 %v4944, 24
    %v5299 = vpop.permute.xlu0 %5298
    %5300 = vrot.lane.b32.xlu0 %v4946, 24
    %v5301 = vpop.permute.xlu0 %5300
    %5302 = vrot.lane.b32.xlu0 %v4949, 24
    %v5303 = vpop.permute.xlu0 %5302
    %5304 = vrot.lane.b32.xlu0 %v4951, 24
    %v5305 = vpop.permute.xlu0 %5304
    %5306 = vrot.lane.b32.xlu0 %v4954, 24
    %v5307 = vpop.permute.xlu0 %5306
    %5308 = vrot.lane.b32.xlu0 %v4956, 24
    %v5309 = vpop.permute.xlu0 %5308
    %5318 = vst.msk [vmem:[#allocation2] sm:$0xff] %vm2523, %v5295
    %5319 = vst.msk [vmem:[#allocation2 + $0x8] sm:$0xff] %vm2523, %v5297
    %5320 = vst.msk [vmem:[#allocation2 + $0x10] sm:$0xff] %vm2523, %v5299
    %5321 = vst.msk [vmem:[#allocation2 + $0x18] sm:$0xff] %vm2523, %v5301
    %5322 = vst.msk [vmem:[#allocation2 + $0x20] sm:$0xff] %vm2523, %v5303
    %5323 = vst.msk [vmem:[#allocation2 + $0x28] sm:$0xff] %vm2523, %v5305
    %5324 = vst.msk [vmem:[#allocation2 + $0x30] sm:$0xff] %vm2523, %v5307
    %5325 = vst.msk [vmem:[#allocation2 + $0x38] sm:$0xff] %vm2523, %v5309
    %5334 = vrot.lane.b32.xlu0 %v4959, 32
    %v5335 = vpop.permute.xlu0 %5334
    %5336 = vrot.lane.b32.xlu0 %v4961, 32
    %v5337 = vpop.permute.xlu0 %5336
    %5338 = vrot.lane.b32.xlu0 %v4964, 32
    %v5339 = vpop.permute.xlu0 %5338
    %5340 = vrot.lane.b32.xlu0 %v4966, 32
    %v5341 = vpop.permute.xlu0 %5340
    %5342 = vrot.lane.b32.xlu0 %v4969, 32
    %v5343 = vpop.permute.xlu0 %5342
    %5344 = vrot.lane.b32.xlu0 %v4971, 32
    %v5345 = vpop.permute.xlu0 %5344
    %5346 = vrot.lane.b32.xlu0 %v4974, 32
    %v5347 = vpop.permute.xlu0 %5346
    %5348 = vrot.lane.b32.xlu0 %v4976, 32
    %v5349 = vpop.permute.xlu0 %5348
    %5358 = vst.msk [vmem:[#allocation2] sm:$0xff] %vm2564, %v5335
    %5359 = vst.msk [vmem:[#allocation2 + $0x8] sm:$0xff] %vm2564, %v5337
    %5360 = vst.msk [vmem:[#allocation2 + $0x10] sm:$0xff] %vm2564, %v5339
    %5361 = vst.msk [vmem:[#allocation2 + $0x18] sm:$0xff] %vm2564, %v5341
    %5362 = vst.msk [vmem:[#allocation2 + $0x20] sm:$0xff] %vm2564, %v5343
    %5363 = vst.msk [vmem:[#allocation2 + $0x28] sm:$0xff] %vm2564, %v5345
    %5364 = vst.msk [vmem:[#allocation2 + $0x30] sm:$0xff] %vm2564, %v5347
    %5365 = vst.msk [vmem:[#allocation2 + $0x38] sm:$0xff] %vm2564, %v5349
    %5374 = vrot.lane.b32.xlu0 %v4979, 40
    %v5375 = vpop.permute.xlu0 %5374
    %5376 = vrot.lane.b32.xlu0 %v4981, 40
    %v5377 = vpop.permute.xlu0 %5376
    %5378 = vrot.lane.b32.xlu0 %v4984, 40
    %v5379 = vpop.permute.xlu0 %5378
    %5380 = vrot.lane.b32.xlu0 %v4986, 40
    %v5381 = vpop.permute.xlu0 %5380
    %5382 = vrot.lane.b32.xlu0 %v4989, 40
    %v5383 = vpop.permute.xlu0 %5382
    %5384 = vrot.lane.b32.xlu0 %v4991, 40
    %v5385 = vpop.permute.xlu0 %5384
    %5386 = vrot.lane.b32.xlu0 %v4994, 40
    %v5387 = vpop.permute.xlu0 %5386
    %5388 = vrot.lane.b32.xlu0 %v4996, 40
    %v5389 = vpop.permute.xlu0 %5388
    %5398 = vst.msk [vmem:[#allocation2] sm:$0xff] %vm2605, %v5375
    %5399 = vst.msk [vmem:[#allocation2 + $0x8] sm:$0xff] %vm2605, %v5377
    %5400 = vst.msk [vmem:[#allocation2 + $0x10] sm:$0xff] %vm2605, %v5379
    %5401 = vst.msk [vmem:[#allocation2 + $0x18] sm:$0xff] %vm2605, %v5381
    %5402 = vst.msk [vmem:[#allocation2 + $0x20] sm:$0xff] %vm2605, %v5383
    %5403 = vst.msk [vmem:[#allocation2 + $0x28] sm:$0xff] %vm2605, %v5385
    %5404 = vst.msk [vmem:[#allocation2 + $0x30] sm:$0xff] %vm2605, %v5387
    %5405 = vst.msk [vmem:[#allocation2 + $0x38] sm:$0xff] %vm2605, %v5389
    %5414 = vrot.lane.b32.xlu0 %v4999, 48
    %v5415 = vpop.permute.xlu0 %5414
    %5416 = vrot.lane.b32.xlu0 %v5001, 48
    %v5417 = vpop.permute.xlu0 %5416
    %5418 = vrot.lane.b32.xlu0 %v5004, 48
    %v5419 = vpop.permute.xlu0 %5418
    %5420 = vrot.lane.b32.xlu0 %v5006, 48
    %v5421 = vpop.permute.xlu0 %5420
    %5422 = vrot.lane.b32.xlu0 %v5009, 48
    %v5423 = vpop.permute.xlu0 %5422
    %5424 = vrot.lane.b32.xlu0 %v5011, 48
    %v5425 = vpop.permute.xlu0 %5424
    %5426 = vrot.lane.b32.xlu0 %v5014, 48
    %v5427 = vpop.permute.xlu0 %5426
    %5428 = vrot.lane.b32.xlu0 %v5016, 48
    %v5429 = vpop.permute.xlu0 %5428
    %5438 = vst.msk [vmem:[#allocation2] sm:$0xff] %vm2646, %v5415
    %5439 = vst.msk [vmem:[#allocation2 + $0x8] sm:$0xff] %vm2646, %v5417
    %5440 = vst.msk [vmem:[#allocation2 + $0x10] sm:$0xff] %vm2646, %v5419
    %5441 = vst.msk [vmem:[#allocation2 + $0x18] sm:$0xff] %vm2646, %v5421
    %5442 = vst.msk [vmem:[#allocation2 + $0x20] sm:$0xff] %vm2646, %v5423
    %5443 = vst.msk [vmem:[#allocation2 + $0x28] sm:$0xff] %vm2646, %v5425
    %5444 = vst.msk [vmem:[#allocation2 + $0x30] sm:$0xff] %vm2646, %v5427
    %5445 = vst.msk [vmem:[#allocation2 + $0x38] sm:$0xff] %vm2646, %v5429
    %5454 = vrot.lane.b32.xlu0 %v5019, 56
    %v5455 = vpop.permute.xlu0 %5454
    %5456 = vrot.lane.b32.xlu0 %v5021, 56
    %v5457 = vpop.permute.xlu0 %5456
    %5458 = vrot.lane.b32.xlu0 %v5024, 56
    %v5459 = vpop.permute.xlu0 %5458
    %5460 = vrot.lane.b32.xlu0 %v5026, 56
    %v5461 = vpop.permute.xlu0 %5460
    %5462 = vrot.lane.b32.xlu0 %v5029, 56
    %v5463 = vpop.permute.xlu0 %5462
    %5464 = vrot.lane.b32.xlu0 %v5031, 56
    %v5465 = vpop.permute.xlu0 %5464
    %5466 = vrot.lane.b32.xlu0 %v5034, 56
    %v5467 = vpop.permute.xlu0 %5466
    %5468 = vrot.lane.b32.xlu0 %v5036, 56
    %v5469 = vpop.permute.xlu0 %5468
    %5478 = vst.msk [vmem:[#allocation2] sm:$0xff] %vm2687, %v5455
    %5479 = vst.msk [vmem:[#allocation2 + $0x8] sm:$0xff] %vm2687, %v5457
    %5480 = vst.msk [vmem:[#allocation2 + $0x10] sm:$0xff] %vm2687, %v5459
    %5481 = vst.msk [vmem:[#allocation2 + $0x18] sm:$0xff] %vm2687, %v5461
    %5482 = vst.msk [vmem:[#allocation2 + $0x20] sm:$0xff] %vm2687, %v5463
    %5483 = vst.msk [vmem:[#allocation2 + $0x28] sm:$0xff] %vm2687, %v5465
    %5484 = vst.msk [vmem:[#allocation2 + $0x30] sm:$0xff] %vm2687, %v5467
    %5485 = vst.msk [vmem:[#allocation2 + $0x38] sm:$0xff] %vm2687, %v5469
    %5494 = vrot.lane.b32.xlu0 %v5039, 64
    %v5495 = vpop.permute.xlu0 %5494
    %5496 = vrot.lane.b32.xlu0 %v5041, 64
    %v5497 = vpop.permute.xlu0 %5496
    %5498 = vrot.lane.b32.xlu0 %v5044, 64
    %v5499 = vpop.permute.xlu0 %5498
    %5500 = vrot.lane.b32.xlu0 %v5046, 64
    %v5501 = vpop.permute.xlu0 %5500
    %5502 = vrot.lane.b32.xlu0 %v5049, 64
    %v5503 = vpop.permute.xlu0 %5502
    %5504 = vrot.lane.b32.xlu0 %v5051, 64
    %v5505 = vpop.permute.xlu0 %5504
    %5506 = vrot.lane.b32.xlu0 %v5054, 64
    %v5507 = vpop.permute.xlu0 %5506
    %5508 = vrot.lane.b32.xlu0 %v5056, 64
    %v5509 = vpop.permute.xlu0 %5508
    %5518 = vst.msk [vmem:[#allocation2] sm:$0xff] %vm2728, %v5495
    %5519 = vst.msk [vmem:[#allocation2 + $0x8] sm:$0xff] %vm2728, %v5497
    %5520 = vst.msk [vmem:[#allocation2 + $0x10] sm:$0xff] %vm2728, %v5499
    %5521 = vst.msk [vmem:[#allocation2 + $0x18] sm:$0xff] %vm2728, %v5501
    %5522 = vst.msk [vmem:[#allocation2 + $0x20] sm:$0xff] %vm2728, %v5503
    %5523 = vst.msk [vmem:[#allocation2 + $0x28] sm:$0xff] %vm2728, %v5505
    %5524 = vst.msk [vmem:[#allocation2 + $0x30] sm:$0xff] %vm2728, %v5507
    %5525 = vst.msk [vmem:[#allocation2 + $0x38] sm:$0xff] %vm2728, %v5509
    %5534 = vrot.lane.b32.xlu0 %v5059, 72
    %v5535 = vpop.permute.xlu0 %5534
    %5536 = vrot.lane.b32.xlu0 %v5061, 72
    %v5537 = vpop.permute.xlu0 %5536
    %5538 = vrot.lane.b32.xlu0 %v5064, 72
    %v5539 = vpop.permute.xlu0 %5538
    %5540 = vrot.lane.b32.xlu0 %v5066, 72
    %v5541 = vpop.permute.xlu0 %5540
    %5542 = vrot.lane.b32.xlu0 %v5069, 72
    %v5543 = vpop.permute.xlu0 %5542
    %5544 = vrot.lane.b32.xlu0 %v5071, 72
    %v5545 = vpop.permute.xlu0 %5544
    %5546 = vrot.lane.b32.xlu0 %v5074, 72
    %v5547 = vpop.permute.xlu0 %5546
    %5548 = vrot.lane.b32.xlu0 %v5076, 72
    %v5549 = vpop.permute.xlu0 %5548
    %5558 = vst.msk [vmem:[#allocation2] sm:$0xff] %vm2769, %v5535
    %5559 = vst.msk [vmem:[#allocation2 + $0x8] sm:$0xff] %vm2769, %v5537
    %5560 = vst.msk [vmem:[#allocation2 + $0x10] sm:$0xff] %vm2769, %v5539
    %5561 = vst.msk [vmem:[#allocation2 + $0x18] sm:$0xff] %vm2769, %v5541
    %5562 = vst.msk [vmem:[#allocation2 + $0x20] sm:$0xff] %vm2769, %v5543
    %5563 = vst.msk [vmem:[#allocation2 + $0x28] sm:$0xff] %vm2769, %v5545
    %5564 = vst.msk [vmem:[#allocation2 + $0x30] sm:$0xff] %vm2769, %v5547
    %5565 = vst.msk [vmem:[#allocation2 + $0x38] sm:$0xff] %vm2769, %v5549
    %5574 = vrot.lane.b32.xlu0 %v5079, 80
    %v5575 = vpop.permute.xlu0 %5574
    %5576 = vrot.lane.b32.xlu0 %v5081, 80
    %v5577 = vpop.permute.xlu0 %5576
    %5578 = vrot.lane.b32.xlu0 %v5084, 80
    %v5579 = vpop.permute.xlu0 %5578
    %5580 = vrot.lane.b32.xlu0 %v5086, 80
    %v5581 = vpop.permute.xlu0 %5580
    %5582 = vrot.lane.b32.xlu0 %v5089, 80
    %v5583 = vpop.permute.xlu0 %5582
    %5584 = vrot.lane.b32.xlu0 %v5091, 80
    %v5585 = vpop.permute.xlu0 %5584
    %5586 = vrot.lane.b32.xlu0 %v5094, 80
    %v5587 = vpop.permute.xlu0 %5586
    %5588 = vrot.lane.b32.xlu0 %v5096, 80
    %v5589 = vpop.permute.xlu0 %5588
    %5598 = vst.msk [vmem:[#allocation2] sm:$0xff] %vm2810, %v5575
    %5599 = vst.msk [vmem:[#allocation2 + $0x8] sm:$0xff] %vm2810, %v5577
    %5600 = vst.msk [vmem:[#allocation2 + $0x10] sm:$0xff] %vm2810, %v5579
    %5601 = vst.msk [vmem:[#allocation2 + $0x18] sm:$0xff] %vm2810, %v5581
    %5602 = vst.msk [vmem:[#allocation2 + $0x20] sm:$0xff] %vm2810, %v5583
    %5603 = vst.msk [vmem:[#allocation2 + $0x28] sm:$0xff] %vm2810, %v5585
    %5604 = vst.msk [vmem:[#allocation2 + $0x30] sm:$0xff] %vm2810, %v5587
    %5605 = vst.msk [vmem:[#allocation2 + $0x38] sm:$0xff] %vm2810, %v5589
    %5614 = vrot.lane.b32.xlu0 %v5099, 88
    %v5615 = vpop.permute.xlu0 %5614
    %5616 = vrot.lane.b32.xlu0 %v5101, 88
    %v5617 = vpop.permute.xlu0 %5616
    %5618 = vrot.lane.b32.xlu0 %v5104, 88
    %v5619 = vpop.permute.xlu0 %5618
    %5620 = vrot.lane.b32.xlu0 %v5106, 88
    %v5621 = vpop.permute.xlu0 %5620
    %5622 = vrot.lane.b32.xlu0 %v5109, 88
    %v5623 = vpop.permute.xlu0 %5622
    %5624 = vrot.lane.b32.xlu0 %v5111, 88
    %v5625 = vpop.permute.xlu0 %5624
    %5626 = vrot.lane.b32.xlu0 %v5114, 88
    %v5627 = vpop.permute.xlu0 %5626
    %5628 = vrot.lane.b32.xlu0 %v5116, 88
    %v5629 = vpop.permute.xlu0 %5628
    %5638 = vst.msk [vmem:[#allocation2] sm:$0xff] %vm2851, %v5615
    %5639 = vst.msk [vmem:[#allocation2 + $0x8] sm:$0xff] %vm2851, %v5617
    %5640 = vst.msk [vmem:[#allocation2 + $0x10] sm:$0xff] %vm2851, %v5619
    %5641 = vst.msk [vmem:[#allocation2 + $0x18] sm:$0xff] %vm2851, %v5621
    %5642 = vst.msk [vmem:[#allocation2 + $0x20] sm:$0xff] %vm2851, %v5623
    %5643 = vst.msk [vmem:[#allocation2 + $0x28] sm:$0xff] %vm2851, %v5625
    %5644 = vst.msk [vmem:[#allocation2 + $0x30] sm:$0xff] %vm2851, %v5627
    %5645 = vst.msk [vmem:[#allocation2 + $0x38] sm:$0xff] %vm2851, %v5629
    %5654 = vrot.lane.b32.xlu0 %v5119, 96
    %v5655 = vpop.permute.xlu0 %5654
    %5656 = vrot.lane.b32.xlu0 %v5121, 96
    %v5657 = vpop.permute.xlu0 %5656
    %5658 = vrot.lane.b32.xlu0 %v5124, 96
    %v5659 = vpop.permute.xlu0 %5658
    %5660 = vrot.lane.b32.xlu0 %v5126, 96
    %v5661 = vpop.permute.xlu0 %5660
    %5662 = vrot.lane.b32.xlu0 %v5129, 96
    %v5663 = vpop.permute.xlu0 %5662
    %5664 = vrot.lane.b32.xlu0 %v5131, 96
    %v5665 = vpop.permute.xlu0 %5664
    %5666 = vrot.lane.b32.xlu0 %v5134, 96
    %v5667 = vpop.permute.xlu0 %5666
    %5668 = vrot.lane.b32.xlu0 %v5136, 96
    %v5669 = vpop.permute.xlu0 %5668
    %5678 = vst.msk [vmem:[#allocation2] sm:$0xff] %vm2892, %v5655
    %5679 = vst.msk [vmem:[#allocation2 + $0x8] sm:$0xff] %vm2892, %v5657
    %5680 = vst.msk [vmem:[#allocation2 + $0x10] sm:$0xff] %vm2892, %v5659
    %5681 = vst.msk [vmem:[#allocation2 + $0x18] sm:$0xff] %vm2892, %v5661
    %5682 = vst.msk [vmem:[#allocation2 + $0x20] sm:$0xff] %vm2892, %v5663
    %5683 = vst.msk [vmem:[#allocation2 + $0x28] sm:$0xff] %vm2892, %v5665
    %5684 = vst.msk [vmem:[#allocation2 + $0x30] sm:$0xff] %vm2892, %v5667
    %5685 = vst.msk [vmem:[#allocation2 + $0x38] sm:$0xff] %vm2892, %v5669
    %5694 = vrot.lane.b32.xlu0 %v5139, 104
    %v5695 = vpop.permute.xlu0 %5694
    %5696 = vrot.lane.b32.xlu0 %v5141, 104
    %v5697 = vpop.permute.xlu0 %5696
    %5698 = vrot.lane.b32.xlu0 %v5144, 104
    %v5699 = vpop.permute.xlu0 %5698
    %5700 = vrot.lane.b32.xlu0 %v5146, 104
    %v5701 = vpop.permute.xlu0 %5700
    %5702 = vrot.lane.b32.xlu0 %v5149, 104
    %v5703 = vpop.permute.xlu0 %5702
    %5704 = vrot.lane.b32.xlu0 %v5151, 104
    %v5705 = vpop.permute.xlu0 %5704
    %5706 = vrot.lane.b32.xlu0 %v5154, 104
    %v5707 = vpop.permute.xlu0 %5706
    %5708 = vrot.lane.b32.xlu0 %v5156, 104
    %v5709 = vpop.permute.xlu0 %5708
    %5718 = vst.msk [vmem:[#allocation2] sm:$0xff] %vm2933, %v5695
    %5719 = vst.msk [vmem:[#allocation2 + $0x8] sm:$0xff] %vm2933, %v5697
    %5720 = vst.msk [vmem:[#allocation2 + $0x10] sm:$0xff] %vm2933, %v5699
    %5721 = vst.msk [vmem:[#allocation2 + $0x18] sm:$0xff] %vm2933, %v5701
    %5722 = vst.msk [vmem:[#allocation2 + $0x20] sm:$0xff] %vm2933, %v5703
    %5723 = vst.msk [vmem:[#allocation2 + $0x28] sm:$0xff] %vm2933, %v5705
    %5724 = vst.msk [vmem:[#allocation2 + $0x30] sm:$0xff] %vm2933, %v5707
    %5725 = vst.msk [vmem:[#allocation2 + $0x38] sm:$0xff] %vm2933, %v5709
    %5734 = vrot.lane.b32.xlu0 %v5159, 112
    %v5735 = vpop.permute.xlu0 %5734
    %5736 = vrot.lane.b32.xlu0 %v5161, 112
    %v5737 = vpop.permute.xlu0 %5736
    %5738 = vrot.lane.b32.xlu0 %v5164, 112
    %v5739 = vpop.permute.xlu0 %5738
    %5740 = vrot.lane.b32.xlu0 %v5166, 112
    %v5741 = vpop.permute.xlu0 %5740
    %5742 = vrot.lane.b32.xlu0 %v5169, 112
    %v5743 = vpop.permute.xlu0 %5742
    %5744 = vrot.lane.b32.xlu0 %v5171, 112
    %v5745 = vpop.permute.xlu0 %5744
    %5746 = vrot.lane.b32.xlu0 %v5174, 112
    %v5747 = vpop.permute.xlu0 %5746
    %5748 = vrot.lane.b32.xlu0 %v5176, 112
    %v5749 = vpop.permute.xlu0 %5748
    %5758 = vst.msk [vmem:[#allocation2] sm:$0xff] %vm2974, %v5735
    %5759 = vst.msk [vmem:[#allocation2 + $0x8] sm:$0xff] %vm2974, %v5737
    %5760 = vst.msk [vmem:[#allocation2 + $0x10] sm:$0xff] %vm2974, %v5739
    %5761 = vst.msk [vmem:[#allocation2 + $0x18] sm:$0xff] %vm2974, %v5741
    %5762 = vst.msk [vmem:[#allocation2 + $0x20] sm:$0xff] %vm2974, %v5743
    %5763 = vst.msk [vmem:[#allocation2 + $0x28] sm:$0xff] %vm2974, %v5745
    %5764 = vst.msk [vmem:[#allocation2 + $0x30] sm:$0xff] %vm2974, %v5747
    %5765 = vst.msk [vmem:[#allocation2 + $0x38] sm:$0xff] %vm2974, %v5749
    %5774 = vrot.lane.b32.xlu0 %v5179, 120
    %v5775 = vpop.permute.xlu0 %5774
    %5776 = vrot.lane.b32.xlu0 %v5181, 120
    %v5777 = vpop.permute.xlu0 %5776
    %5778 = vrot.lane.b32.xlu0 %v5184, 120
    %v5779 = vpop.permute.xlu0 %5778
    %5780 = vrot.lane.b32.xlu0 %v5186, 120
    %v5781 = vpop.permute.xlu0 %5780
    %5782 = vrot.lane.b32.xlu0 %v5189, 120
    %v5783 = vpop.permute.xlu0 %5782
    %5784 = vrot.lane.b32.xlu0 %v5191, 120
    %v5785 = vpop.permute.xlu0 %5784
    %5786 = vrot.lane.b32.xlu0 %v5194, 120
    %v5787 = vpop.permute.xlu0 %5786
    %5788 = vrot.lane.b32.xlu0 %v5196, 120
    %v5789 = vpop.permute.xlu0 %5788
    %5798 = vst.msk [vmem:[#allocation2] sm:$0xff] %vm3015, %v5775
    %5799 = vst.msk [vmem:[#allocation2 + $0x8] sm:$0xff] %vm3015, %v5777
    %5800 = vst.msk [vmem:[#allocation2 + $0x10] sm:$0xff] %vm3015, %v5779
    %5801 = vst.msk [vmem:[#allocation2 + $0x18] sm:$0xff] %vm3015, %v5781
    %5802 = vst.msk [vmem:[#allocation2 + $0x20] sm:$0xff] %vm3015, %v5783
    %5803 = vst.msk [vmem:[#allocation2 + $0x28] sm:$0xff] %vm3015, %v5785
    %5804 = vst.msk [vmem:[#allocation2 + $0x30] sm:$0xff] %vm3015, %v5787
    %5805 = vst.msk [vmem:[#allocation2 + $0x38] sm:$0xff] %vm3015, %v5789
    %v5806 = vld [vmem:[#allocation2] sm:$0xff]
    %v5807 = vld [vmem:[#allocation2 + $0x8] sm:$0xff]
    %v5808 = vld [vmem:[#allocation2 + $0x10] sm:$0xff]
    %v5809 = vld [vmem:[#allocation2 + $0x18] sm:$0xff]
    %v5810 = vld [vmem:[#allocation2 + $0x20] sm:$0xff]
    %v5811 = vld [vmem:[#allocation2 + $0x28] sm:$0xff]
    %v5812 = vld [vmem:[#allocation2 + $0x30] sm:$0xff]
    %v5813 = vld [vmem:[#allocation2 + $0x38] sm:$0xff]
    %v5814 = vpack.c.bf16 %v5807, %v5806
    %v5815 = vpack.c.bf16 %v5809, %v5808
    %v5816 = vpack.c.bf16 %v5811, %v5810
    %v5817 = vpack.c.bf16 %v5813, %v5812
    %v5818 = vld [vmem:[%s4] sm:$0xf]
    %v5819 = vld [vmem:[%s4 + $0x4] sm:$0xf]
    %v5820 = vld [vmem:[%s4 + $0x8] sm:$0xf]
    %v5821 = vld [vmem:[%s4 + $0xc] sm:$0xf]
    %v5822 = vld [vmem:[%s4 + $0x10] sm:$0xf]
    %v5823 = vld [vmem:[%s4 + $0x14] sm:$0xf]
    %v5824 = vld [vmem:[%s4 + $0x18] sm:$0xf]
    %v5825 = vld [vmem:[%s4 + $0x1c] sm:$0xf]
    %v5826 = vld [vmem:[%s4 + $0x20] sm:$0xf]
    %v5827 = vld [vmem:[%s4 + $0x24] sm:$0xf]
    %v5828 = vld [vmem:[%s4 + $0x28] sm:$0xf]
    %v5829 = vld [vmem:[%s4 + $0x2c] sm:$0xf]
    %v5830 = vld [vmem:[%s4 + $0x30] sm:$0xf]
    %v5831 = vld [vmem:[%s4 + $0x34] sm:$0xf]
    %v5832 = vld [vmem:[%s4 + $0x38] sm:$0xf]
    %v5833 = vld [vmem:[%s4 + $0x3c] sm:$0xf]
    %v5834 = vld [vmem:[%s5] sm:$0x1]
    %v5836 = vperm.slane %v5834, 0
    %v5854 = vunpack.c.l.b16 %v5818
    %v5855 = vunpack.c.l.b16 %v5819
    %v5856 = vunpack.c.l.b16 %v5820
    %v5857 = vunpack.c.l.b16 %v5821
    %v5858 = vunpack.c.l.b16 %v5822
    %v5859 = vunpack.c.l.b16 %v5823
    %v5860 = vunpack.c.l.b16 %v5824
    %v5861 = vunpack.c.l.b16 %v5825
    %v5862 = vunpack.c.l.b16 %v5826
    %v5863 = vunpack.c.l.b16 %v5827
    %v5864 = vunpack.c.l.b16 %v5828
    %v5865 = vunpack.c.l.b16 %v5829
    %v5866 = vunpack.c.l.b16 %v5830
    %v5867 = vunpack.c.l.b16 %v5831
    %v5868 = vunpack.c.l.b16 %v5832
    %v5869 = vunpack.c.l.b16 %v5833
    %v5870 = vpack.c.b16 %v5855, %v5854
    %v5871 = vpack.c.b16 %v5857, %v5856
    %v5872 = vpack.c.b16 %v5859, %v5858
    %v5873 = vpack.c.b16 %v5861, %v5860
    %v5874 = vpack.c.b16 %v5863, %v5862
    %v5875 = vpack.c.b16 %v5865, %v5864
    %v5876 = vpack.c.b16 %v5867, %v5866
    %v5877 = vpack.c.b16 %v5869, %v5868
    %5886 = vmatpush.bf16.msra.mxu0 %v5877
    %5887 = vmatpush.bf16.msra.mxu0 %v5876
    %5888 = vmatpush.bf16.msra.mxu0 %v5875
    %5889 = vmatpush.bf16.msra.mxu0 %v5874
    %5890 = vmatpush.bf16.msra.mxu0 %v5873
    %5891 = vmatpush.bf16.msra.mxu0 %v5872
    %5892 = vmatpush.bf16.msra.mxu0 %v5871
    %5893 = vmatpush.bf16.msra.mxu0 %v5870
    %5894 = vmatmul.bf16.gmra.mxu0 %v5814
    %v5895 = vpop.f32.mrf.mxu0
    %v5896 = vadd.f32 %v5836, %v5895
    %v5897 = vpop.f32.mrf.mxu0
    %v5898 = vadd.f32 %v5836, %v5897
    %5899 = vmatmul.bf16.gmra.mxu0 %v5815
    %v5900 = vpop.f32.mrf.mxu0
    %v5901 = vadd.f32 %v5836, %v5900
    %v5902 = vpop.f32.mrf.mxu0
    %v5903 = vadd.f32 %v5836, %v5902
    %5904 = vmatmul.bf16.gmra.mxu0 %v5816
    %v5905 = vpop.f32.mrf.mxu0
    %v5906 = vadd.f32 %v5836, %v5905
    %v5907 = vpop.f32.mrf.mxu0
    %v5908 = vadd.f32 %v5836, %v5907
    %5909 = vmatmul.bf16.gmra.mxu0 %v5817
    %v5910 = vpop.f32.mrf.mxu0
    %v5911 = vadd.f32 %v5836, %v5910
    %v5912 = vpop.f32.mrf.mxu0
    %v5913 = vadd.f32 %v5836, %v5912
    %5914 = vdwg.mxu0
    %v5915 = vmax.f32 %v5896, 0.0
    %v5916 = vmax.f32 %v5898, 0.0
    %v5917 = vmax.f32 %v5901, 0.0
    %v5918 = vmax.f32 %v5903, 0.0
    %v5919 = vmax.f32 %v5906, 0.0
    %v5920 = vmax.f32 %v5908, 0.0
    %v5921 = vmax.f32 %v5911, 0.0
    %v5922 = vmax.f32 %v5913, 0.0
    %v5923 = vld [vmem:[%s6] sm:$0xf]
    %v5924 = vld [vmem:[%s6 + $0x4] sm:$0xf]
    %v5925 = vld [vmem:[%s6 + $0x8] sm:$0xf]
    %v5926 = vld [vmem:[%s6 + $0xc] sm:$0xf]
    %v5927 = vld [vmem:[%s6 + $0x10] sm:$0xf]
    %v5928 = vld [vmem:[%s6 + $0x14] sm:$0xf]
    %v5929 = vld [vmem:[%s6 + $0x18] sm:$0xf]
    %v5930 = vld [vmem:[%s6 + $0x1c] sm:$0xf]
    %v5931 = vld [vmem:[%s6 + $0x20] sm:$0xf]
    %v5932 = vld [vmem:[%s6 + $0x24] sm:$0xf]
    %v5933 = vld [vmem:[%s6 + $0x28] sm:$0xf]
    %v5934 = vld [vmem:[%s6 + $0x2c] sm:$0xf]
    %v5935 = vld [vmem:[%s6 + $0x30] sm:$0xf]
    %v5936 = vld [vmem:[%s6 + $0x34] sm:$0xf]
    %v5937 = vld [vmem:[%s6 + $0x38] sm:$0xf]
    %v5938 = vld [vmem:[%s6 + $0x3c] sm:$0xf]
    %v5939 = vld [vmem:[%s6 + $0x40] sm:$0xf]
    %v5940 = vld [vmem:[%s6 + $0x44] sm:$0xf]
    %v5941 = vld [vmem:[%s6 + $0x48] sm:$0xf]
    %v5942 = vld [vmem:[%s6 + $0x4c] sm:$0xf]
    %v5943 = vld [vmem:[%s6 + $0x50] sm:$0xf]
    %v5944 = vld [vmem:[%s6 + $0x54] sm:$0xf]
    %v5945 = vld [vmem:[%s6 + $0x58] sm:$0xf]
    %v5946 = vld [vmem:[%s6 + $0x5c] sm:$0xf]
    %v5947 = vld [vmem:[%s6 + $0x60] sm:$0xf]
    %v5948 = vld [vmem:[%s6 + $0x64] sm:$0xf]
    %v5949 = vld [vmem:[%s6 + $0x68] sm:$0xf]
    %v5950 = vld [vmem:[%s6 + $0x6c] sm:$0xf]
    %v5951 = vld [vmem:[%s6 + $0x70] sm:$0xf]
    %v5952 = vld [vmem:[%s6 + $0x74] sm:$0xf]
    %v5953 = vld [vmem:[%s6 + $0x78] sm:$0xf]
    %v5954 = vld [vmem:[%s6 + $0x7c] sm:$0xf]
    %v5955 = vpack.c.bf16 %v5916, %v5915
    %v5956 = vpack.c.bf16 %v5918, %v5917
    %v5957 = vpack.c.bf16 %v5920, %v5919
    %v5958 = vpack.c.bf16 %v5922, %v5921
    %v5991 = vunpack.c.l.b16 %v5923
    %v5992 = vunpack.c.l.b16 %v5924
    %v5993 = vunpack.c.l.b16 %v5925
    %v5994 = vunpack.c.l.b16 %v5926
    %v5995 = vunpack.c.l.b16 %v5927
    %v5996 = vunpack.c.l.b16 %v5928
    %v5997 = vunpack.c.l.b16 %v5929
    %v5998 = vunpack.c.l.b16 %v5930
    %v5999 = vunpack.c.l.b16 %v5931
    %v6000 = vunpack.c.l.b16 %v5932
    %v6001 = vunpack.c.l.b16 %v5933
    %v6002 = vunpack.c.l.b16 %v5934
    %v6003 = vunpack.c.l.b16 %v5935
    %v6004 = vunpack.c.l.b16 %v5936
    %v6005 = vunpack.c.l.b16 %v5937
    %v6006 = vunpack.c.l.b16 %v5938
    %v6007 = vunpack.c.l.b16 %v5939
    %v6008 = vunpack.c.l.b16 %v5940
    %v6009 = vunpack.c.l.b16 %v5941
    %v6010 = vunpack.c.l.b16 %v5942
    %v6011 = vunpack.c.l.b16 %v5943
    %v6012 = vunpack.c.l.b16 %v5944
    %v6013 = vunpack.c.l.b16 %v5945
    %v6014 = vunpack.c.l.b16 %v5946
    %v6015 = vunpack.c.l.b16 %v5947
    %v6016 = vunpack.c.l.b16 %v5948
    %v6017 = vunpack.c.l.b16 %v5949
    %v6018 = vunpack.c.l.b16 %v5950
    %v6019 = vunpack.c.l.b16 %v5951
    %v6020 = vunpack.c.l.b16 %v5952
    %v6021 = vunpack.c.l.b16 %v5953
    %v6022 = vunpack.c.l.b16 %v5954
    %v6023 = vpack.c.b16 %v5992, %v5991
    %v6024 = vpack.c.b16 %v5994, %v5993
    %v6025 = vpack.c.b16 %v5996, %v5995
    %v6026 = vpack.c.b16 %v5998, %v5997
    %v6027 = vpack.c.b16 %v6000, %v5999
    %v6028 = vpack.c.b16 %v6002, %v6001
    %v6029 = vpack.c.b16 %v6004, %v6003
    %v6030 = vpack.c.b16 %v6006, %v6005
    %v6031 = vpack.c.b16 %v6008, %v6007
    %v6032 = vpack.c.b16 %v6010, %v6009
    %v6033 = vpack.c.b16 %v6012, %v6011
    %v6034 = vpack.c.b16 %v6014, %v6013
    %v6035 = vpack.c.b16 %v6016, %v6015
    %v6036 = vpack.c.b16 %v6018, %v6017
    %v6037 = vpack.c.b16 %v6020, %v6019
    %v6038 = vpack.c.b16 %v6022, %v6021
    %v6040 = vsel %vm3257, %v6023, 0
    %v6043 = vsel %vm3257, %v6024, 0
    %v6046 = vsel %vm3257, %v6025, 0
    %v6049 = vsel %vm3257, %v6026, 0
    %v6052 = vsel %vm3257, %v6027, 0
    %v6055 = vsel %vm3257, %v6028, 0
    %v6058 = vsel %vm3257, %v6029, 0
    %v6061 = vsel %vm3257, %v6030, 0
    %v6064 = vsel %vm3257, %v6031, 0
    %v6067 = vsel %vm3257, %v6032, 0
    %v6070 = vsel %vm3257, %v6033, 0
    %v6073 = vsel %vm3257, %v6034, 0
    %v6076 = vsel %vm3257, %v6035, 0
    %v6079 = vsel %vm3257, %v6036, 0
    %v6082 = vsel %vm3257, %v6037, 0
    %v6085 = vsel %vm3257, %v6038, 0
    %6087 = vmatpush.bf16.msra.mxu0 0
    %6088 = vmatpush.bf16.msra.mxu0 0
    %6089 = vmatpush.bf16.msra.mxu0 0
    %6090 = vmatpush.bf16.msra.mxu0 0
    %6091 = vmatpush.bf16.msra.mxu0 %v5958
    %6092 = vmatpush.bf16.msra.mxu0 %v5957
    %6093 = vmatpush.bf16.msra.mxu0 %v5956
    %6094 = vmatpush.bf16.msra.mxu0 %v5955
    %6095 = vmatmul.bf16.gmra.mxu0 %v6040
    %v6096 = vpop.f32.mrf.mxu0
    %v6097 = vadd.f32 0.0, %v6096
    %v6098 = vpop.f32.mrf.mxu0
    %v6099 = vadd.f32 0.0, %v6098
    %6100 = vmatmul.bf16.gmra.mxu0 %v6043
    %v6101 = vpop.f32.mrf.mxu0
    %v6102 = vadd.f32 0.0, %v6101
    %v6103 = vpop.f32.mrf.mxu0
    %v6104 = vadd.f32 0.0, %v6103
    %6105 = vmatmul.bf16.gmra.mxu0 %v6046
    %v6106 = vpop.f32.mrf.mxu0
    %v6107 = vadd.f32 0.0, %v6106
    %v6108 = vpop.f32.mrf.mxu0
    %v6109 = vadd.f32 0.0, %v6108
    %6110 = vmatmul.bf16.gmra.mxu0 %v6049
    %v6111 = vpop.f32.mrf.mxu0
    %v6112 = vadd.f32 0.0, %v6111
    %v6113 = vpop.f32.mrf.mxu0
    %v6114 = vadd.f32 0.0, %v6113
    %6115 = vmatmul.bf16.gmra.mxu0 %v6052
    %v6116 = vpop.f32.mrf.mxu0
    %v6117 = vadd.f32 0.0, %v6116
    %v6118 = vpop.f32.mrf.mxu0
    %v6119 = vadd.f32 0.0, %v6118
    %6120 = vmatmul.bf16.gmra.mxu0 %v6055
    %v6121 = vpop.f32.mrf.mxu0
    %v6122 = vadd.f32 0.0, %v6121
    %v6123 = vpop.f32.mrf.mxu0
    %v6124 = vadd.f32 0.0, %v6123
    %6125 = vmatmul.bf16.gmra.mxu0 %v6058
    %v6126 = vpop.f32.mrf.mxu0
    %v6127 = vadd.f32 0.0, %v6126
    %v6128 = vpop.f32.mrf.mxu0
    %v6129 = vadd.f32 0.0, %v6128
    %6130 = vmatmul.bf16.gmra.mxu0 %v6061
    %v6131 = vpop.f32.mrf.mxu0
    %v6132 = vadd.f32 0.0, %v6131
    %v6133 = vpop.f32.mrf.mxu0
    %v6134 = vadd.f32 0.0, %v6133
    %6135 = vmatmul.bf16.gmra.mxu0 %v6064
    %v6136 = vpop.f32.mrf.mxu0
    %v6137 = vadd.f32 0.0, %v6136
    %v6138 = vpop.f32.mrf.mxu0
    %v6139 = vadd.f32 0.0, %v6138
    %6140 = vmatmul.bf16.gmra.mxu0 %v6067
    %v6141 = vpop.f32.mrf.mxu0
    %v6142 = vadd.f32 0.0, %v6141
    %v6143 = vpop.f32.mrf.mxu0
    %v6144 = vadd.f32 0.0, %v6143
    %6145 = vmatmul.bf16.gmra.mxu0 %v6070
    %v6146 = vpop.f32.mrf.mxu0
    %v6147 = vadd.f32 0.0, %v6146
    %v6148 = vpop.f32.mrf.mxu0
    %v6149 = vadd.f32 0.0, %v6148
    %6150 = vmatmul.bf16.gmra.mxu0 %v6073
    %v6151 = vpop.f32.mrf.mxu0
    %v6152 = vadd.f32 0.0, %v6151
    %v6153 = vpop.f32.mrf.mxu0
    %v6154 = vadd.f32 0.0, %v6153
    %6155 = vmatmul.bf16.gmra.mxu0 %v6076
    %v6156 = vpop.f32.mrf.mxu0
    %v6157 = vadd.f32 0.0, %v6156
    %v6158 = vpop.f32.mrf.mxu0
    %v6159 = vadd.f32 0.0, %v6158
    %6160 = vmatmul.bf16.gmra.mxu0 %v6079
    %v6161 = vpop.f32.mrf.mxu0
    %v6162 = vadd.f32 0.0, %v6161
    %v6163 = vpop.f32.mrf.mxu0
    %v6164 = vadd.f32 0.0, %v6163
    %6165 = vmatmul.bf16.gmra.mxu0 %v6082
    %v6166 = vpop.f32.mrf.mxu0
    %v6167 = vadd.f32 0.0, %v6166
    %v6168 = vpop.f32.mrf.mxu0
    %v6169 = vadd.f32 0.0, %v6168
    %6170 = vmatmul.bf16.gmra.mxu0 %v6085
    %v6171 = vpop.f32.mrf.mxu0
    %v6172 = vadd.f32 0.0, %v6171
    %v6173 = vpop.f32.mrf.mxu0
    %v6174 = vadd.f32 0.0, %v6173
    %6175 = vdwg.mxu0
    %6176 = vst.msk [vmem:[#allocation3] sm:$0xff] %vm3395, %v6097
    %6177 = vst.msk [vmem:[#allocation3 + $0x10] sm:$0xff] %vm3395, %v6099
    %6180 = vrot.lane.b32.xlu0 %v6102, 16
    %v6181 = vpop.permute.xlu0 %6180
    %6182 = vrot.lane.b32.xlu0 %v6104, 16
    %v6183 = vpop.permute.xlu0 %6182
    %6186 = vst.msk [vmem:[#allocation3] sm:$0xff] %vm3406, %v6181
    %6187 = vst.msk [vmem:[#allocation3 + $0x10] sm:$0xff] %vm3406, %v6183
    %6190 = vrot.lane.b32.xlu0 %v6107, 32
    %v6191 = vpop.permute.xlu0 %6190
    %6192 = vrot.lane.b32.xlu0 %v6109, 32
    %v6193 = vpop.permute.xlu0 %6192
    %6196 = vst.msk [vmem:[#allocation3] sm:$0xff] %vm3417, %v6191
    %6197 = vst.msk [vmem:[#allocation3 + $0x10] sm:$0xff] %vm3417, %v6193
    %6200 = vrot.lane.b32.xlu0 %v6112, 48
    %v6201 = vpop.permute.xlu0 %6200
    %6202 = vrot.lane.b32.xlu0 %v6114, 48
    %v6203 = vpop.permute.xlu0 %6202
    %6206 = vst.msk [vmem:[#allocation3] sm:$0xff] %vm3428, %v6201
    %6207 = vst.msk [vmem:[#allocation3 + $0x10] sm:$0xff] %vm3428, %v6203
    %6210 = vrot.lane.b32.xlu0 %v6117, 64
    %v6211 = vpop.permute.xlu0 %6210
    %6212 = vrot.lane.b32.xlu0 %v6119, 64
    %v6213 = vpop.permute.xlu0 %6212
    %6216 = vst.msk [vmem:[#allocation3] sm:$0xff] %vm3439, %v6211
    %6217 = vst.msk [vmem:[#allocation3 + $0x10] sm:$0xff] %vm3439, %v6213
    %6220 = vrot.lane.b32.xlu0 %v6122, 80
    %v6221 = vpop.permute.xlu0 %6220
    %6222 = vrot.lane.b32.xlu0 %v6124, 80
    %v6223 = vpop.permute.xlu0 %6222
    %6226 = vst.msk [vmem:[#allocation3] sm:$0xff] %vm3450, %v6221
    %6227 = vst.msk [vmem:[#allocation3 + $0x10] sm:$0xff] %vm3450, %v6223
    %6230 = vrot.lane.b32.xlu0 %v6127, 96
    %v6231 = vpop.permute.xlu0 %6230
    %6232 = vrot.lane.b32.xlu0 %v6129, 96
    %v6233 = vpop.permute.xlu0 %6232
    %6236 = vst.msk [vmem:[#allocation3] sm:$0xff] %vm3461, %v6231
    %6237 = vst.msk [vmem:[#allocation3 + $0x10] sm:$0xff] %vm3461, %v6233
    %6240 = vrot.lane.b32.xlu0 %v6132, 112
    %v6241 = vpop.permute.xlu0 %6240
    %6242 = vrot.lane.b32.xlu0 %v6134, 112
    %v6243 = vpop.permute.xlu0 %6242
    %6246 = vst.msk [vmem:[#allocation3] sm:$0xff] %vm3472, %v6241
    %6247 = vst.msk [vmem:[#allocation3 + $0x10] sm:$0xff] %vm3472, %v6243
    %6248 = vst.msk [vmem:[#allocation3 + $0x8] sm:$0xff] %vm3395, %v6137
    %6249 = vst.msk [vmem:[#allocation3 + $0x18] sm:$0xff] %vm3395, %v6139
    %6252 = vrot.lane.b32.xlu0 %v6142, 16
    %v6253 = vpop.permute.xlu0 %6252
    %6254 = vrot.lane.b32.xlu0 %v6144, 16
    %v6255 = vpop.permute.xlu0 %6254
    %6258 = vst.msk [vmem:[#allocation3 + $0x8] sm:$0xff] %vm3406, %v6253
    %6259 = vst.msk [vmem:[#allocation3 + $0x18] sm:$0xff] %vm3406, %v6255
    %6262 = vrot.lane.b32.xlu0 %v6147, 32
    %v6263 = vpop.permute.xlu0 %6262
    %6264 = vrot.lane.b32.xlu0 %v6149, 32
    %v6265 = vpop.permute.xlu0 %6264
    %6268 = vst.msk [vmem:[#allocation3 + $0x8] sm:$0xff] %vm3417, %v6263
    %6269 = vst.msk [vmem:[#allocation3 + $0x18] sm:$0xff] %vm3417, %v6265
    %6272 = vrot.lane.b32.xlu0 %v6152, 48
    %v6273 = vpop.permute.xlu0 %6272
    %6274 = vrot.lane.b32.xlu0 %v6154, 48
    %v6275 = vpop.permute.xlu0 %6274
    %6278 = vst.msk [vmem:[#allocation3 + $0x8] sm:$0xff] %vm3428, %v6273
    %6279 = vst.msk [vmem:[#allocation3 + $0x18] sm:$0xff] %vm3428, %v6275
    %6282 = vrot.lane.b32.xlu0 %v6157, 64
    %v6283 = vpop.permute.xlu0 %6282
    %6284 = vrot.lane.b32.xlu0 %v6159, 64
    %v6285 = vpop.permute.xlu0 %6284
    %6288 = vst.msk [vmem:[#allocation3 + $0x8] sm:$0xff] %vm3439, %v6283
    %6289 = vst.msk [vmem:[#allocation3 + $0x18] sm:$0xff] %vm3439, %v6285
    %6292 = vrot.lane.b32.xlu0 %v6162, 80
    %v6293 = vpop.permute.xlu0 %6292
    %6294 = vrot.lane.b32.xlu0 %v6164, 80
    %v6295 = vpop.permute.xlu0 %6294
    %6298 = vst.msk [vmem:[#allocation3 + $0x8] sm:$0xff] %vm3450, %v6293
    %6299 = vst.msk [vmem:[#allocation3 + $0x18] sm:$0xff] %vm3450, %v6295
    %6302 = vrot.lane.b32.xlu0 %v6167, 96
    %v6303 = vpop.permute.xlu0 %6302
    %6304 = vrot.lane.b32.xlu0 %v6169, 96
    %v6305 = vpop.permute.xlu0 %6304
    %6308 = vst.msk [vmem:[#allocation3 + $0x8] sm:$0xff] %vm3461, %v6303
    %6309 = vst.msk [vmem:[#allocation3 + $0x18] sm:$0xff] %vm3461, %v6305
    %6312 = vrot.lane.b32.xlu0 %v6172, 112
    %v6313 = vpop.permute.xlu0 %6312
    %6314 = vrot.lane.b32.xlu0 %v6174, 112
    %v6315 = vpop.permute.xlu0 %6314
    %6318 = vst.msk [vmem:[#allocation3 + $0x8] sm:$0xff] %vm3472, %v6313
    %6319 = vst.msk [vmem:[#allocation3 + $0x18] sm:$0xff] %vm3472, %v6315
    %v6320 = vld [vmem:[#allocation3] sm:$0xff]
    %v6321 = vld [vmem:[#allocation3 + $0x8] sm:$0xff]
    %v6322 = vld [vmem:[#allocation3 + $0x10] sm:$0xff]
    %v6323 = vld [vmem:[#allocation3 + $0x18] sm:$0xff]
    %v6324 = vpack.c.bf16 %v6322, %v6320
    %v6325 = vpack.c.bf16 %v6323, %v6321
    %v6326 = vld [vmem:[%s7] sm:$0xf]
    %v6327 = vld [vmem:[%s7 + $0x4] sm:$0xf]
    %v6328 = vld [vmem:[%s7 + $0x8] sm:$0xf]
    %v6329 = vld [vmem:[%s7 + $0xc] sm:$0xf]
    %v6330 = vld [vmem:[%s7 + $0x10] sm:$0xf]
    %v6331 = vld [vmem:[%s7 + $0x14] sm:$0xf]
    %v6332 = vld [vmem:[%s7 + $0x18] sm:$0xf]
    %v6333 = vld [vmem:[%s7 + $0x1c] sm:$0xf]
    %v6334 = vld [vmem:[%s7 + $0x20] sm:$0xf]
    %v6335 = vld [vmem:[%s7 + $0x24] sm:$0xf]
    %v6336 = vld [vmem:[%s7 + $0x28] sm:$0xf]
    %v6337 = vld [vmem:[%s7 + $0x2c] sm:$0xf]
    %v6338 = vld [vmem:[%s7 + $0x30] sm:$0xf]
    %v6339 = vld [vmem:[%s7 + $0x34] sm:$0xf]
    %v6340 = vld [vmem:[%s7 + $0x38] sm:$0xf]
    %v6341 = vld [vmem:[%s7 + $0x3c] sm:$0xf]
    %v6342 = vld [vmem:[%s7 + $0x40] sm:$0xf]
    %v6343 = vld [vmem:[%s7 + $0x44] sm:$0xf]
    %v6344 = vld [vmem:[%s7 + $0x48] sm:$0xf]
    %v6345 = vld [vmem:[%s7 + $0x4c] sm:$0xf]
    %v6346 = vld [vmem:[%s7 + $0x50] sm:$0xf]
    %v6347 = vld [vmem:[%s7 + $0x54] sm:$0xf]
    %v6348 = vld [vmem:[%s7 + $0x58] sm:$0xf]
    %v6349 = vld [vmem:[%s7 + $0x5c] sm:$0xf]
    %v6350 = vld [vmem:[%s7 + $0x60] sm:$0xf]
    %v6351 = vld [vmem:[%s7 + $0x64] sm:$0xf]
    %v6352 = vld [vmem:[%s7 + $0x68] sm:$0xf]
    %v6353 = vld [vmem:[%s7 + $0x6c] sm:$0xf]
    %v6354 = vld [vmem:[%s7 + $0x70] sm:$0xf]
    %v6355 = vld [vmem:[%s7 + $0x74] sm:$0xf]
    %v6356 = vld [vmem:[%s7 + $0x78] sm:$0xf]
    %v6357 = vld [vmem:[%s7 + $0x7c] sm:$0xf]
    %v6358 = vld [vmem:[%s8] sm:$0x1]
    %v6360 = vperm.slane %v6358, 0
    %v6394 = vunpack.c.l.b16 %v6326
    %v6395 = vunpack.c.l.b16 %v6327
    %v6396 = vunpack.c.l.b16 %v6328
    %v6397 = vunpack.c.l.b16 %v6329
    %v6398 = vunpack.c.l.b16 %v6330
    %v6399 = vunpack.c.l.b16 %v6331
    %v6400 = vunpack.c.l.b16 %v6332
    %v6401 = vunpack.c.l.b16 %v6333
    %v6402 = vunpack.c.l.b16 %v6334
    %v6403 = vunpack.c.l.b16 %v6335
    %v6404 = vunpack.c.l.b16 %v6336
    %v6405 = vunpack.c.l.b16 %v6337
    %v6406 = vunpack.c.l.b16 %v6338
    %v6407 = vunpack.c.l.b16 %v6339
    %v6408 = vunpack.c.l.b16 %v6340
    %v6409 = vunpack.c.l.b16 %v6341
    %v6410 = vunpack.c.l.b16 %v6342
    %v6411 = vunpack.c.l.b16 %v6343
    %v6412 = vunpack.c.l.b16 %v6344
    %v6413 = vunpack.c.l.b16 %v6345
    %v6414 = vunpack.c.l.b16 %v6346
    %v6415 = vunpack.c.l.b16 %v6347
    %v6416 = vunpack.c.l.b16 %v6348
    %v6417 = vunpack.c.l.b16 %v6349
    %v6418 = vunpack.c.l.b16 %v6350
    %v6419 = vunpack.c.l.b16 %v6351
    %v6420 = vunpack.c.l.b16 %v6352
    %v6421 = vunpack.c.l.b16 %v6353
    %v6422 = vunpack.c.l.b16 %v6354
    %v6423 = vunpack.c.l.b16 %v6355
    %v6424 = vunpack.c.l.b16 %v6356
    %v6425 = vunpack.c.l.b16 %v6357
    %v6426 = vpack.c.b16 %v6395, %v6394
    %v6427 = vpack.c.b16 %v6397, %v6396
    %v6428 = vpack.c.b16 %v6399, %v6398
    %v6429 = vpack.c.b16 %v6401, %v6400
    %v6430 = vpack.c.b16 %v6403, %v6402
    %v6431 = vpack.c.b16 %v6405, %v6404
    %v6432 = vpack.c.b16 %v6407, %v6406
    %v6433 = vpack.c.b16 %v6409, %v6408
    %v6434 = vpack.c.b16 %v6411, %v6410
    %v6435 = vpack.c.b16 %v6413, %v6412
    %v6436 = vpack.c.b16 %v6415, %v6414
    %v6437 = vpack.c.b16 %v6417, %v6416
    %v6438 = vpack.c.b16 %v6419, %v6418
    %v6439 = vpack.c.b16 %v6421, %v6420
    %v6440 = vpack.c.b16 %v6423, %v6422
    %v6441 = vpack.c.b16 %v6425, %v6424
    %6458 = vmatpush.bf16.msra.mxu0 %v6433
    %6459 = vmatpush.bf16.msra.mxu0 %v6432
    %6460 = vmatpush.bf16.msra.mxu0 %v6431
    %6461 = vmatpush.bf16.msra.mxu0 %v6430
    %6462 = vmatpush.bf16.msra.mxu0 %v6429
    %6463 = vmatpush.bf16.msra.mxu0 %v6428
    %6464 = vmatpush.bf16.msra.mxu0 %v6427
    %6465 = vmatpush.bf16.msra.mxu0 %v6426
    %6466 = vmatmul.bf16.gmra.mxu0 %v6324
    %v6467 = vpop.f32.mrf.mxu0
    %v6468 = vadd.f32 %v6360, %v6467
    %v6469 = vpop.f32.mrf.mxu0
    %v6470 = vadd.f32 %v6360, %v6469
    %6471 = vdwg.mxu0
    %6472 = vmatpush.bf16.msra.mxu0 %v6441
    %6473 = vmatpush.bf16.msra.mxu0 %v6440
    %6474 = vmatpush.bf16.msra.mxu0 %v6439
    %6475 = vmatpush.bf16.msra.mxu0 %v6438
    %6476 = vmatpush.bf16.msra.mxu0 %v6437
    %6477 = vmatpush.bf16.msra.mxu0 %v6436
    %6478 = vmatpush.bf16.msra.mxu0 %v6435
    %6479 = vmatpush.bf16.msra.mxu0 %v6434
    %6480 = vmatmul.bf16.gmra.mxu0 %v6325
    %v6481 = vpop.f32.mrf.mxu0
    %v6482 = vadd.f32 %v6468, %v6481
    %v6483 = vpop.f32.mrf.mxu0
    %v6484 = vadd.f32 %v6470, %v6483
    %6485 = vdwg.mxu0
    %v6486 = vmax.f32 %v6482, 0.0
    %v6487 = vmax.f32 %v6484, 0.0
    %v6488 = vpack.c.bf16 %v6487, %v6486
    %v6489 = vld [vmem:[%s9] sm:$0xf]
    %v6490 = vld [vmem:[%s9 + $0x4] sm:$0xf]
    %v6491 = vld [vmem:[%s9 + $0x8] sm:$0xf]
    %v6492 = vld [vmem:[%s9 + $0xc] sm:$0xf]
    %v6493 = vld [vmem:[%s10] sm:$0x1]
    %v6495 = vperm.slane %v6493, 0
    %v6501 = vunpack.c.l.b16 %v6489
    %v6502 = vunpack.c.l.b16 %v6490
    %v6503 = vunpack.c.l.b16 %v6491
    %v6504 = vunpack.c.l.b16 %v6492
    %v6505 = vpack.c.b16 %v6502, %v6501
    %v6506 = vpack.c.b16 %v6504, %v6503
    %v6510 = vsel %vm3736, %v6488, 0
    %6512 = vmatpush.bf16.msra.mxu0 0
    %6513 = vmatpush.bf16.msra.mxu0 0
    %6514 = vmatpush.bf16.msra.mxu0 0
    %6515 = vmatpush.bf16.msra.mxu0 0
    %6516 = vmatpush.bf16.msra.mxu0 0
    %6517 = vmatpush.bf16.msra.mxu0 0
    %6518 = vmatpush.bf16.msra.mxu0 %v6506
    %6519 = vmatpush.bf16.msra.mxu0 %v6505
    %6520 = vmatmul.bf16.gmra.mxu0 %v6510
    %v6521 = vpop.f32.mrf.mxu0
    %v6522 = vadd.f32 %v6495, %v6521
    %v6523 = vpop.f32.mrf.mxu0
    %v6524 = vadd.f32 %v6495, %v6523
    %6525 = vdwg.mxu0
    %6526 = vst.msk [vmem:[#allocation4 + $0x10] sm:$0xff] %vm2400, %v6522
    %6527 = vst.msk [vmem:[#allocation4 + $0x18] sm:$0xff] %vm2400, %v6524
    // Predicated region
    $region46: #{noise_encoder_forward.1} parent=1 // pred_check
      _
    $region47: #{noise_encoder_forward.1} parent=1 // pred_check_branch
      %6529 = sbr.rel (0) target = $region49
    $region48: #{noise_encoder_forward.1} parent=1 // pred_region
      %6531 = vsyncadd [#allocation5], 0
      %s6532 = sshll.u32 [#allocation4], 4
      %s6533 = int_to_ptr.vmem [resolvable:$true] %s6532
      %s6534 = sshll.u32 %s11, 4
      %s6535 = int_to_ptr.hbm [resolvable:$true] %s6534
      %6540 = dma.vmem_to_hbm [thread:$0]  %s6533, 512, %s6535, [#allocation5], 128, 128, 8
    $region49: #{noise_encoder_forward.1} parent=1 // pred_fallthru
      _
    // Predicated region
    $region50: #{noise_encoder_forward.1} parent=1 // pred_check
      _
    $region51: #{noise_encoder_forward.1} parent=1 // pred_check_branch
      %6542 = sbr.rel (0) target = $region53
    $region52: #{noise_encoder_forward.1} parent=1 // pred_region
      %6544 = dma.done [#allocation5], 512
    $region53: #{noise_encoder_forward.1} parent=1 // pred_fallthru
      _
    %6545 = vsyncpa [#allocation5], 1

</llo_original>
